<compile_context>
chip_gen: v7x
topology: tpu7x:2x2x1
jax: 0.10.0
libtpu: 0.0.40
codegen_flags: <defaults>
</compile_context>

<pallas_src>
import jax
import jax.numpy as jnp
from jax.experimental import pallas as pl
from jax.experimental.pallas import tpu as pltpu  # noqa: F401  (not needed at this size)


# ---------------------------------------------------------------------------
# Parameter construction (deterministic, synthetic — no checkpoint loading).
# Weights are stored pre-transposed to [in, out]; GRU gate order is (r, z, n).
# ---------------------------------------------------------------------------
def init_params(key, cfg):
    Q, F, D, H, L = (cfg["query_size"], cfg["num_features"], cfg["fc_dim"],
                     cfg["hidden"], cfg["gru_layers"])

    def nxt():
        nonlocal key
        key, sub = jax.random.split(key)
        return sub

    def mk(*shape):
        return (0.2 * jax.random.normal(nxt(), shape)).astype(jnp.float32)

    ws = []
    ws += [mk(F, D), mk(1, D)]                 # fc_embedding: W [F,D], b
    ws += [mk(D, 64), mk(1, 64)]               # fc_correct:   W [D,64], b
    ws += [mk((Q - 1) * D, 64), mk(1, 64)]     # fc_rest:      W [(Q-1)D,64], b
    for l in range(L):
        in_dim = 128 if l == 0 else H
        ws += [mk(in_dim, 3 * H), mk(1, 3 * H),  # W_ih [in,3H], b_ih
               mk(H, 3 * H), mk(1, 3 * H)]       # W_hh [H,3H],  b_hh
    curr = H
    for n in cfg["fc_layers"]:
        ws += [mk(curr, n), mk(1, n)]            # fc_layers[i]
        curr = n
    ws += [mk(curr, F), mk(1, F)]                # fc_mu
    ws += [mk(curr, F), mk(1, F)]                # fc_logvar
    return ws


# ---------------------------------------------------------------------------
# Weight preprocessing (pure layout plumbing, done once in the wrapper).
# ---------------------------------------------------------------------------
def _block_diag(mat, n):
    r, c = mat.shape
    out = jnp.zeros((n * r, n * c), mat.dtype)
    for i in range(n):
        out = out.at[i * r:(i + 1) * r, i * c:(i + 1) * c].set(mat)
    return out


def _gru_gate_pack(W_ih, b_ih, W_hh, b_hh, H):
    """Repack PyTorch GRU weights (gate order r,z,n) into a 4H-column layout
        columns [0:2H]  -> r,z gates with input+hidden contributions SUMMED
        columns [2H:3H] -> input-side n gate (gi_n)
        columns [3H:4H] -> hidden-side n gate (gh_n)
    so a GRU cell needs one matmul, one add, one sigmoid and one tanh.
    Biases are folded: b_ih+b_hh for r,z; b_ih_n / b_hh_n in their own blocks.
    """
    zi = jnp.zeros((W_ih.shape[0], H), W_ih.dtype)
    zh = jnp.zeros((W_hh.shape[0], H), W_hh.dtype)
    W_i4 = jnp.concatenate([W_ih, zi], axis=1)                         # [in, 4H]
    W_h4 = jnp.concatenate([W_hh[:, :2 * H], zh, W_hh[:, 2 * H:]], axis=1)  # [H, 4H]
    b4 = jnp.concatenate([b_ih[:, :2 * H] + b_hh[:, :2 * H],
                          b_ih[:, 2 * H:], b_hh[:, 2 * H:]], axis=1)   # [1, 4H]
    return W_i4, W_h4, b4


def build_named_weights(weights, cfg):
    Q, H, L = cfg["query_size"], cfg["hidden"], cfg["gru_layers"]
    it = iter(weights)
    nx = lambda: next(it)

    W_emb, b_emb = nx(), nx()
    W_c, b_c = nx(), nx()
    W_rest, b_r = nx(), nx()
    named = [
        ("W_emb", W_emb), ("b_emb", b_emb),
        ("W_emb_bd", _block_diag(W_emb, Q - 1)),
        ("b_emb_t", jnp.tile(b_emb, (1, Q - 1))),
        ("W_c", W_c), ("b_c", b_c),
        ("W_rest", W_rest), ("b_r", b_r),
    ]
    for l in range(L):
        W_ih, b_ih, W_hh, b_hh = nx(), nx(), nx(), nx()
        W_i4, W_h4, b4 = _gru_gate_pack(W_ih, b_ih, W_hh, b_hh, H)
        if l == 0:
            # Layer-0 input weight split into (correct | rest) halves so the
            # kernel never lane-concatenates the 64-lane activations.
            named += [("W_i0_c", W_i4[:64]), ("W_i0_r", W_i4[64:]),
                      ("W_h0", W_h4), ("b_g0", b4)]
        else:
            # Upper layers: fuse input-side and hidden-side into ONE [2H, 4H]
            # matmul applied to [x | h]; all biases pre-summed into b_g{l}.
            named += [(f"W_f{l}", jnp.concatenate([W_i4, W_h4], axis=0)),
                      (f"b_g{l}", b4)]
    for i in range(len(cfg["fc_layers"])):
        named += [(f"W_fc{i}", nx()), (f"b_fc{i}", nx())]
    W_mu, b_mu = nx(), nx()
    W_lv, b_lv = nx(), nx()
    named += [("W_mulv", jnp.concatenate([W_mu, W_lv], axis=1)),
              ("b_mulv", jnp.concatenate([b_mu, b_lv], axis=1))]
    return named


def pack_weights(named):
    max_c = max(w.shape[1] for _, w in named)
    width = ((max_c + 127) // 128) * 128
    offsets, parts, off = {}, [], 0
    for name, w in named:
        r, c = w.shape
        rpad = ((r + 7) // 8) * 8
        blk = jnp.zeros((rpad, width), jnp.float32).at[:r, :c].set(
            w.astype(jnp.float32))
        parts.append(blk)
        offsets[name] = (off, r, c)
        off += rpad
    return jnp.concatenate(parts, axis=0), offsets


# ---------------------------------------------------------------------------
# Pallas kernel (single invocation, no grid, no VMEM scratch).
# ---------------------------------------------------------------------------
def make_kernel(cfg, offsets):
    S, B = cfg["seq"], cfg["batch"]
    F, Q = cfg["num_features"], cfg["query_size"]
    H, L = cfg["hidden"], cfg["gru_layers"]
    n_fc = len(cfg["fc_layers"])
    slope = 0.01  # F.leaky_relu default negative_slope

    # Gate lane-slicing / slab-width assumptions (see review): all 4H gate
    # columns must fit within one 128-lane vreg row.
    assert 4 * H <= 128, "gate packing assumes 4*hidden <= 128 lanes"

    def kernel(q_ref, h0_ref, w_ref, mulv_ref, hout_ref):
        def W(name):
            off, r, c = offsets[name]
            return w_ref[off:off + r, 0:c]

        def mm(a, b):
            return jnp.dot(a, b, preferred_element_type=jnp.float32)

        def leaky(x):
            return jnp.where(x > 0, x, slope * x)

        def gru_cell(s, h_prev):
            # s columns: [gi_r+gh_r | gi_z+gh_z | gi_n | gh_n] (biases folded).
            rz = jax.nn.sigmoid(s[:, 0:2 * H])
            r_g = rz[:, 0:H]
            z_g = rz[:, H:2 * H]
            n_g = jnp.tanh(s[:, 2 * H:3 * H] + r_g * s[:, 3 * H:4 * H])
            return (1.0 - z_g) * n_g + z_g * h_prev

        # ---- non-recurrent prologue: batched over all S*B rows ------------
        q = q_ref[...]                                   # [S*B, Q*F]
        qc = q[:, 0:F]                                   # correct slot
        qr = q[:, F:Q * F]                               # remaining slots
        e_c = mm(qc, W("W_emb")) + W("b_emb")            # [S*B, D]
        c = leaky(mm(e_c, W("W_c")) + W("b_c"))          # [S*B, 64]
        e_r = mm(qr, W("W_emb_bd")) + W("b_emb_t")       # [S*B, (Q-1)*D]
        r = leaky(mm(e_r, W("W_rest")) + W("b_r"))       # [S*B, 64]
        # Layer-0 gate input for ALL timesteps, kept in registers: [S*B, 4H].
        gi0 = mm(c, W("W_i0_c")) + mm(r, W("W_i0_r")) + W("b_g0")

        # Recurrence weights loaded once; bias broadcasts hoisted (no CSE of
        # broadcast_in_dim inside the unrolled loop).
        Wh0 = W("W_h0")
        Wf = [None] + [W(f"W_f{l}") for l in range(1, L)]
        bf = [None] + [jnp.broadcast_to(W(f"b_g{l}"), (B, 4 * H))
                       for l in range(1, L)]

        hs = [h0_ref[l * B:(l + 1) * B, :] for l in range(L)]   # each [B, H]

        # ---- recurrence: wavefront-scheduled across layers -----------------
        # Wave w runs layer l on timestep t = w - l; the cells within a wave
        # are independent (layer l consumes layer l-1's output of the SAME
        # timestep, produced one wave earlier) -> critical path S+L-1 waves.
        x_prev = [None] * L          # latest output of each layer (registers)
        outs = []                    # top-layer outputs, in timestep order
        for w in range(S + L - 1):
            new_h = {}
            for l in range(L):
                t = w - l
                if not (0 <= t < S):
                    continue
                if l == 0:
                    s = gi0[t * B:(t + 1) * B, :] + mm(hs[0], Wh0)
                else:
                    xh = jnp.concatenate([x_prev[l - 1], hs[l]], axis=-1)
                    s = mm(xh, Wf[l]) + bf[l]
                new_h[l] = gru_cell(s, hs[l])
            for l, h_new in new_h.items():               # commit after the wave
                hs[l] = h_new
                x_prev[l] = h_new
                if l == L - 1:
                    outs.append(h_new)

        # ---- fc stack + fused mu|logvar head on the stacked [S*B, H] -------
        out = jnp.concatenate(outs, axis=0)              # registers -> one slab
        for i in range(n_fc):
            out = leaky(mm(out, W(f"W_fc{i}")) + W(f"b_fc{i}"))
        mulv_ref[...] = mm(out, W("W_mulv")) + W("b_mulv")      # [S*B, 2F]
        hout_ref[...] = jnp.concatenate(hs, axis=0)             # [L*B, H], one store

    return kernel


def encoder_forward(query, h0, weights, cfg):
    S, B, Q, F = (cfg["seq"], cfg["batch"], cfg["query_size"],
                  cfg["num_features"])
    H, L = cfg["hidden"], cfg["gru_layers"]

    # Wrapper-side layout plumbing only (single query input, flat hidden).
    q_flat = query.reshape(S * B, Q * F)
    h0_flat = h0.reshape(L * B, H)
    wslab, offsets = pack_weights(build_named_weights(weights, cfg))

    mulv, hout = pl.pallas_call(
        make_kernel(cfg, offsets),
        out_shape=(jax.ShapeDtypeStruct((S * B, 2 * F), jnp.float32),
                   jax.ShapeDtypeStruct((L * B, H), jnp.float32)),
    )(q_flat, h0_flat, wslab)

    mulv = mulv.reshape(S, B, 2 * F)
    return mulv[..., :F], mulv[..., F:], hout.reshape(L, B, H)


# ---------------------------------------------------------------------------
# Pure-JAX reference (mirrors the PyTorch forward) for a correctness check.
# ---------------------------------------------------------------------------
def ref_forward(query, h0, weights, cfg):
    Q, D, H, L, F = (cfg["query_size"], cfg["fc_dim"], cfg["hidden"],
                     cfg["gru_layers"], cfg["num_features"])
    S, B = query.shape[0], query.shape[1]
    it = iter(weights)
    nx = lambda: next(it)

    W_emb, b_emb = nx(), nx()
    W_c, b_c = nx(), nx()
    W_rest, b_r = nx(), nx()
    gru = [(nx(), nx(), nx(), nx()) for _ in range(L)]
    fcs = [(nx(), nx()) for _ in cfg["fc_layers"]]
    W_mu, b_mu = nx(), nx()
    W_lv, b_lv = nx(), nx()

    leaky = lambda x: jnp.where(x > 0, x, 0.01 * x)

    emb = query @ W_emb + b_emb                              # [S,B,Q,D]
    corr = emb[:, :, 0, :]
    rest = emb[:, :, 1:, :].reshape(S, B, (Q - 1) * D)
    c = leaky(corr @ W_c + b_c)
    r = leaky(rest @ W_rest + b_r)
    x = jnp.concatenate([c, r], axis=-1)                     # [S,B,128]

    h = [h0[l] for l in range(L)]
    outs = []
    for t in range(S):
        inp = x[t]
        for l in range(L):
            W_ih, b_ih, W_hh, b_hh = gru[l]
            gi = inp @ W_ih + b_ih
            gh = h[l] @ W_hh + b_hh
            r_g = jax.nn.sigmoid(gi[:, :H] + gh[:, :H])
            z_g = jax.nn.sigmoid(gi[:, H:2 * H] + gh[:, H:2 * H])
            n_g = jnp.tanh(gi[:, 2 * H:] + r_g * gh[:, 2 * H:])
            h[l] = (1.0 - z_g) * n_g + z_g * h[l]
            inp = h[l]
        outs.append(inp)
    out = jnp.stack(outs, axis=0)
    for Wf, bf in fcs:
        out = leaky(out @ Wf + bf)
    mu = out @ W_mu + b_mu
    lv = out @ W_lv + b_lv
    return mu, lv, jnp.stack(h, axis=0)


if __name__ == "__main__":
    cfg = dict(
        seq=8,            # sequence length fed to the GRU
        batch=2,
        query_size=4,     # args.query_size
        num_features=8,   # args.num_features
        fc_dim=16,        # args.fc_dim
        hidden=32,        # args.gru_hidden_size
        gru_layers=2,     # args.gru_hidden_layers
        fc_layers=(32,),  # args.fc_layers
    )
    key = jax.random.PRNGKey(0)
    kq, kp = jax.random.split(key, 2)
    query = jax.random.normal(
        kq, (cfg["seq"], cfg["batch"], cfg["query_size"], cfg["num_features"]),
        dtype=jnp.float32)
    # init_hidden(): zeros of shape [gru_layers, batch, hidden]
    h0 = jnp.zeros((cfg["gru_layers"], cfg["batch"], cfg["hidden"]), jnp.float32)
    weights = init_params(kp, cfg)

    fwd = jax.jit(lambda q, h: encoder_forward(q, h, weights, cfg))
    mu, logvar, h_final = fwd(query, h0)
    jax.block_until_ready((mu, logvar, h_final))

    mu_r, lv_r, h_r = ref_forward(query, h0, weights, cfg)
    assert mu.shape == (cfg["seq"], cfg["batch"], cfg["num_features"])
    assert logvar.shape == (cfg["seq"], cfg["batch"], cfg["num_features"])
    assert h_final.shape == (cfg["gru_layers"], cfg["batch"], cfg["hidden"])
    assert jnp.allclose(mu, mu_r, atol=1e-2, rtol=1e-2)
    assert jnp.allclose(logvar, lv_r, atol=1e-2, rtol=1e-2)
    assert jnp.allclose(h_final, h_r, atol=1e-2, rtol=1e-2)
    print("KERNEL_OK")
</pallas_src>

<mosaic_0001>
module attributes {stable_mosaic.version = 11 : i64} {
  func.func @kernel(%arg0: memref<16x32xf32, #tpu.memory_space<vmem>>, %arg1: memref<4x32xf32, #tpu.memory_space<vmem>>, %arg2: memref<448x128xf32, #tpu.memory_space<vmem>>, %arg3: memref<16x16xf32, #tpu.memory_space<vmem>>, %arg4: memref<4x32xf32, #tpu.memory_space<vmem>>) attributes {dimension_semantics = [], scalar_prefetch = 0 : i64, scratch_operands = 0 : i64, tpu.core_type = #tpu.core_type<tc>} {
    %c0 = arith.constant 0 : index
    %c0_0 = arith.constant 0 : index
    %0 = vector.load %arg0[%c0, %c0_0] : memref<16x32xf32, #tpu.memory_space<vmem>>, vector<16x32xf32>
    %1 = vector.extract_strided_slice %0 {offsets = [0, 0], sizes = [16, 8], strides = [1, 1]} : vector<16x32xf32> to vector<16x8xf32>
    %2 = vector.extract_strided_slice %0 {offsets = [0, 8], sizes = [16, 24], strides = [1, 1]} : vector<16x32xf32> to vector<16x24xf32>
    %c0_1 = arith.constant 0 : index
    %c0_2 = arith.constant 0 : index
    %3 = vector.load %arg2[%c0_1, %c0_2] : memref<448x128xf32, #tpu.memory_space<vmem>>, vector<8x16xf32>
    %cst = arith.constant dense<0.000000e+00> : vector<16x16xf32>
    %4 = tpu.matmul %1, %3, %cst {dimension_numbers = #tpu.dot_dimension_numbers<[1], [0], [0], [1], [0, 0, 1, 1], [], []>} : vector<16x8xf32>, vector<8x16xf32>, vector<16x16xf32> -> vector<16x16xf32>
    %c8 = arith.constant 8 : index
    %c0_3 = arith.constant 0 : index
    %5 = vector.load %arg2[%c8, %c0_3] : memref<448x128xf32, #tpu.memory_space<vmem>>, vector<1x16xf32>
    %6 = vector.broadcast %5 : vector<1x16xf32> to vector<16x16xf32>
    %7 = arith.addf %4, %6 : vector<16x16xf32>
    %c48 = arith.constant 48 : index
    %c0_4 = arith.constant 0 : index
    %8 = vector.load %arg2[%c48, %c0_4] : memref<448x128xf32, #tpu.memory_space<vmem>>, vector<16x64xf32>
    %cst_5 = arith.constant dense<0.000000e+00> : vector<16x64xf32>
    %9 = tpu.matmul %7, %8, %cst_5 {dimension_numbers = #tpu.dot_dimension_numbers<[1], [0], [0], [1], [0, 0, 1, 1], [], []>} : vector<16x16xf32>, vector<16x64xf32>, vector<16x64xf32> -> vector<16x64xf32>
    %c64 = arith.constant 64 : index
    %c0_6 = arith.constant 0 : index
    %10 = vector.load %arg2[%c64, %c0_6] : memref<448x128xf32, #tpu.memory_space<vmem>>, vector<1x64xf32>
    %11 = vector.broadcast %10 : vector<1x64xf32> to vector<16x64xf32>
    %12 = arith.addf %9, %11 : vector<16x64xf32>
    %cst_7 = arith.constant 0.000000e+00 : f32
    %13 = vector.broadcast %cst_7 : f32 to vector<16x64xf32>
    %14 = arith.cmpf ogt, %12, %13 : vector<16x64xf32>
    %cst_8 = arith.constant 0.00999999977 : f32
    %15 = vector.broadcast %cst_8 : f32 to vector<16x64xf32>
    %16 = arith.mulf %15, %12 : vector<16x64xf32>
    %17 = arith.select %14, %12, %16 : vector<16x64xi1>, vector<16x64xf32>
    %c16 = arith.constant 16 : index
    %c0_9 = arith.constant 0 : index
    %18 = vector.load %arg2[%c16, %c0_9] : memref<448x128xf32, #tpu.memory_space<vmem>>, vector<24x48xf32>
    %cst_10 = arith.constant dense<0.000000e+00> : vector<16x48xf32>
    %19 = tpu.matmul %2, %18, %cst_10 {dimension_numbers = #tpu.dot_dimension_numbers<[1], [0], [0], [1], [0, 0, 1, 1], [], []>} : vector<16x24xf32>, vector<24x48xf32>, vector<16x48xf32> -> vector<16x48xf32>
    %c40 = arith.constant 40 : index
    %c0_11 = arith.constant 0 : index
    %20 = vector.load %arg2[%c40, %c0_11] : memref<448x128xf32, #tpu.memory_space<vmem>>, vector<1x48xf32>
    %21 = vector.broadcast %20 : vector<1x48xf32> to vector<16x48xf32>
    %22 = arith.addf %19, %21 : vector<16x48xf32>
    %c72 = arith.constant 72 : index
    %c0_12 = arith.constant 0 : index
    %23 = vector.load %arg2[%c72, %c0_12] : memref<448x128xf32, #tpu.memory_space<vmem>>, vector<48x64xf32>
    %cst_13 = arith.constant dense<0.000000e+00> : vector<16x64xf32>
    %24 = tpu.matmul %22, %23, %cst_13 {dimension_numbers = #tpu.dot_dimension_numbers<[1], [0], [0], [1], [0, 0, 1, 1], [], []>} : vector<16x48xf32>, vector<48x64xf32>, vector<16x64xf32> -> vector<16x64xf32>
    %c120 = arith.constant 120 : index
    %c0_14 = arith.constant 0 : index
    %25 = vector.load %arg2[%c120, %c0_14] : memref<448x128xf32, #tpu.memory_space<vmem>>, vector<1x64xf32>
    %26 = vector.broadcast %25 : vector<1x64xf32> to vector<16x64xf32>
    %27 = arith.addf %24, %26 : vector<16x64xf32>
    %cst_15 = arith.constant 0.000000e+00 : f32
    %28 = vector.broadcast %cst_15 : f32 to vector<16x64xf32>
    %29 = arith.cmpf ogt, %27, %28 : vector<16x64xf32>
    %cst_16 = arith.constant 0.00999999977 : f32
    %30 = vector.broadcast %cst_16 : f32 to vector<16x64xf32>
    %31 = arith.mulf %30, %27 : vector<16x64xf32>
    %32 = arith.select %29, %27, %31 : vector<16x64xi1>, vector<16x64xf32>
    %c128 = arith.constant 128 : index
    %c0_17 = arith.constant 0 : index
    %33 = vector.load %arg2[%c128, %c0_17] : memref<448x128xf32, #tpu.memory_space<vmem>>, vector<64x128xf32>
    %cst_18 = arith.constant dense<0.000000e+00> : vector<16x128xf32>
    %34 = tpu.matmul %17, %33, %cst_18 {dimension_numbers = #tpu.dot_dimension_numbers<[1], [0], [0], [1], [0, 0, 1, 1], [], []>} : vector<16x64xf32>, vector<64x128xf32>, vector<16x128xf32> -> vector<16x128xf32>
    %c192 = arith.constant 192 : index
    %c0_19 = arith.constant 0 : index
    %35 = vector.load %arg2[%c192, %c0_19] : memref<448x128xf32, #tpu.memory_space<vmem>>, vector<64x128xf32>
    %cst_20 = arith.constant dense<0.000000e+00> : vector<16x128xf32>
    %36 = tpu.matmul %32, %35, %cst_20 {dimension_numbers = #tpu.dot_dimension_numbers<[1], [0], [0], [1], [0, 0, 1, 1], [], []>} : vector<16x64xf32>, vector<64x128xf32>, vector<16x128xf32> -> vector<16x128xf32>
    %37 = arith.addf %34, %36 : vector<16x128xf32>
    %c288 = arith.constant 288 : index
    %c0_21 = arith.constant 0 : index
    %38 = vector.load %arg2[%c288, %c0_21] : memref<448x128xf32, #tpu.memory_space<vmem>>, vector<1x128xf32>
    %39 = vector.broadcast %38 : vector<1x128xf32> to vector<16x128xf32>
    %40 = arith.addf %37, %39 : vector<16x128xf32>
    %c256 = arith.constant 256 : index
    %c0_22 = arith.constant 0 : index
    %41 = vector.load %arg2[%c256, %c0_22] : memref<448x128xf32, #tpu.memory_space<vmem>>, vector<32x128xf32>
    %c296 = arith.constant 296 : index
    %c0_23 = arith.constant 0 : index
    %42 = vector.load %arg2[%c296, %c0_23] : memref<448x128xf32, #tpu.memory_space<vmem>>, vector<64x128xf32>
    %c360 = arith.constant 360 : index
    %c0_24 = arith.constant 0 : index
    %43 = vector.load %arg2[%c360, %c0_24] : memref<448x128xf32, #tpu.memory_space<vmem>>, vector<1x128xf32>
    %44 = vector.shape_cast %43 : vector<1x128xf32> to vector<1x128xf32>
    %45 = vector.broadcast %44 : vector<1x128xf32> to vector<2x128xf32>
    %c0_25 = arith.constant 0 : index
    %c0_26 = arith.constant 0 : index
    %46 = vector.load %arg1[%c0_25, %c0_26] : memref<4x32xf32, #tpu.memory_space<vmem>>, vector<2x32xf32>
    %c2 = arith.constant 2 : index
    %c0_27 = arith.constant 0 : index
    %47 = vector.load %arg1[%c2, %c0_27] : memref<4x32xf32, #tpu.memory_space<vmem>>, vector<2x32xf32>
    %48 = vector.extract_strided_slice %40 {offsets = [0, 0], sizes = [2, 128], strides = [1, 1]} : vector<16x128xf32> to vector<2x128xf32>
    %cst_28 = arith.constant dense<0.000000e+00> : vector<2x128xf32>
    %49 = tpu.matmul %46, %41, %cst_28 {dimension_numbers = #tpu.dot_dimension_numbers<[1], [0], [0], [1], [0, 0, 1, 1], [], []>} : vector<2x32xf32>, vector<32x128xf32>, vector<2x128xf32> -> vector<2x128xf32>
    %50 = arith.addf %48, %49 : vector<2x128xf32>
    %51 = vector.extract_strided_slice %50 {offsets = [0, 0], sizes = [2, 64], strides = [1, 1]} : vector<2x128xf32> to vector<2x64xf32>
    %52 = arith.negf %51 : vector<2x64xf32>
    %53 = math.exp %52 : vector<2x64xf32>
    %cst_29 = arith.constant 1.000000e+00 : f32
    %54 = vector.broadcast %cst_29 : f32 to vector<2x64xf32>
    %55 = arith.addf %54, %53 : vector<2x64xf32>
    %56 = arith.divf %54, %55 : vector<2x64xf32>
    %57 = vector.extract_strided_slice %56 {offsets = [0, 0], sizes = [2, 32], strides = [1, 1]} : vector<2x64xf32> to vector<2x32xf32>
    %58 = vector.extract_strided_slice %56 {offsets = [0, 32], sizes = [2, 32], strides = [1, 1]} : vector<2x64xf32> to vector<2x32xf32>
    %59 = vector.extract_strided_slice %50 {offsets = [0, 64], sizes = [2, 32], strides = [1, 1]} : vector<2x128xf32> to vector<2x32xf32>
    %60 = vector.extract_strided_slice %50 {offsets = [0, 96], sizes = [2, 32], strides = [1, 1]} : vector<2x128xf32> to vector<2x32xf32>
    %61 = arith.mulf %57, %60 : vector<2x32xf32>
    %62 = arith.addf %59, %61 : vector<2x32xf32>
    %63 = math.tanh %62 : vector<2x32xf32>
    %cst_30 = arith.constant 1.000000e+00 : f32
    %64 = vector.broadcast %cst_30 : f32 to vector<2x32xf32>
    %65 = arith.subf %64, %58 : vector<2x32xf32>
    %66 = arith.mulf %65, %63 : vector<2x32xf32>
    %67 = arith.mulf %58, %46 : vector<2x32xf32>
    %68 = arith.addf %66, %67 : vector<2x32xf32>
    %69 = vector.extract_strided_slice %40 {offsets = [2, 0], sizes = [2, 128], strides = [1, 1]} : vector<16x128xf32> to vector<2x128xf32>
    %cst_31 = arith.constant dense<0.000000e+00> : vector<2x128xf32>
    %70 = tpu.matmul %68, %41, %cst_31 {dimension_numbers = #tpu.dot_dimension_numbers<[1], [0], [0], [1], [0, 0, 1, 1], [], []>} : vector<2x32xf32>, vector<32x128xf32>, vector<2x128xf32> -> vector<2x128xf32>
    %71 = arith.addf %69, %70 : vector<2x128xf32>
    %72 = vector.extract_strided_slice %71 {offsets = [0, 0], sizes = [2, 64], strides = [1, 1]} : vector<2x128xf32> to vector<2x64xf32>
    %73 = arith.negf %72 : vector<2x64xf32>
    %74 = math.exp %73 : vector<2x64xf32>
    %cst_32 = arith.constant 1.000000e+00 : f32
    %75 = vector.broadcast %cst_32 : f32 to vector<2x64xf32>
    %76 = arith.addf %75, %74 : vector<2x64xf32>
    %77 = arith.divf %75, %76 : vector<2x64xf32>
    %78 = vector.extract_strided_slice %77 {offsets = [0, 0], sizes = [2, 32], strides = [1, 1]} : vector<2x64xf32> to vector<2x32xf32>
    %79 = vector.extract_strided_slice %77 {offsets = [0, 32], sizes = [2, 32], strides = [1, 1]} : vector<2x64xf32> to vector<2x32xf32>
    %80 = vector.extract_strided_slice %71 {offsets = [0, 64], sizes = [2, 32], strides = [1, 1]} : vector<2x128xf32> to vector<2x32xf32>
    %81 = vector.extract_strided_slice %71 {offsets = [0, 96], sizes = [2, 32], strides = [1, 1]} : vector<2x128xf32> to vector<2x32xf32>
    %82 = arith.mulf %78, %81 : vector<2x32xf32>
    %83 = arith.addf %80, %82 : vector<2x32xf32>
    %84 = math.tanh %83 : vector<2x32xf32>
    %cst_33 = arith.constant 1.000000e+00 : f32
    %85 = vector.broadcast %cst_33 : f32 to vector<2x32xf32>
    %86 = arith.subf %85, %79 : vector<2x32xf32>
    %87 = arith.mulf %86, %84 : vector<2x32xf32>
    %88 = arith.mulf %79, %68 : vector<2x32xf32>
    %89 = arith.addf %87, %88 : vector<2x32xf32>
    %90 = tpu.concatenate %68, %47 in 1 : vector<2x32xf32>, vector<2x32xf32> -> vector<2x64xf32>
    %cst_34 = arith.constant dense<0.000000e+00> : vector<2x128xf32>
    %91 = tpu.matmul %90, %42, %cst_34 {dimension_numbers = #tpu.dot_dimension_numbers<[1], [0], [0], [1], [0, 0, 1, 1], [], []>} : vector<2x64xf32>, vector<64x128xf32>, vector<2x128xf32> -> vector<2x128xf32>
    %92 = arith.addf %91, %45 : vector<2x128xf32>
    %93 = vector.extract_strided_slice %92 {offsets = [0, 0], sizes = [2, 64], strides = [1, 1]} : vector<2x128xf32> to vector<2x64xf32>
    %94 = arith.negf %93 : vector<2x64xf32>
    %95 = math.exp %94 : vector<2x64xf32>
    %cst_35 = arith.constant 1.000000e+00 : f32
    %96 = vector.broadcast %cst_35 : f32 to vector<2x64xf32>
    %97 = arith.addf %96, %95 : vector<2x64xf32>
    %98 = arith.divf %96, %97 : vector<2x64xf32>
    %99 = vector.extract_strided_slice %98 {offsets = [0, 0], sizes = [2, 32], strides = [1, 1]} : vector<2x64xf32> to vector<2x32xf32>
    %100 = vector.extract_strided_slice %98 {offsets = [0, 32], sizes = [2, 32], strides = [1, 1]} : vector<2x64xf32> to vector<2x32xf32>
    %101 = vector.extract_strided_slice %92 {offsets = [0, 64], sizes = [2, 32], strides = [1, 1]} : vector<2x128xf32> to vector<2x32xf32>
    %102 = vector.extract_strided_slice %92 {offsets = [0, 96], sizes = [2, 32], strides = [1, 1]} : vector<2x128xf32> to vector<2x32xf32>
    %103 = arith.mulf %99, %102 : vector<2x32xf32>
    %104 = arith.addf %101, %103 : vector<2x32xf32>
    %105 = math.tanh %104 : vector<2x32xf32>
    %cst_36 = arith.constant 1.000000e+00 : f32
    %106 = vector.broadcast %cst_36 : f32 to vector<2x32xf32>
    %107 = arith.subf %106, %100 : vector<2x32xf32>
    %108 = arith.mulf %107, %105 : vector<2x32xf32>
    %109 = arith.mulf %100, %47 : vector<2x32xf32>
    %110 = arith.addf %108, %109 : vector<2x32xf32>
    %111 = vector.extract_strided_slice %40 {offsets = [4, 0], sizes = [2, 128], strides = [1, 1]} : vector<16x128xf32> to vector<2x128xf32>
    %cst_37 = arith.constant dense<0.000000e+00> : vector<2x128xf32>
    %112 = tpu.matmul %89, %41, %cst_37 {dimension_numbers = #tpu.dot_dimension_numbers<[1], [0], [0], [1], [0, 0, 1, 1], [], []>} : vector<2x32xf32>, vector<32x128xf32>, vector<2x128xf32> -> vector<2x128xf32>
    %113 = arith.addf %111, %112 : vector<2x128xf32>
    %114 = vector.extract_strided_slice %113 {offsets = [0, 0], sizes = [2, 64], strides = [1, 1]} : vector<2x128xf32> to vector<2x64xf32>
    %115 = arith.negf %114 : vector<2x64xf32>
    %116 = math.exp %115 : vector<2x64xf32>
    %cst_38 = arith.constant 1.000000e+00 : f32
    %117 = vector.broadcast %cst_38 : f32 to vector<2x64xf32>
    %118 = arith.addf %117, %116 : vector<2x64xf32>
    %119 = arith.divf %117, %118 : vector<2x64xf32>
    %120 = vector.extract_strided_slice %119 {offsets = [0, 0], sizes = [2, 32], strides = [1, 1]} : vector<2x64xf32> to vector<2x32xf32>
    %121 = vector.extract_strided_slice %119 {offsets = [0, 32], sizes = [2, 32], strides = [1, 1]} : vector<2x64xf32> to vector<2x32xf32>
    %122 = vector.extract_strided_slice %113 {offsets = [0, 64], sizes = [2, 32], strides = [1, 1]} : vector<2x128xf32> to vector<2x32xf32>
    %123 = vector.extract_strided_slice %113 {offsets = [0, 96], sizes = [2, 32], strides = [1, 1]} : vector<2x128xf32> to vector<2x32xf32>
    %124 = arith.mulf %120, %123 : vector<2x32xf32>
    %125 = arith.addf %122, %124 : vector<2x32xf32>
    %126 = math.tanh %125 : vector<2x32xf32>
    %cst_39 = arith.constant 1.000000e+00 : f32
    %127 = vector.broadcast %cst_39 : f32 to vector<2x32xf32>
    %128 = arith.subf %127, %121 : vector<2x32xf32>
    %129 = arith.mulf %128, %126 : vector<2x32xf32>
    %130 = arith.mulf %121, %89 : vector<2x32xf32>
    %131 = arith.addf %129, %130 : vector<2x32xf32>
    %132 = tpu.concatenate %89, %110 in 1 : vector<2x32xf32>, vector<2x32xf32> -> vector<2x64xf32>
    %cst_40 = arith.constant dense<0.000000e+00> : vector<2x128xf32>
    %133 = tpu.matmul %132, %42, %cst_40 {dimension_numbers = #tpu.dot_dimension_numbers<[1], [0], [0], [1], [0, 0, 1, 1], [], []>} : vector<2x64xf32>, vector<64x128xf32>, vector<2x128xf32> -> vector<2x128xf32>
    %134 = arith.addf %133, %45 : vector<2x128xf32>
    %135 = vector.extract_strided_slice %134 {offsets = [0, 0], sizes = [2, 64], strides = [1, 1]} : vector<2x128xf32> to vector<2x64xf32>
    %136 = arith.negf %135 : vector<2x64xf32>
    %137 = math.exp %136 : vector<2x64xf32>
    %cst_41 = arith.constant 1.000000e+00 : f32
    %138 = vector.broadcast %cst_41 : f32 to vector<2x64xf32>
    %139 = arith.addf %138, %137 : vector<2x64xf32>
    %140 = arith.divf %138, %139 : vector<2x64xf32>
    %141 = vector.extract_strided_slice %140 {offsets = [0, 0], sizes = [2, 32], strides = [1, 1]} : vector<2x64xf32> to vector<2x32xf32>
    %142 = vector.extract_strided_slice %140 {offsets = [0, 32], sizes = [2, 32], strides = [1, 1]} : vector<2x64xf32> to vector<2x32xf32>
    %143 = vector.extract_strided_slice %134 {offsets = [0, 64], sizes = [2, 32], strides = [1, 1]} : vector<2x128xf32> to vector<2x32xf32>
    %144 = vector.extract_strided_slice %134 {offsets = [0, 96], sizes = [2, 32], strides = [1, 1]} : vector<2x128xf32> to vector<2x32xf32>
    %145 = arith.mulf %141, %144 : vector<2x32xf32>
    %146 = arith.addf %143, %145 : vector<2x32xf32>
    %147 = math.tanh %146 : vector<2x32xf32>
    %cst_42 = arith.constant 1.000000e+00 : f32
    %148 = vector.broadcast %cst_42 : f32 to vector<2x32xf32>
    %149 = arith.subf %148, %142 : vector<2x32xf32>
    %150 = arith.mulf %149, %147 : vector<2x32xf32>
    %151 = arith.mulf %142, %110 : vector<2x32xf32>
    %152 = arith.addf %150, %151 : vector<2x32xf32>
    %153 = vector.extract_strided_slice %40 {offsets = [6, 0], sizes = [2, 128], strides = [1, 1]} : vector<16x128xf32> to vector<2x128xf32>
    %cst_43 = arith.constant dense<0.000000e+00> : vector<2x128xf32>
    %154 = tpu.matmul %131, %41, %cst_43 {dimension_numbers = #tpu.dot_dimension_numbers<[1], [0], [0], [1], [0, 0, 1, 1], [], []>} : vector<2x32xf32>, vector<32x128xf32>, vector<2x128xf32> -> vector<2x128xf32>
    %155 = arith.addf %153, %154 : vector<2x128xf32>
    %156 = vector.extract_strided_slice %155 {offsets = [0, 0], sizes = [2, 64], strides = [1, 1]} : vector<2x128xf32> to vector<2x64xf32>
    %157 = arith.negf %156 : vector<2x64xf32>
    %158 = math.exp %157 : vector<2x64xf32>
    %cst_44 = arith.constant 1.000000e+00 : f32
    %159 = vector.broadcast %cst_44 : f32 to vector<2x64xf32>
    %160 = arith.addf %159, %158 : vector<2x64xf32>
    %161 = arith.divf %159, %160 : vector<2x64xf32>
    %162 = vector.extract_strided_slice %161 {offsets = [0, 0], sizes = [2, 32], strides = [1, 1]} : vector<2x64xf32> to vector<2x32xf32>
    %163 = vector.extract_strided_slice %161 {offsets = [0, 32], sizes = [2, 32], strides = [1, 1]} : vector<2x64xf32> to vector<2x32xf32>
    %164 = vector.extract_strided_slice %155 {offsets = [0, 64], sizes = [2, 32], strides = [1, 1]} : vector<2x128xf32> to vector<2x32xf32>
    %165 = vector.extract_strided_slice %155 {offsets = [0, 96], sizes = [2, 32], strides = [1, 1]} : vector<2x128xf32> to vector<2x32xf32>
    %166 = arith.mulf %162, %165 : vector<2x32xf32>
    %167 = arith.addf %164, %166 : vector<2x32xf32>
    %168 = math.tanh %167 : vector<2x32xf32>
    %cst_45 = arith.constant 1.000000e+00 : f32
    %169 = vector.broadcast %cst_45 : f32 to vector<2x32xf32>
    %170 = arith.subf %169, %163 : vector<2x32xf32>
    %171 = arith.mulf %170, %168 : vector<2x32xf32>
    %172 = arith.mulf %163, %131 : vector<2x32xf32>
    %173 = arith.addf %171, %172 : vector<2x32xf32>
    %174 = tpu.concatenate %131, %152 in 1 : vector<2x32xf32>, vector<2x32xf32> -> vector<2x64xf32>
    %cst_46 = arith.constant dense<0.000000e+00> : vector<2x128xf32>
    %175 = tpu.matmul %174, %42, %cst_46 {dimension_numbers = #tpu.dot_dimension_numbers<[1], [0], [0], [1], [0, 0, 1, 1], [], []>} : vector<2x64xf32>, vector<64x128xf32>, vector<2x128xf32> -> vector<2x128xf32>
    %176 = arith.addf %175, %45 : vector<2x128xf32>
    %177 = vector.extract_strided_slice %176 {offsets = [0, 0], sizes = [2, 64], strides = [1, 1]} : vector<2x128xf32> to vector<2x64xf32>
    %178 = arith.negf %177 : vector<2x64xf32>
    %179 = math.exp %178 : vector<2x64xf32>
    %cst_47 = arith.constant 1.000000e+00 : f32
    %180 = vector.broadcast %cst_47 : f32 to vector<2x64xf32>
    %181 = arith.addf %180, %179 : vector<2x64xf32>
    %182 = arith.divf %180, %181 : vector<2x64xf32>
    %183 = vector.extract_strided_slice %182 {offsets = [0, 0], sizes = [2, 32], strides = [1, 1]} : vector<2x64xf32> to vector<2x32xf32>
    %184 = vector.extract_strided_slice %182 {offsets = [0, 32], sizes = [2, 32], strides = [1, 1]} : vector<2x64xf32> to vector<2x32xf32>
    %185 = vector.extract_strided_slice %176 {offsets = [0, 64], sizes = [2, 32], strides = [1, 1]} : vector<2x128xf32> to vector<2x32xf32>
    %186 = vector.extract_strided_slice %176 {offsets = [0, 96], sizes = [2, 32], strides = [1, 1]} : vector<2x128xf32> to vector<2x32xf32>
    %187 = arith.mulf %183, %186 : vector<2x32xf32>
    %188 = arith.addf %185, %187 : vector<2x32xf32>
    %189 = math.tanh %188 : vector<2x32xf32>
    %cst_48 = arith.constant 1.000000e+00 : f32
    %190 = vector.broadcast %cst_48 : f32 to vector<2x32xf32>
    %191 = arith.subf %190, %184 : vector<2x32xf32>
    %192 = arith.mulf %191, %189 : vector<2x32xf32>
    %193 = arith.mulf %184, %152 : vector<2x32xf32>
    %194 = arith.addf %192, %193 : vector<2x32xf32>
    %195 = vector.extract_strided_slice %40 {offsets = [8, 0], sizes = [2, 128], strides = [1, 1]} : vector<16x128xf32> to vector<2x128xf32>
    %cst_49 = arith.constant dense<0.000000e+00> : vector<2x128xf32>
    %196 = tpu.matmul %173, %41, %cst_49 {dimension_numbers = #tpu.dot_dimension_numbers<[1], [0], [0], [1], [0, 0, 1, 1], [], []>} : vector<2x32xf32>, vector<32x128xf32>, vector<2x128xf32> -> vector<2x128xf32>
    %197 = arith.addf %195, %196 : vector<2x128xf32>
    %198 = vector.extract_strided_slice %197 {offsets = [0, 0], sizes = [2, 64], strides = [1, 1]} : vector<2x128xf32> to vector<2x64xf32>
    %199 = arith.negf %198 : vector<2x64xf32>
    %200 = math.exp %199 : vector<2x64xf32>
    %cst_50 = arith.constant 1.000000e+00 : f32
    %201 = vector.broadcast %cst_50 : f32 to vector<2x64xf32>
    %202 = arith.addf %201, %200 : vector<2x64xf32>
    %203 = arith.divf %201, %202 : vector<2x64xf32>
    %204 = vector.extract_strided_slice %203 {offsets = [0, 0], sizes = [2, 32], strides = [1, 1]} : vector<2x64xf32> to vector<2x32xf32>
    %205 = vector.extract_strided_slice %203 {offsets = [0, 32], sizes = [2, 32], strides = [1, 1]} : vector<2x64xf32> to vector<2x32xf32>
    %206 = vector.extract_strided_slice %197 {offsets = [0, 64], sizes = [2, 32], strides = [1, 1]} : vector<2x128xf32> to vector<2x32xf32>
    %207 = vector.extract_strided_slice %197 {offsets = [0, 96], sizes = [2, 32], strides = [1, 1]} : vector<2x128xf32> to vector<2x32xf32>
    %208 = arith.mulf %204, %207 : vector<2x32xf32>
    %209 = arith.addf %206, %208 : vector<2x32xf32>
    %210 = math.tanh %209 : vector<2x32xf32>
    %cst_51 = arith.constant 1.000000e+00 : f32
    %211 = vector.broadcast %cst_51 : f32 to vector<2x32xf32>
    %212 = arith.subf %211, %205 : vector<2x32xf32>
    %213 = arith.mulf %212, %210 : vector<2x32xf32>
    %214 = arith.mulf %205, %173 : vector<2x32xf32>
    %215 = arith.addf %213, %214 : vector<2x32xf32>
    %216 = tpu.concatenate %173, %194 in 1 : vector<2x32xf32>, vector<2x32xf32> -> vector<2x64xf32>
    %cst_52 = arith.constant dense<0.000000e+00> : vector<2x128xf32>
    %217 = tpu.matmul %216, %42, %cst_52 {dimension_numbers = #tpu.dot_dimension_numbers<[1], [0], [0], [1], [0, 0, 1, 1], [], []>} : vector<2x64xf32>, vector<64x128xf32>, vector<2x128xf32> -> vector<2x128xf32>
    %218 = arith.addf %217, %45 : vector<2x128xf32>
    %219 = vector.extract_strided_slice %218 {offsets = [0, 0], sizes = [2, 64], strides = [1, 1]} : vector<2x128xf32> to vector<2x64xf32>
    %220 = arith.negf %219 : vector<2x64xf32>
    %221 = math.exp %220 : vector<2x64xf32>
    %cst_53 = arith.constant 1.000000e+00 : f32
    %222 = vector.broadcast %cst_53 : f32 to vector<2x64xf32>
    %223 = arith.addf %222, %221 : vector<2x64xf32>
    %224 = arith.divf %222, %223 : vector<2x64xf32>
    %225 = vector.extract_strided_slice %224 {offsets = [0, 0], sizes = [2, 32], strides = [1, 1]} : vector<2x64xf32> to vector<2x32xf32>
    %226 = vector.extract_strided_slice %224 {offsets = [0, 32], sizes = [2, 32], strides = [1, 1]} : vector<2x64xf32> to vector<2x32xf32>
    %227 = vector.extract_strided_slice %218 {offsets = [0, 64], sizes = [2, 32], strides = [1, 1]} : vector<2x128xf32> to vector<2x32xf32>
    %228 = vector.extract_strided_slice %218 {offsets = [0, 96], sizes = [2, 32], strides = [1, 1]} : vector<2x128xf32> to vector<2x32xf32>
    %229 = arith.mulf %225, %228 : vector<2x32xf32>
    %230 = arith.addf %227, %229 : vector<2x32xf32>
    %231 = math.tanh %230 : vector<2x32xf32>
    %cst_54 = arith.constant 1.000000e+00 : f32
    %232 = vector.broadcast %cst_54 : f32 to vector<2x32xf32>
    %233 = arith.subf %232, %226 : vector<2x32xf32>
    %234 = arith.mulf %233, %231 : vector<2x32xf32>
    %235 = arith.mulf %226, %194 : vector<2x32xf32>
    %236 = arith.addf %234, %235 : vector<2x32xf32>
    %237 = vector.extract_strided_slice %40 {offsets = [10, 0], sizes = [2, 128], strides = [1, 1]} : vector<16x128xf32> to vector<2x128xf32>
    %cst_55 = arith.constant dense<0.000000e+00> : vector<2x128xf32>
    %238 = tpu.matmul %215, %41, %cst_55 {dimension_numbers = #tpu.dot_dimension_numbers<[1], [0], [0], [1], [0, 0, 1, 1], [], []>} : vector<2x32xf32>, vector<32x128xf32>, vector<2x128xf32> -> vector<2x128xf32>
    %239 = arith.addf %237, %238 : vector<2x128xf32>
    %240 = vector.extract_strided_slice %239 {offsets = [0, 0], sizes = [2, 64], strides = [1, 1]} : vector<2x128xf32> to vector<2x64xf32>
    %241 = arith.negf %240 : vector<2x64xf32>
    %242 = math.exp %241 : vector<2x64xf32>
    %cst_56 = arith.constant 1.000000e+00 : f32
    %243 = vector.broadcast %cst_56 : f32 to vector<2x64xf32>
    %244 = arith.addf %243, %242 : vector<2x64xf32>
    %245 = arith.divf %243, %244 : vector<2x64xf32>
    %246 = vector.extract_strided_slice %245 {offsets = [0, 0], sizes = [2, 32], strides = [1, 1]} : vector<2x64xf32> to vector<2x32xf32>
    %247 = vector.extract_strided_slice %245 {offsets = [0, 32], sizes = [2, 32], strides = [1, 1]} : vector<2x64xf32> to vector<2x32xf32>
    %248 = vector.extract_strided_slice %239 {offsets = [0, 64], sizes = [2, 32], strides = [1, 1]} : vector<2x128xf32> to vector<2x32xf32>
    %249 = vector.extract_strided_slice %239 {offsets = [0, 96], sizes = [2, 32], strides = [1, 1]} : vector<2x128xf32> to vector<2x32xf32>
    %250 = arith.mulf %246, %249 : vector<2x32xf32>
    %251 = arith.addf %248, %250 : vector<2x32xf32>
    %252 = math.tanh %251 : vector<2x32xf32>
    %cst_57 = arith.constant 1.000000e+00 : f32
    %253 = vector.broadcast %cst_57 : f32 to vector<2x32xf32>
    %254 = arith.subf %253, %247 : vector<2x32xf32>
    %255 = arith.mulf %254, %252 : vector<2x32xf32>
    %256 = arith.mulf %247, %215 : vector<2x32xf32>
    %257 = arith.addf %255, %256 : vector<2x32xf32>
    %258 = tpu.concatenate %215, %236 in 1 : vector<2x32xf32>, vector<2x32xf32> -> vector<2x64xf32>
    %cst_58 = arith.constant dense<0.000000e+00> : vector<2x128xf32>
    %259 = tpu.matmul %258, %42, %cst_58 {dimension_numbers = #tpu.dot_dimension_numbers<[1], [0], [0], [1], [0, 0, 1, 1], [], []>} : vector<2x64xf32>, vector<64x128xf32>, vector<2x128xf32> -> vector<2x128xf32>
    %260 = arith.addf %259, %45 : vector<2x128xf32>
    %261 = vector.extract_strided_slice %260 {offsets = [0, 0], sizes = [2, 64], strides = [1, 1]} : vector<2x128xf32> to vector<2x64xf32>
    %262 = arith.negf %261 : vector<2x64xf32>
    %263 = math.exp %262 : vector<2x64xf32>
    %cst_59 = arith.constant 1.000000e+00 : f32
    %264 = vector.broadcast %cst_59 : f32 to vector<2x64xf32>
    %265 = arith.addf %264, %263 : vector<2x64xf32>
    %266 = arith.divf %264, %265 : vector<2x64xf32>
    %267 = vector.extract_strided_slice %266 {offsets = [0, 0], sizes = [2, 32], strides = [1, 1]} : vector<2x64xf32> to vector<2x32xf32>
    %268 = vector.extract_strided_slice %266 {offsets = [0, 32], sizes = [2, 32], strides = [1, 1]} : vector<2x64xf32> to vector<2x32xf32>
    %269 = vector.extract_strided_slice %260 {offsets = [0, 64], sizes = [2, 32], strides = [1, 1]} : vector<2x128xf32> to vector<2x32xf32>
    %270 = vector.extract_strided_slice %260 {offsets = [0, 96], sizes = [2, 32], strides = [1, 1]} : vector<2x128xf32> to vector<2x32xf32>
    %271 = arith.mulf %267, %270 : vector<2x32xf32>
    %272 = arith.addf %269, %271 : vector<2x32xf32>
    %273 = math.tanh %272 : vector<2x32xf32>
    %cst_60 = arith.constant 1.000000e+00 : f32
    %274 = vector.broadcast %cst_60 : f32 to vector<2x32xf32>
    %275 = arith.subf %274, %268 : vector<2x32xf32>
    %276 = arith.mulf %275, %273 : vector<2x32xf32>
    %277 = arith.mulf %268, %236 : vector<2x32xf32>
    %278 = arith.addf %276, %277 : vector<2x32xf32>
    %279 = vector.extract_strided_slice %40 {offsets = [12, 0], sizes = [2, 128], strides = [1, 1]} : vector<16x128xf32> to vector<2x128xf32>
    %cst_61 = arith.constant dense<0.000000e+00> : vector<2x128xf32>
    %280 = tpu.matmul %257, %41, %cst_61 {dimension_numbers = #tpu.dot_dimension_numbers<[1], [0], [0], [1], [0, 0, 1, 1], [], []>} : vector<2x32xf32>, vector<32x128xf32>, vector<2x128xf32> -> vector<2x128xf32>
    %281 = arith.addf %279, %280 : vector<2x128xf32>
    %282 = vector.extract_strided_slice %281 {offsets = [0, 0], sizes = [2, 64], strides = [1, 1]} : vector<2x128xf32> to vector<2x64xf32>
    %283 = arith.negf %282 : vector<2x64xf32>
    %284 = math.exp %283 : vector<2x64xf32>
    %cst_62 = arith.constant 1.000000e+00 : f32
    %285 = vector.broadcast %cst_62 : f32 to vector<2x64xf32>
    %286 = arith.addf %285, %284 : vector<2x64xf32>
    %287 = arith.divf %285, %286 : vector<2x64xf32>
    %288 = vector.extract_strided_slice %287 {offsets = [0, 0], sizes = [2, 32], strides = [1, 1]} : vector<2x64xf32> to vector<2x32xf32>
    %289 = vector.extract_strided_slice %287 {offsets = [0, 32], sizes = [2, 32], strides = [1, 1]} : vector<2x64xf32> to vector<2x32xf32>
    %290 = vector.extract_strided_slice %281 {offsets = [0, 64], sizes = [2, 32], strides = [1, 1]} : vector<2x128xf32> to vector<2x32xf32>
    %291 = vector.extract_strided_slice %281 {offsets = [0, 96], sizes = [2, 32], strides = [1, 1]} : vector<2x128xf32> to vector<2x32xf32>
    %292 = arith.mulf %288, %291 : vector<2x32xf32>
    %293 = arith.addf %290, %292 : vector<2x32xf32>
    %294 = math.tanh %293 : vector<2x32xf32>
    %cst_63 = arith.constant 1.000000e+00 : f32
    %295 = vector.broadcast %cst_63 : f32 to vector<2x32xf32>
    %296 = arith.subf %295, %289 : vector<2x32xf32>
    %297 = arith.mulf %296, %294 : vector<2x32xf32>
    %298 = arith.mulf %289, %257 : vector<2x32xf32>
    %299 = arith.addf %297, %298 : vector<2x32xf32>
    %300 = tpu.concatenate %257, %278 in 1 : vector<2x32xf32>, vector<2x32xf32> -> vector<2x64xf32>
    %cst_64 = arith.constant dense<0.000000e+00> : vector<2x128xf32>
    %301 = tpu.matmul %300, %42, %cst_64 {dimension_numbers = #tpu.dot_dimension_numbers<[1], [0], [0], [1], [0, 0, 1, 1], [], []>} : vector<2x64xf32>, vector<64x128xf32>, vector<2x128xf32> -> vector<2x128xf32>
    %302 = arith.addf %301, %45 : vector<2x128xf32>
    %303 = vector.extract_strided_slice %302 {offsets = [0, 0], sizes = [2, 64], strides = [1, 1]} : vector<2x128xf32> to vector<2x64xf32>
    %304 = arith.negf %303 : vector<2x64xf32>
    %305 = math.exp %304 : vector<2x64xf32>
    %cst_65 = arith.constant 1.000000e+00 : f32
    %306 = vector.broadcast %cst_65 : f32 to vector<2x64xf32>
    %307 = arith.addf %306, %305 : vector<2x64xf32>
    %308 = arith.divf %306, %307 : vector<2x64xf32>
    %309 = vector.extract_strided_slice %308 {offsets = [0, 0], sizes = [2, 32], strides = [1, 1]} : vector<2x64xf32> to vector<2x32xf32>
    %310 = vector.extract_strided_slice %308 {offsets = [0, 32], sizes = [2, 32], strides = [1, 1]} : vector<2x64xf32> to vector<2x32xf32>
    %311 = vector.extract_strided_slice %302 {offsets = [0, 64], sizes = [2, 32], strides = [1, 1]} : vector<2x128xf32> to vector<2x32xf32>
    %312 = vector.extract_strided_slice %302 {offsets = [0, 96], sizes = [2, 32], strides = [1, 1]} : vector<2x128xf32> to vector<2x32xf32>
    %313 = arith.mulf %309, %312 : vector<2x32xf32>
    %314 = arith.addf %311, %313 : vector<2x32xf32>
    %315 = math.tanh %314 : vector<2x32xf32>
    %cst_66 = arith.constant 1.000000e+00 : f32
    %316 = vector.broadcast %cst_66 : f32 to vector<2x32xf32>
    %317 = arith.subf %316, %310 : vector<2x32xf32>
    %318 = arith.mulf %317, %315 : vector<2x32xf32>
    %319 = arith.mulf %310, %278 : vector<2x32xf32>
    %320 = arith.addf %318, %319 : vector<2x32xf32>
    %321 = vector.extract_strided_slice %40 {offsets = [14, 0], sizes = [2, 128], strides = [1, 1]} : vector<16x128xf32> to vector<2x128xf32>
    %cst_67 = arith.constant dense<0.000000e+00> : vector<2x128xf32>
    %322 = tpu.matmul %299, %41, %cst_67 {dimension_numbers = #tpu.dot_dimension_numbers<[1], [0], [0], [1], [0, 0, 1, 1], [], []>} : vector<2x32xf32>, vector<32x128xf32>, vector<2x128xf32> -> vector<2x128xf32>
    %323 = arith.addf %321, %322 : vector<2x128xf32>
    %324 = vector.extract_strided_slice %323 {offsets = [0, 0], sizes = [2, 64], strides = [1, 1]} : vector<2x128xf32> to vector<2x64xf32>
    %325 = arith.negf %324 : vector<2x64xf32>
    %326 = math.exp %325 : vector<2x64xf32>
    %cst_68 = arith.constant 1.000000e+00 : f32
    %327 = vector.broadcast %cst_68 : f32 to vector<2x64xf32>
    %328 = arith.addf %327, %326 : vector<2x64xf32>
    %329 = arith.divf %327, %328 : vector<2x64xf32>
    %330 = vector.extract_strided_slice %329 {offsets = [0, 0], sizes = [2, 32], strides = [1, 1]} : vector<2x64xf32> to vector<2x32xf32>
    %331 = vector.extract_strided_slice %329 {offsets = [0, 32], sizes = [2, 32], strides = [1, 1]} : vector<2x64xf32> to vector<2x32xf32>
    %332 = vector.extract_strided_slice %323 {offsets = [0, 64], sizes = [2, 32], strides = [1, 1]} : vector<2x128xf32> to vector<2x32xf32>
    %333 = vector.extract_strided_slice %323 {offsets = [0, 96], sizes = [2, 32], strides = [1, 1]} : vector<2x128xf32> to vector<2x32xf32>
    %334 = arith.mulf %330, %333 : vector<2x32xf32>
    %335 = arith.addf %332, %334 : vector<2x32xf32>
    %336 = math.tanh %335 : vector<2x32xf32>
    %cst_69 = arith.constant 1.000000e+00 : f32
    %337 = vector.broadcast %cst_69 : f32 to vector<2x32xf32>
    %338 = arith.subf %337, %331 : vector<2x32xf32>
    %339 = arith.mulf %338, %336 : vector<2x32xf32>
    %340 = arith.mulf %331, %299 : vector<2x32xf32>
    %341 = arith.addf %339, %340 : vector<2x32xf32>
    %342 = tpu.concatenate %299, %320 in 1 : vector<2x32xf32>, vector<2x32xf32> -> vector<2x64xf32>
    %cst_70 = arith.constant dense<0.000000e+00> : vector<2x128xf32>
    %343 = tpu.matmul %342, %42, %cst_70 {dimension_numbers = #tpu.dot_dimension_numbers<[1], [0], [0], [1], [0, 0, 1, 1], [], []>} : vector<2x64xf32>, vector<64x128xf32>, vector<2x128xf32> -> vector<2x128xf32>
    %344 = arith.addf %343, %45 : vector<2x128xf32>
    %345 = vector.extract_strided_slice %344 {offsets = [0, 0], sizes = [2, 64], strides = [1, 1]} : vector<2x128xf32> to vector<2x64xf32>
    %346 = arith.negf %345 : vector<2x64xf32>
    %347 = math.exp %346 : vector<2x64xf32>
    %cst_71 = arith.constant 1.000000e+00 : f32
    %348 = vector.broadcast %cst_71 : f32 to vector<2x64xf32>
    %349 = arith.addf %348, %347 : vector<2x64xf32>
    %350 = arith.divf %348, %349 : vector<2x64xf32>
    %351 = vector.extract_strided_slice %350 {offsets = [0, 0], sizes = [2, 32], strides = [1, 1]} : vector<2x64xf32> to vector<2x32xf32>
    %352 = vector.extract_strided_slice %350 {offsets = [0, 32], sizes = [2, 32], strides = [1, 1]} : vector<2x64xf32> to vector<2x32xf32>
    %353 = vector.extract_strided_slice %344 {offsets = [0, 64], sizes = [2, 32], strides = [1, 1]} : vector<2x128xf32> to vector<2x32xf32>
    %354 = vector.extract_strided_slice %344 {offsets = [0, 96], sizes = [2, 32], strides = [1, 1]} : vector<2x128xf32> to vector<2x32xf32>
    %355 = arith.mulf %351, %354 : vector<2x32xf32>
    %356 = arith.addf %353, %355 : vector<2x32xf32>
    %357 = math.tanh %356 : vector<2x32xf32>
    %cst_72 = arith.constant 1.000000e+00 : f32
    %358 = vector.broadcast %cst_72 : f32 to vector<2x32xf32>
    %359 = arith.subf %358, %352 : vector<2x32xf32>
    %360 = arith.mulf %359, %357 : vector<2x32xf32>
    %361 = arith.mulf %352, %320 : vector<2x32xf32>
    %362 = arith.addf %360, %361 : vector<2x32xf32>
    %363 = tpu.concatenate %341, %362 in 1 : vector<2x32xf32>, vector<2x32xf32> -> vector<2x64xf32>
    %cst_73 = arith.constant dense<0.000000e+00> : vector<2x128xf32>
    %364 = tpu.matmul %363, %42, %cst_73 {dimension_numbers = #tpu.dot_dimension_numbers<[1], [0], [0], [1], [0, 0, 1, 1], [], []>} : vector<2x64xf32>, vector<64x128xf32>, vector<2x128xf32> -> vector<2x128xf32>
    %365 = arith.addf %364, %45 : vector<2x128xf32>
    %366 = vector.extract_strided_slice %365 {offsets = [0, 0], sizes = [2, 64], strides = [1, 1]} : vector<2x128xf32> to vector<2x64xf32>
    %367 = arith.negf %366 : vector<2x64xf32>
    %368 = math.exp %367 : vector<2x64xf32>
    %cst_74 = arith.constant 1.000000e+00 : f32
    %369 = vector.broadcast %cst_74 : f32 to vector<2x64xf32>
    %370 = arith.addf %369, %368 : vector<2x64xf32>
    %371 = arith.divf %369, %370 : vector<2x64xf32>
    %372 = vector.extract_strided_slice %371 {offsets = [0, 0], sizes = [2, 32], strides = [1, 1]} : vector<2x64xf32> to vector<2x32xf32>
    %373 = vector.extract_strided_slice %371 {offsets = [0, 32], sizes = [2, 32], strides = [1, 1]} : vector<2x64xf32> to vector<2x32xf32>
    %374 = vector.extract_strided_slice %365 {offsets = [0, 64], sizes = [2, 32], strides = [1, 1]} : vector<2x128xf32> to vector<2x32xf32>
    %375 = vector.extract_strided_slice %365 {offsets = [0, 96], sizes = [2, 32], strides = [1, 1]} : vector<2x128xf32> to vector<2x32xf32>
    %376 = arith.mulf %372, %375 : vector<2x32xf32>
    %377 = arith.addf %374, %376 : vector<2x32xf32>
    %378 = math.tanh %377 : vector<2x32xf32>
    %cst_75 = arith.constant 1.000000e+00 : f32
    %379 = vector.broadcast %cst_75 : f32 to vector<2x32xf32>
    %380 = arith.subf %379, %373 : vector<2x32xf32>
    %381 = arith.mulf %380, %378 : vector<2x32xf32>
    %382 = arith.mulf %373, %362 : vector<2x32xf32>
    %383 = arith.addf %381, %382 : vector<2x32xf32>
    %384 = tpu.concatenate %110, %152, %194, %236, %278, %320, %362, %383 in 0 : vector<2x32xf32>, vector<2x32xf32>, vector<2x32xf32>, vector<2x32xf32>, vector<2x32xf32>, vector<2x32xf32>, vector<2x32xf32>, vector<2x32xf32> -> vector<16x32xf32>
    %c368 = arith.constant 368 : index
    %c0_76 = arith.constant 0 : index
    %385 = vector.load %arg2[%c368, %c0_76] : memref<448x128xf32, #tpu.memory_space<vmem>>, vector<32x32xf32>
    %cst_77 = arith.constant dense<0.000000e+00> : vector<16x32xf32>
    %386 = tpu.matmul %384, %385, %cst_77 {dimension_numbers = #tpu.dot_dimension_numbers<[1], [0], [0], [1], [0, 0, 1, 1], [], []>} : vector<16x32xf32>, vector<32x32xf32>, vector<16x32xf32> -> vector<16x32xf32>
    %c400 = arith.constant 400 : index
    %c0_78 = arith.constant 0 : index
    %387 = vector.load %arg2[%c400, %c0_78] : memref<448x128xf32, #tpu.memory_space<vmem>>, vector<1x32xf32>
    %388 = vector.broadcast %387 : vector<1x32xf32> to vector<16x32xf32>
    %389 = arith.addf %386, %388 : vector<16x32xf32>
    %cst_79 = arith.constant 0.000000e+00 : f32
    %390 = vector.broadcast %cst_79 : f32 to vector<16x32xf32>
    %391 = arith.cmpf ogt, %389, %390 : vector<16x32xf32>
    %cst_80 = arith.constant 0.00999999977 : f32
    %392 = vector.broadcast %cst_80 : f32 to vector<16x32xf32>
    %393 = arith.mulf %392, %389 : vector<16x32xf32>
    %394 = arith.select %391, %389, %393 : vector<16x32xi1>, vector<16x32xf32>
    %c408 = arith.constant 408 : index
    %c0_81 = arith.constant 0 : index
    %395 = vector.load %arg2[%c408, %c0_81] : memref<448x128xf32, #tpu.memory_space<vmem>>, vector<32x16xf32>
    %cst_82 = arith.constant dense<0.000000e+00> : vector<16x16xf32>
    %396 = tpu.matmul %394, %395, %cst_82 {dimension_numbers = #tpu.dot_dimension_numbers<[1], [0], [0], [1], [0, 0, 1, 1], [], []>} : vector<16x32xf32>, vector<32x16xf32>, vector<16x16xf32> -> vector<16x16xf32>
    %c440 = arith.constant 440 : index
    %c0_83 = arith.constant 0 : index
    %397 = vector.load %arg2[%c440, %c0_83] : memref<448x128xf32, #tpu.memory_space<vmem>>, vector<1x16xf32>
    %398 = vector.broadcast %397 : vector<1x16xf32> to vector<16x16xf32>
    %399 = arith.addf %396, %398 : vector<16x16xf32>
    %c0_84 = arith.constant 0 : index
    %c0_85 = arith.constant 0 : index
    %400 = vector.load %arg3[%c0_84, %c0_85] : memref<16x16xf32, #tpu.memory_space<vmem>>, vector<16x16xf32>
    tpu.vector_store %arg3[%c0_84, %c0_85], %399 {strides = array<i32>} : memref<16x16xf32, #tpu.memory_space<vmem>>, vector<16x16xf32>,
    %401 = tpu.concatenate %341, %383 in 0 : vector<2x32xf32>, vector<2x32xf32> -> vector<4x32xf32>
    %c0_86 = arith.constant 0 : index
    %c0_87 = arith.constant 0 : index
    %402 = vector.load %arg4[%c0_86, %c0_87] : memref<4x32xf32, #tpu.memory_space<vmem>>, vector<4x32xf32>
    tpu.vector_store %arg4[%c0_86, %c0_87], %401 {strides = array<i32>} : memref<4x32xf32, #tpu.memory_space<vmem>>, vector<4x32xf32>,
    return
  }
}

</mosaic_0001>

<llo_original>
// kernel: _lambda_.1
$region0: #{_lambda_.1}
  #allocation0 [shape = 'u32[]', space=smem, size = 0x4, offset = 0x4, fixed_abs, tag = 'smem constant byte address 0x4 - core index']
  #allocation1 [shape = 'u32[144,128]{1,0:T(1,128)}', space=vmem, size = 0x12000, scoped, tag = 'internal scratch']
  %s0 = inlined_call_operand.vmem [shape: f32[16,32], index: 0, kind: input, shape index: {}]
  %s1 = inlined_call_operand.vmem [shape: f32[4,32], index: 1, kind: input, shape index: {}]
  %s2 = inlined_call_operand.vmem [shape: f32[448,128], index: 2, kind: input, shape index: {}]
  %s3 = inlined_call_operand.vmem [shape: f32[16,16], index: 3, kind: output, shape index: {0}]
  %s4 = inlined_call_operand.hbm [shape: f32[4,32], index: 4, kind: output, shape index: {1}]
  %5 = xla_tuple %s3, %s4
  %s6 = sld [smem:[#allocation0]]
  $region30: #{_lambda_.1} parent=0
    _
  %s8 = ssub.s32 1, %s6
  %s9 = scalar_select 0, %s8, %s6
  $region1: #{_lambda_.1} parent=0
    #allocation2 [shape = 'u8[2048]{0}', space=vmem, size = 0x800, scoped, tag = 'output window, operand 1, single buffered']
    #allocation3 [shape = 's32[1]{0}', space=sflag, size = 0x4, scoped, tag = 'scoped memory for _lambda_.1']
    %10 = vsyncpa [#allocation3], 0
    // Predicated region
    $region2: #{_lambda_.1} parent=1 // pred_check
      _
    $region3: #{_lambda_.1} parent=1 // pred_check_branch
      %12 = sbr.rel (0) target = $region5
    $region4: #{_lambda_.1} parent=1 // pred_region
      _
    $region5: #{_lambda_.1} parent=1 // pred_fallthru
      _
    // Predicated region
    $region6: #{_lambda_.1} parent=1 // pred_check
      _
    $region7: #{_lambda_.1} parent=1 // pred_check_branch
      %14 = sbr.rel (0) target = $region9
    $region8: #{_lambda_.1} parent=1 // pred_region
      _
    $region9: #{_lambda_.1} parent=1 // pred_fallthru
      _
    // Predicated region
    $region10: #{_lambda_.1} parent=1 // pred_check
      _
    $region11: #{_lambda_.1} parent=1 // pred_check_branch
      %16 = sbr.rel (0) target = $region13
    $region12: #{_lambda_.1} parent=1 // pred_region
      _
    $region13: #{_lambda_.1} parent=1 // pred_fallthru
      _
    %v17 = vld [vmem:[%s0] sm:$0xff]
    %v18 = vld [vmem:[%s0 + $0x8] sm:$0xff]
    %v19 = vld [vmem:[%s2] sm:$0xff]
    %v20 = vld [vmem:[%s2 + $0x8] sm:$0x1]
    %v21 = vlaneseq
    %v22 = vshrl.u32 %v21, 7
    %v23 = vsub.s32 0, %v22
    %v24 = vrot.slane %v20, %v23
    %vm25 = vcmask 64512
    %v27 = vsel %vm25, %v17, 0
    %v30 = vsel %vm25, %v18, 0
    %32 = vmatprep.subr.mxu0 0.0
    %33 = vmatpush1.msra.mxu0 %v19
    %34 = vmatprep.subr.mxu0 0.0
    %35 = vmatpush1.msra.mxu0 0.0
    %36 = vmatprep.subr.mxu0 0.0
    %37 = vmatpush1.msra.mxu0 0.0
    %38 = vmatprep.subr.mxu0 0.0
    %39 = vmatpush1.msra.mxu0 0.0
    %40 = vmatprep.subr.mxu0 0.0
    %41 = vmatpush1.msra.mxu0 0.0
    %42 = vmatprep.subr.mxu0 0.0
    %43 = vmatpush1.msra.mxu0 0.0
    %44 = vmatprep.subr.mxu0 0.0
    %45 = vmatpush1.msra.mxu0 0.0
    %46 = vmatprep.subr.mxu0 0.0
    %47 = vmatpush1.msra.mxu0 0.0
    %48 = vmatprep.subr.mxu0 0.0
    %49 = vmatpush1.msra.mxu0 0.0
    %50 = vmatprep.subr.mxu0 0.0
    %51 = vmatpush1.msra.mxu0 0.0
    %52 = vmatprep.subr.mxu0 0.0
    %53 = vmatpush1.msra.mxu0 0.0
    %54 = vmatprep.subr.mxu0 0.0
    %55 = vmatpush1.msra.mxu0 0.0
    %56 = vmatprep.subr.mxu0 0.0
    %57 = vmatpush1.msra.mxu0 0.0
    %58 = vmatprep.subr.mxu0 0.0
    %59 = vmatpush1.msra.mxu0 0.0
    %60 = vmatprep.subr.mxu0 0.0
    %61 = vmatpush1.msra.mxu0 0.0
    %62 = vmatprep.subr.mxu0 0.0
    %63 = vmatpush1.msra.mxu0 0.0
    %64 = vmatprep.subr.mxu0 0.0
    %65 = vmatpush1.msra.mxu0 0.0
    %66 = vmatprep.subr.mxu0 0.0
    %67 = vmatpush1.msra.mxu0 0.0
    %68 = vmatprep.subr.mxu0 0.0
    %69 = vmatpush1.msra.mxu0 0.0
    %70 = vmatprep.subr.mxu0 0.0
    %71 = vmatpush1.msra.mxu0 0.0
    %72 = vmatprep.subr.mxu0 0.0
    %73 = vmatpush1.msra.mxu0 0.0
    %74 = vmatprep.subr.mxu0 0.0
    %75 = vmatpush1.msra.mxu0 0.0
    %76 = vmatprep.subr.mxu0 0.0
    %77 = vmatpush1.msra.mxu0 0.0
    %78 = vmatprep.subr.mxu0 0.0
    %79 = vmatpush1.msra.mxu0 0.0
    %80 = vmatprep.subr.mxu0 0.0
    %81 = vmatpush1.msra.mxu0 0.0
    %82 = vmatprep.subr.mxu0 0.0
    %83 = vmatpush1.msra.mxu0 0.0
    %84 = vmatprep.subr.mxu0 0.0
    %85 = vmatpush1.msra.mxu0 0.0
    %86 = vmatprep.subr.mxu0 0.0
    %87 = vmatpush1.msra.mxu0 0.0
    %88 = vmatprep.subr.mxu0 0.0
    %89 = vmatpush1.msra.mxu0 0.0
    %90 = vmatprep.subr.mxu0 0.0
    %91 = vmatpush1.msra.mxu0 0.0
    %92 = vmatprep.subr.mxu0 0.0
    %93 = vmatpush1.msra.mxu0 0.0
    %94 = vmatprep.subr.mxu0 0.0
    %95 = vmatpush1.msra.mxu0 0.0
    %96 = vmatprep.mubr.f32.mxu0 0.0
    %97 = vmatmul.mubr.f32.gmra.mrb[0].mxu0 %v27
    %v98 = vpop.f32.mrb[0].mxu0
    %v99 = vadd.f32 %v24, %v98
    %v100 = vpop.f32.mrb[0].mxu0
    %101 = vmatprep.mubr.f32.mxu0 0.0
    %102 = vmatmul.mubr.f32.gmra.mrb[0].mxu0 %v30
    %v103 = vpop.f32.mrb[0].mxu0
    %v104 = vadd.f32 %v24, %v103
    %v105 = vpop.f32.mrb[0].mxu0
    %106 = vdwg.mxu0
    %v107 = vld [vmem:[%s2 + $0x30] sm:$0xff]
    %v108 = vld [vmem:[%s2 + $0x38] sm:$0xff]
    %v109 = vld [vmem:[%s2 + $0x40] sm:$0x1]
    %v110 = vlaneseq
    %v111 = vshrl.u32 %v110, 7
    %v112 = vsub.s32 0, %v111
    %v113 = vrot.slane %v109, %v112
    %vm114 = vcmask 130048
    %v116 = vsel %vm114, %v99, 0
    %v119 = vsel %vm114, %v104, 0
    %121 = vmatprep.subr.mxu0 0.0
    %122 = vmatpush1.msra.mxu0 %v107
    %123 = vmatprep.subr.mxu0 0.0
    %124 = vmatpush1.msra.mxu0 %v108
    %125 = vmatprep.subr.mxu0 0.0
    %126 = vmatpush1.msra.mxu0 0.0
    %127 = vmatprep.subr.mxu0 0.0
    %128 = vmatpush1.msra.mxu0 0.0
    %129 = vmatprep.subr.mxu0 0.0
    %130 = vmatpush1.msra.mxu0 0.0
    %131 = vmatprep.subr.mxu0 0.0
    %132 = vmatpush1.msra.mxu0 0.0
    %133 = vmatprep.subr.mxu0 0.0
    %134 = vmatpush1.msra.mxu0 0.0
    %135 = vmatprep.subr.mxu0 0.0
    %136 = vmatpush1.msra.mxu0 0.0
    %137 = vmatprep.subr.mxu0 0.0
    %138 = vmatpush1.msra.mxu0 0.0
    %139 = vmatprep.subr.mxu0 0.0
    %140 = vmatpush1.msra.mxu0 0.0
    %141 = vmatprep.subr.mxu0 0.0
    %142 = vmatpush1.msra.mxu0 0.0
    %143 = vmatprep.subr.mxu0 0.0
    %144 = vmatpush1.msra.mxu0 0.0
    %145 = vmatprep.subr.mxu0 0.0
    %146 = vmatpush1.msra.mxu0 0.0
    %147 = vmatprep.subr.mxu0 0.0
    %148 = vmatpush1.msra.mxu0 0.0
    %149 = vmatprep.subr.mxu0 0.0
    %150 = vmatpush1.msra.mxu0 0.0
    %151 = vmatprep.subr.mxu0 0.0
    %152 = vmatpush1.msra.mxu0 0.0
    %153 = vmatprep.subr.mxu0 0.0
    %154 = vmatpush1.msra.mxu0 0.0
    %155 = vmatprep.subr.mxu0 0.0
    %156 = vmatpush1.msra.mxu0 0.0
    %157 = vmatprep.subr.mxu0 0.0
    %158 = vmatpush1.msra.mxu0 0.0
    %159 = vmatprep.subr.mxu0 0.0
    %160 = vmatpush1.msra.mxu0 0.0
    %161 = vmatprep.subr.mxu0 0.0
    %162 = vmatpush1.msra.mxu0 0.0
    %163 = vmatprep.subr.mxu0 0.0
    %164 = vmatpush1.msra.mxu0 0.0
    %165 = vmatprep.subr.mxu0 0.0
    %166 = vmatpush1.msra.mxu0 0.0
    %167 = vmatprep.subr.mxu0 0.0
    %168 = vmatpush1.msra.mxu0 0.0
    %169 = vmatprep.subr.mxu0 0.0
    %170 = vmatpush1.msra.mxu0 0.0
    %171 = vmatprep.subr.mxu0 0.0
    %172 = vmatpush1.msra.mxu0 0.0
    %173 = vmatprep.subr.mxu0 0.0
    %174 = vmatpush1.msra.mxu0 0.0
    %175 = vmatprep.subr.mxu0 0.0
    %176 = vmatpush1.msra.mxu0 0.0
    %177 = vmatprep.subr.mxu0 0.0
    %178 = vmatpush1.msra.mxu0 0.0
    %179 = vmatprep.subr.mxu0 0.0
    %180 = vmatpush1.msra.mxu0 0.0
    %181 = vmatprep.subr.mxu0 0.0
    %182 = vmatpush1.msra.mxu0 0.0
    %183 = vmatprep.subr.mxu0 0.0
    %184 = vmatpush1.msra.mxu0 0.0
    %185 = vmatprep.mubr.f32.mxu0 0.0
    %186 = vmatmul.mubr.f32.gmra.mrb[0].mxu0 %v116
    %v187 = vpop.f32.mrb[0].mxu0
    %v188 = vadd.f32 %v113, %v187
    %v189 = vpop.f32.mrb[0].mxu0
    %190 = vmatprep.mubr.f32.mxu0 0.0
    %191 = vmatmul.mubr.f32.gmra.mrb[0].mxu0 %v119
    %v192 = vpop.f32.mrb[0].mxu0
    %v193 = vadd.f32 %v113, %v192
    %v194 = vpop.f32.mrb[0].mxu0
    %195 = vdwg.mxu0
    %vm196 = vcmp.gt.f32.partialorder %v188, 0.0
    %vm197 = vcmp.gt.f32.partialorder %v193, 0.0
    %v198 = vmul.f32 %v188, 0.01
    %v199 = vmul.f32 %v193, 0.01
    %v200 = vsel %vm196, %v188, %v198
    %v201 = vsel %vm197, %v193, %v199
    %v202 = vld [vmem:[%s2 + $0x10] sm:$0xff]
    %v203 = vld [vmem:[%s2 + $0x18] sm:$0xff]
    %v204 = vld [vmem:[%s2 + $0x20] sm:$0xff]
    %v205 = vld [vmem:[%s2 + $0x28] sm:$0x1]
    %v206 = vlaneseq
    %v207 = vshrl.u32 %v206, 7
    %v208 = vsub.s32 0, %v207
    %v209 = vrot.slane %v205, %v208
    %210 = vrot.lane.b32.xlu0 %v17, 120
    %v211 = vpop.permute.xlu0 %210
    %212 = vrot.lane.b32.xlu0 %v18, 120
    %v213 = vpop.permute.xlu0 %212
    %vm214 = vcmask 195584
    %v215 = vsel %vm214, %v211, 0
    %v217 = vsel %vm214, %v213, 0
    %219 = vmatprep.subr.mxu0 0.0
    %220 = vmatpush1.msra.mxu0 %v202
    %221 = vmatprep.subr.mxu0 0.0
    %222 = vmatpush1.msra.mxu0 %v203
    %223 = vmatprep.subr.mxu0 0.0
    %224 = vmatpush1.msra.mxu0 %v204
    %225 = vmatprep.subr.mxu0 0.0
    %226 = vmatpush1.msra.mxu0 0.0
    %227 = vmatprep.subr.mxu0 0.0
    %228 = vmatpush1.msra.mxu0 0.0
    %229 = vmatprep.subr.mxu0 0.0
    %230 = vmatpush1.msra.mxu0 0.0
    %231 = vmatprep.subr.mxu0 0.0
    %232 = vmatpush1.msra.mxu0 0.0
    %233 = vmatprep.subr.mxu0 0.0
    %234 = vmatpush1.msra.mxu0 0.0
    %235 = vmatprep.subr.mxu0 0.0
    %236 = vmatpush1.msra.mxu0 0.0
    %237 = vmatprep.subr.mxu0 0.0
    %238 = vmatpush1.msra.mxu0 0.0
    %239 = vmatprep.subr.mxu0 0.0
    %240 = vmatpush1.msra.mxu0 0.0
    %241 = vmatprep.subr.mxu0 0.0
    %242 = vmatpush1.msra.mxu0 0.0
    %243 = vmatprep.subr.mxu0 0.0
    %244 = vmatpush1.msra.mxu0 0.0
    %245 = vmatprep.subr.mxu0 0.0
    %246 = vmatpush1.msra.mxu0 0.0
    %247 = vmatprep.subr.mxu0 0.0
    %248 = vmatpush1.msra.mxu0 0.0
    %249 = vmatprep.subr.mxu0 0.0
    %250 = vmatpush1.msra.mxu0 0.0
    %251 = vmatprep.subr.mxu0 0.0
    %252 = vmatpush1.msra.mxu0 0.0
    %253 = vmatprep.subr.mxu0 0.0
    %254 = vmatpush1.msra.mxu0 0.0
    %255 = vmatprep.subr.mxu0 0.0
    %256 = vmatpush1.msra.mxu0 0.0
    %257 = vmatprep.subr.mxu0 0.0
    %258 = vmatpush1.msra.mxu0 0.0
    %259 = vmatprep.subr.mxu0 0.0
    %260 = vmatpush1.msra.mxu0 0.0
    %261 = vmatprep.subr.mxu0 0.0
    %262 = vmatpush1.msra.mxu0 0.0
    %263 = vmatprep.subr.mxu0 0.0
    %264 = vmatpush1.msra.mxu0 0.0
    %265 = vmatprep.subr.mxu0 0.0
    %266 = vmatpush1.msra.mxu0 0.0
    %267 = vmatprep.subr.mxu0 0.0
    %268 = vmatpush1.msra.mxu0 0.0
    %269 = vmatprep.subr.mxu0 0.0
    %270 = vmatpush1.msra.mxu0 0.0
    %271 = vmatprep.subr.mxu0 0.0
    %272 = vmatpush1.msra.mxu0 0.0
    %273 = vmatprep.subr.mxu0 0.0
    %274 = vmatpush1.msra.mxu0 0.0
    %275 = vmatprep.subr.mxu0 0.0
    %276 = vmatpush1.msra.mxu0 0.0
    %277 = vmatprep.subr.mxu0 0.0
    %278 = vmatpush1.msra.mxu0 0.0
    %279 = vmatprep.subr.mxu0 0.0
    %280 = vmatpush1.msra.mxu0 0.0
    %281 = vmatprep.subr.mxu0 0.0
    %282 = vmatpush1.msra.mxu0 0.0
    %283 = vmatprep.mubr.f32.mxu0 0.0
    %284 = vmatmul.mubr.f32.gmra.mrb[0].mxu0 %v215
    %v285 = vpop.f32.mrb[0].mxu0
    %v286 = vadd.f32 %v209, %v285
    %v287 = vpop.f32.mrb[0].mxu0
    %288 = vmatprep.mubr.f32.mxu0 0.0
    %289 = vmatmul.mubr.f32.gmra.mrb[0].mxu0 %v217
    %v290 = vpop.f32.mrb[0].mxu0
    %v291 = vadd.f32 %v209, %v290
    %v292 = vpop.f32.mrb[0].mxu0
    %293 = vdwg.mxu0
    %v294 = vld [vmem:[%s2 + $0x48] sm:$0xff]
    %v295 = vld [vmem:[%s2 + $0x50] sm:$0xff]
    %v296 = vld [vmem:[%s2 + $0x58] sm:$0xff]
    %v297 = vld [vmem:[%s2 + $0x60] sm:$0xff]
    %v298 = vld [vmem:[%s2 + $0x68] sm:$0xff]
    %v299 = vld [vmem:[%s2 + $0x70] sm:$0xff]
    %v300 = vld [vmem:[%s2 + $0x78] sm:$0x1]
    %v301 = vlaneseq
    %v302 = vshrl.u32 %v301, 7
    %v303 = vsub.s32 0, %v302
    %v304 = vrot.slane %v300, %v303
    %vm305 = vcmask 392192
    %v307 = vsel %vm305, %v286, 0
    %v310 = vsel %vm305, %v291, 0
    %312 = vmatprep.subr.mxu0 0.0
    %313 = vmatpush1.msra.mxu0 %v294
    %314 = vmatprep.subr.mxu0 0.0
    %315 = vmatpush1.msra.mxu0 %v295
    %316 = vmatprep.subr.mxu0 0.0
    %317 = vmatpush1.msra.mxu0 %v296
    %318 = vmatprep.subr.mxu0 0.0
    %319 = vmatpush1.msra.mxu0 %v297
    %320 = vmatprep.subr.mxu0 0.0
    %321 = vmatpush1.msra.mxu0 %v298
    %322 = vmatprep.subr.mxu0 0.0
    %323 = vmatpush1.msra.mxu0 %v299
    %324 = vmatprep.subr.mxu0 0.0
    %325 = vmatpush1.msra.mxu0 0.0
    %326 = vmatprep.subr.mxu0 0.0
    %327 = vmatpush1.msra.mxu0 0.0
    %328 = vmatprep.subr.mxu0 0.0
    %329 = vmatpush1.msra.mxu0 0.0
    %330 = vmatprep.subr.mxu0 0.0
    %331 = vmatpush1.msra.mxu0 0.0
    %332 = vmatprep.subr.mxu0 0.0
    %333 = vmatpush1.msra.mxu0 0.0
    %334 = vmatprep.subr.mxu0 0.0
    %335 = vmatpush1.msra.mxu0 0.0
    %336 = vmatprep.subr.mxu0 0.0
    %337 = vmatpush1.msra.mxu0 0.0
    %338 = vmatprep.subr.mxu0 0.0
    %339 = vmatpush1.msra.mxu0 0.0
    %340 = vmatprep.subr.mxu0 0.0
    %341 = vmatpush1.msra.mxu0 0.0
    %342 = vmatprep.subr.mxu0 0.0
    %343 = vmatpush1.msra.mxu0 0.0
    %344 = vmatprep.subr.mxu0 0.0
    %345 = vmatpush1.msra.mxu0 0.0
    %346 = vmatprep.subr.mxu0 0.0
    %347 = vmatpush1.msra.mxu0 0.0
    %348 = vmatprep.subr.mxu0 0.0
    %349 = vmatpush1.msra.mxu0 0.0
    %350 = vmatprep.subr.mxu0 0.0
    %351 = vmatpush1.msra.mxu0 0.0
    %352 = vmatprep.subr.mxu0 0.0
    %353 = vmatpush1.msra.mxu0 0.0
    %354 = vmatprep.subr.mxu0 0.0
    %355 = vmatpush1.msra.mxu0 0.0
    %356 = vmatprep.subr.mxu0 0.0
    %357 = vmatpush1.msra.mxu0 0.0
    %358 = vmatprep.subr.mxu0 0.0
    %359 = vmatpush1.msra.mxu0 0.0
    %360 = vmatprep.subr.mxu0 0.0
    %361 = vmatpush1.msra.mxu0 0.0
    %362 = vmatprep.subr.mxu0 0.0
    %363 = vmatpush1.msra.mxu0 0.0
    %364 = vmatprep.subr.mxu0 0.0
    %365 = vmatpush1.msra.mxu0 0.0
    %366 = vmatprep.subr.mxu0 0.0
    %367 = vmatpush1.msra.mxu0 0.0
    %368 = vmatprep.subr.mxu0 0.0
    %369 = vmatpush1.msra.mxu0 0.0
    %370 = vmatprep.subr.mxu0 0.0
    %371 = vmatpush1.msra.mxu0 0.0
    %372 = vmatprep.subr.mxu0 0.0
    %373 = vmatpush1.msra.mxu0 0.0
    %374 = vmatprep.subr.mxu0 0.0
    %375 = vmatpush1.msra.mxu0 0.0
    %376 = vmatprep.mubr.f32.mxu0 0.0
    %377 = vmatmul.mubr.f32.gmra.mrb[0].mxu0 %v307
    %v378 = vpop.f32.mrb[0].mxu0
    %v379 = vadd.f32 %v304, %v378
    %v380 = vpop.f32.mrb[0].mxu0
    %381 = vmatprep.mubr.f32.mxu0 0.0
    %382 = vmatmul.mubr.f32.gmra.mrb[0].mxu0 %v310
    %v383 = vpop.f32.mrb[0].mxu0
    %v384 = vadd.f32 %v304, %v383
    %v385 = vpop.f32.mrb[0].mxu0
    %386 = vdwg.mxu0
    %vm387 = vcmp.gt.f32.partialorder %v379, 0.0
    %vm388 = vcmp.gt.f32.partialorder %v384, 0.0
    %v389 = vmul.f32 %v379, 0.01
    %v390 = vmul.f32 %v384, 0.01
    %v391 = vsel %vm387, %v379, %v389
    %v392 = vsel %vm388, %v384, %v390
    %v393 = vld [vmem:[%s2 + $0x80] sm:$0xff]
    %v394 = vld [vmem:[%s2 + $0x88] sm:$0xff]
    %v395 = vld [vmem:[%s2 + $0x90] sm:$0xff]
    %v396 = vld [vmem:[%s2 + $0x98] sm:$0xff]
    %v397 = vld [vmem:[%s2 + $0xa0] sm:$0xff]
    %v398 = vld [vmem:[%s2 + $0xa8] sm:$0xff]
    %v399 = vld [vmem:[%s2 + $0xb0] sm:$0xff]
    %v400 = vld [vmem:[%s2 + $0xb8] sm:$0xff]
    %v401 = vld [vmem:[%s2 + $0xc0] sm:$0xff]
    %v402 = vld [vmem:[%s2 + $0xc8] sm:$0xff]
    %v403 = vld [vmem:[%s2 + $0xd0] sm:$0xff]
    %v404 = vld [vmem:[%s2 + $0xd8] sm:$0xff]
    %v405 = vld [vmem:[%s2 + $0xe0] sm:$0xff]
    %v406 = vld [vmem:[%s2 + $0xe8] sm:$0xff]
    %v407 = vld [vmem:[%s2 + $0xf0] sm:$0xff]
    %v408 = vld [vmem:[%s2 + $0xf8] sm:$0xff]
    %vm409 = vcmask 523264
    %v411 = vsel %vm409, %v391, 0
    %v414 = vsel %vm409, %v392, 0
    %416 = vmatprep.subr.mxu0 0.0
    %417 = vmatpush1.msra.mxu0 %v401
    %418 = vmatprep.subr.mxu0 0.0
    %419 = vmatpush1.msra.mxu0 %v402
    %420 = vmatprep.subr.mxu0 0.0
    %421 = vmatpush1.msra.mxu0 %v403
    %422 = vmatprep.subr.mxu0 0.0
    %423 = vmatpush1.msra.mxu0 %v404
    %424 = vmatprep.subr.mxu0 0.0
    %425 = vmatpush1.msra.mxu0 %v405
    %426 = vmatprep.subr.mxu0 0.0
    %427 = vmatpush1.msra.mxu0 %v406
    %428 = vmatprep.subr.mxu0 0.0
    %429 = vmatpush1.msra.mxu0 %v407
    %430 = vmatprep.subr.mxu0 0.0
    %431 = vmatpush1.msra.mxu0 %v408
    %432 = vmatprep.subr.mxu0 0.0
    %433 = vmatpush1.msra.mxu0 0.0
    %434 = vmatprep.subr.mxu0 0.0
    %435 = vmatpush1.msra.mxu0 0.0
    %436 = vmatprep.subr.mxu0 0.0
    %437 = vmatpush1.msra.mxu0 0.0
    %438 = vmatprep.subr.mxu0 0.0
    %439 = vmatpush1.msra.mxu0 0.0
    %440 = vmatprep.subr.mxu0 0.0
    %441 = vmatpush1.msra.mxu0 0.0
    %442 = vmatprep.subr.mxu0 0.0
    %443 = vmatpush1.msra.mxu0 0.0
    %444 = vmatprep.subr.mxu0 0.0
    %445 = vmatpush1.msra.mxu0 0.0
    %446 = vmatprep.subr.mxu0 0.0
    %447 = vmatpush1.msra.mxu0 0.0
    %448 = vmatprep.subr.mxu0 0.0
    %449 = vmatpush1.msra.mxu0 0.0
    %450 = vmatprep.subr.mxu0 0.0
    %451 = vmatpush1.msra.mxu0 0.0
    %452 = vmatprep.subr.mxu0 0.0
    %453 = vmatpush1.msra.mxu0 0.0
    %454 = vmatprep.subr.mxu0 0.0
    %455 = vmatpush1.msra.mxu0 0.0
    %456 = vmatprep.subr.mxu0 0.0
    %457 = vmatpush1.msra.mxu0 0.0
    %458 = vmatprep.subr.mxu0 0.0
    %459 = vmatpush1.msra.mxu0 0.0
    %460 = vmatprep.subr.mxu0 0.0
    %461 = vmatpush1.msra.mxu0 0.0
    %462 = vmatprep.subr.mxu0 0.0
    %463 = vmatpush1.msra.mxu0 0.0
    %464 = vmatprep.subr.mxu0 0.0
    %465 = vmatpush1.msra.mxu0 0.0
    %466 = vmatprep.subr.mxu0 0.0
    %467 = vmatpush1.msra.mxu0 0.0
    %468 = vmatprep.subr.mxu0 0.0
    %469 = vmatpush1.msra.mxu0 0.0
    %470 = vmatprep.subr.mxu0 0.0
    %471 = vmatpush1.msra.mxu0 0.0
    %472 = vmatprep.subr.mxu0 0.0
    %473 = vmatpush1.msra.mxu0 0.0
    %474 = vmatprep.subr.mxu0 0.0
    %475 = vmatpush1.msra.mxu0 0.0
    %476 = vmatprep.subr.mxu0 0.0
    %477 = vmatpush1.msra.mxu0 0.0
    %478 = vmatprep.subr.mxu0 0.0
    %479 = vmatpush1.msra.mxu0 0.0
    %480 = vmatprep.mubr.f32.mxu0 0.0
    %481 = vmatmul.mubr.f32.gmra.mrb[0].mxu0 %v411
    %v482 = vpop.f32.mrb[0].mxu0
    %v483 = vadd.f32 0.0, %v482
    %v484 = vpop.f32.mrb[0].mxu0
    %485 = vmatprep.mubr.f32.mxu0 0.0
    %486 = vmatmul.mubr.f32.gmra.mrb[0].mxu0 %v414
    %v487 = vpop.f32.mrb[0].mxu0
    %v488 = vadd.f32 0.0, %v487
    %v489 = vpop.f32.mrb[0].mxu0
    %490 = vdwg.mxu0
    %v492 = vsel %vm409, %v200, 0
    %v495 = vsel %vm409, %v201, 0
    %497 = vmatprep.subr.mxu0 0.0
    %498 = vmatpush1.msra.mxu0 %v393
    %499 = vmatprep.subr.mxu0 0.0
    %500 = vmatpush1.msra.mxu0 %v394
    %501 = vmatprep.subr.mxu0 0.0
    %502 = vmatpush1.msra.mxu0 %v395
    %503 = vmatprep.subr.mxu0 0.0
    %504 = vmatpush1.msra.mxu0 %v396
    %505 = vmatprep.subr.mxu0 0.0
    %506 = vmatpush1.msra.mxu0 %v397
    %507 = vmatprep.subr.mxu0 0.0
    %508 = vmatpush1.msra.mxu0 %v398
    %509 = vmatprep.subr.mxu0 0.0
    %510 = vmatpush1.msra.mxu0 %v399
    %511 = vmatprep.subr.mxu0 0.0
    %512 = vmatpush1.msra.mxu0 %v400
    %513 = vmatprep.subr.mxu0 0.0
    %514 = vmatpush1.msra.mxu0 0.0
    %515 = vmatprep.subr.mxu0 0.0
    %516 = vmatpush1.msra.mxu0 0.0
    %517 = vmatprep.subr.mxu0 0.0
    %518 = vmatpush1.msra.mxu0 0.0
    %519 = vmatprep.subr.mxu0 0.0
    %520 = vmatpush1.msra.mxu0 0.0
    %521 = vmatprep.subr.mxu0 0.0
    %522 = vmatpush1.msra.mxu0 0.0
    %523 = vmatprep.subr.mxu0 0.0
    %524 = vmatpush1.msra.mxu0 0.0
    %525 = vmatprep.subr.mxu0 0.0
    %526 = vmatpush1.msra.mxu0 0.0
    %527 = vmatprep.subr.mxu0 0.0
    %528 = vmatpush1.msra.mxu0 0.0
    %529 = vmatprep.subr.mxu0 0.0
    %530 = vmatpush1.msra.mxu0 0.0
    %531 = vmatprep.subr.mxu0 0.0
    %532 = vmatpush1.msra.mxu0 0.0
    %533 = vmatprep.subr.mxu0 0.0
    %534 = vmatpush1.msra.mxu0 0.0
    %535 = vmatprep.subr.mxu0 0.0
    %536 = vmatpush1.msra.mxu0 0.0
    %537 = vmatprep.subr.mxu0 0.0
    %538 = vmatpush1.msra.mxu0 0.0
    %539 = vmatprep.subr.mxu0 0.0
    %540 = vmatpush1.msra.mxu0 0.0
    %541 = vmatprep.subr.mxu0 0.0
    %542 = vmatpush1.msra.mxu0 0.0
    %543 = vmatprep.subr.mxu0 0.0
    %544 = vmatpush1.msra.mxu0 0.0
    %545 = vmatprep.subr.mxu0 0.0
    %546 = vmatpush1.msra.mxu0 0.0
    %547 = vmatprep.subr.mxu0 0.0
    %548 = vmatpush1.msra.mxu0 0.0
    %549 = vmatprep.subr.mxu0 0.0
    %550 = vmatpush1.msra.mxu0 0.0
    %551 = vmatprep.subr.mxu0 0.0
    %552 = vmatpush1.msra.mxu0 0.0
    %553 = vmatprep.subr.mxu0 0.0
    %554 = vmatpush1.msra.mxu0 0.0
    %555 = vmatprep.subr.mxu0 0.0
    %556 = vmatpush1.msra.mxu0 0.0
    %557 = vmatprep.subr.mxu0 0.0
    %558 = vmatpush1.msra.mxu0 0.0
    %559 = vmatprep.subr.mxu0 0.0
    %560 = vmatpush1.msra.mxu0 0.0
    %561 = vmatprep.mubr.f32.mxu0 0.0
    %562 = vmatmul.mubr.f32.gmra.mrb[0].mxu0 %v492
    %v563 = vpop.f32.mrb[0].mxu0
    %v564 = vadd.f32 %v483, %v563
    %v565 = vpop.f32.mrb[0].mxu0
    %566 = vmatprep.mubr.f32.mxu0 0.0
    %567 = vmatmul.mubr.f32.gmra.mrb[0].mxu0 %v495
    %v568 = vpop.f32.mrb[0].mxu0
    %v569 = vadd.f32 %v488, %v568
    %v570 = vpop.f32.mrb[0].mxu0
    %571 = vdwg.mxu0
    %v572 = vld [vmem:[%s2 + $0x120] sm:$0x1]
    %v573 = vlaneseq
    %v574 = vshrl.u32 %v573, 7
    %v575 = vsub.s32 0, %v574
    %v576 = vrot.slane %v572, %v575
    %v577 = vadd.f32 %v564, %v576
    %v578 = vadd.f32 %v569, %v576
    %v579 = vld [vmem:[%s2 + $0x100] sm:$0xff]
    %v580 = vld [vmem:[%s2 + $0x108] sm:$0xff]
    %v581 = vld [vmem:[%s2 + $0x110] sm:$0xff]
    %v582 = vld [vmem:[%s2 + $0x118] sm:$0xff]
    %v583 = vld [vmem:[%s2 + $0x128] sm:$0xff]
    %v584 = vld [vmem:[%s2 + $0x130] sm:$0xff]
    %v585 = vld [vmem:[%s2 + $0x138] sm:$0xff]
    %v586 = vld [vmem:[%s2 + $0x140] sm:$0xff]
    %v587 = vld [vmem:[%s2 + $0x148] sm:$0xff]
    %v588 = vld [vmem:[%s2 + $0x150] sm:$0xff]
    %v589 = vld [vmem:[%s2 + $0x158] sm:$0xff]
    %v590 = vld [vmem:[%s2 + $0x160] sm:$0xff]
    %v591 = vld [vmem:[%s2 + $0x168] sm:$0x1]
    %v592 = vlaneseq
    %v593 = vshrl.u32 %v592, 7
    %v594 = vsub.s32 0, %v593
    %v595 = vrot.slane %v591, %v594
    %v596 = vld [vmem:[%s1] sm:$0x3]
    %v597 = vld [vmem:[%s1 + $0x2] sm:$0x3]
    %vm598 = vcmask 261120
    %v600 = vsel %vm598, %v596, 0
    %602 = vmatprep.subr.mxu0 0.0
    %603 = vmatpush1.msra.mxu0 %v579
    %604 = vmatprep.subr.mxu0 0.0
    %605 = vmatpush1.msra.mxu0 %v580
    %606 = vmatprep.subr.mxu0 0.0
    %607 = vmatpush1.msra.mxu0 %v581
    %608 = vmatprep.subr.mxu0 0.0
    %609 = vmatpush1.msra.mxu0 %v582
    %610 = vmatprep.subr.mxu0 0.0
    %611 = vmatpush1.msra.mxu0 0.0
    %612 = vmatprep.subr.mxu0 0.0
    %613 = vmatpush1.msra.mxu0 0.0
    %614 = vmatprep.subr.mxu0 0.0
    %615 = vmatpush1.msra.mxu0 0.0
    %616 = vmatprep.subr.mxu0 0.0
    %617 = vmatpush1.msra.mxu0 0.0
    %618 = vmatprep.subr.mxu0 0.0
    %619 = vmatpush1.msra.mxu0 0.0
    %620 = vmatprep.subr.mxu0 0.0
    %621 = vmatpush1.msra.mxu0 0.0
    %622 = vmatprep.subr.mxu0 0.0
    %623 = vmatpush1.msra.mxu0 0.0
    %624 = vmatprep.subr.mxu0 0.0
    %625 = vmatpush1.msra.mxu0 0.0
    %626 = vmatprep.subr.mxu0 0.0
    %627 = vmatpush1.msra.mxu0 0.0
    %628 = vmatprep.subr.mxu0 0.0
    %629 = vmatpush1.msra.mxu0 0.0
    %630 = vmatprep.subr.mxu0 0.0
    %631 = vmatpush1.msra.mxu0 0.0
    %632 = vmatprep.subr.mxu0 0.0
    %633 = vmatpush1.msra.mxu0 0.0
    %634 = vmatprep.subr.mxu0 0.0
    %635 = vmatpush1.msra.mxu0 0.0
    %636 = vmatprep.subr.mxu0 0.0
    %637 = vmatpush1.msra.mxu0 0.0
    %638 = vmatprep.subr.mxu0 0.0
    %639 = vmatpush1.msra.mxu0 0.0
    %640 = vmatprep.subr.mxu0 0.0
    %641 = vmatpush1.msra.mxu0 0.0
    %642 = vmatprep.subr.mxu0 0.0
    %643 = vmatpush1.msra.mxu0 0.0
    %644 = vmatprep.subr.mxu0 0.0
    %645 = vmatpush1.msra.mxu0 0.0
    %646 = vmatprep.subr.mxu0 0.0
    %647 = vmatpush1.msra.mxu0 0.0
    %648 = vmatprep.subr.mxu0 0.0
    %649 = vmatpush1.msra.mxu0 0.0
    %650 = vmatprep.subr.mxu0 0.0
    %651 = vmatpush1.msra.mxu0 0.0
    %652 = vmatprep.subr.mxu0 0.0
    %653 = vmatpush1.msra.mxu0 0.0
    %654 = vmatprep.subr.mxu0 0.0
    %655 = vmatpush1.msra.mxu0 0.0
    %656 = vmatprep.subr.mxu0 0.0
    %657 = vmatpush1.msra.mxu0 0.0
    %658 = vmatprep.subr.mxu0 0.0
    %659 = vmatpush1.msra.mxu0 0.0
    %660 = vmatprep.subr.mxu0 0.0
    %661 = vmatpush1.msra.mxu0 0.0
    %662 = vmatprep.subr.mxu0 0.0
    %663 = vmatpush1.msra.mxu0 0.0
    %664 = vmatprep.subr.mxu0 0.0
    %665 = vmatpush1.msra.mxu0 0.0
    %666 = vmatprep.mubr.f32.mxu0 0.0
    %667 = vmatmul.mubr.f32.gmra.mrb[0].mxu0 %v600
    %v668 = vpop.f32.mrb[0].mxu0
    %v669 = vadd.f32 0.0, %v668
    %v670 = vpop.f32.mrb[0].mxu0
    %671 = vdwg.mxu0
    %v672 = vadd.f32 %v577, %v669
    %v673 = vxor.u32 %v672, 2147483648
    %v674 = vmul.f32 %v673, 1.442695
    %v675 = vpow.pop %v674
    %v676 = vadd.f32 %v675, 1.0
    %v677 = vrcp.pop %v676
    %v678 = vmul.f32 1.0, %v677
    %680 = vrot.lane.b32.xlu0 %v672, 32
    %v681 = vpop.permute.xlu0 %680
    %v683 = vmul.f32 %v678, %v681
    %685 = vrot.lane.b32.xlu0 %v683, 64
    %v686 = vpop.permute.xlu0 %685
    %v688 = vadd.f32 %v672, %v686
    %v689 = vtanh.pop %v688
    %v690 = vsub.f32 1.0, %v678
    %692 = vrot.lane.b32.xlu0 %v689, 96
    %v693 = vpop.permute.xlu0 %692
    %v695 = vmul.f32 %v690, %v693
    %696 = vrot.lane.b32.xlu0 %v596, 32
    %v697 = vpop.permute.xlu0 %696
    %v699 = vmul.f32 %v678, %v697
    %v700 = vadd.f32 %v695, %v699
    %702 = vrot.lane.b32.xlu0 %v700, 96
    %v703 = vpop.permute.xlu0 %702
    %v704 = vsel %vm598, %v703, 0
    %706 = vmatprep.subr.mxu0 0.0
    %707 = vmatpush1.msra.mxu0 %v579
    %708 = vmatprep.subr.mxu0 0.0
    %709 = vmatpush1.msra.mxu0 %v580
    %710 = vmatprep.subr.mxu0 0.0
    %711 = vmatpush1.msra.mxu0 %v581
    %712 = vmatprep.subr.mxu0 0.0
    %713 = vmatpush1.msra.mxu0 %v582
    %714 = vmatprep.subr.mxu0 0.0
    %715 = vmatpush1.msra.mxu0 0.0
    %716 = vmatprep.subr.mxu0 0.0
    %717 = vmatpush1.msra.mxu0 0.0
    %718 = vmatprep.subr.mxu0 0.0
    %719 = vmatpush1.msra.mxu0 0.0
    %720 = vmatprep.subr.mxu0 0.0
    %721 = vmatpush1.msra.mxu0 0.0
    %722 = vmatprep.subr.mxu0 0.0
    %723 = vmatpush1.msra.mxu0 0.0
    %724 = vmatprep.subr.mxu0 0.0
    %725 = vmatpush1.msra.mxu0 0.0
    %726 = vmatprep.subr.mxu0 0.0
    %727 = vmatpush1.msra.mxu0 0.0
    %728 = vmatprep.subr.mxu0 0.0
    %729 = vmatpush1.msra.mxu0 0.0
    %730 = vmatprep.subr.mxu0 0.0
    %731 = vmatpush1.msra.mxu0 0.0
    %732 = vmatprep.subr.mxu0 0.0
    %733 = vmatpush1.msra.mxu0 0.0
    %734 = vmatprep.subr.mxu0 0.0
    %735 = vmatpush1.msra.mxu0 0.0
    %736 = vmatprep.subr.mxu0 0.0
    %737 = vmatpush1.msra.mxu0 0.0
    %738 = vmatprep.subr.mxu0 0.0
    %739 = vmatpush1.msra.mxu0 0.0
    %740 = vmatprep.subr.mxu0 0.0
    %741 = vmatpush1.msra.mxu0 0.0
    %742 = vmatprep.subr.mxu0 0.0
    %743 = vmatpush1.msra.mxu0 0.0
    %744 = vmatprep.subr.mxu0 0.0
    %745 = vmatpush1.msra.mxu0 0.0
    %746 = vmatprep.subr.mxu0 0.0
    %747 = vmatpush1.msra.mxu0 0.0
    %748 = vmatprep.subr.mxu0 0.0
    %749 = vmatpush1.msra.mxu0 0.0
    %750 = vmatprep.subr.mxu0 0.0
    %751 = vmatpush1.msra.mxu0 0.0
    %752 = vmatprep.subr.mxu0 0.0
    %753 = vmatpush1.msra.mxu0 0.0
    %754 = vmatprep.subr.mxu0 0.0
    %755 = vmatpush1.msra.mxu0 0.0
    %756 = vmatprep.subr.mxu0 0.0
    %757 = vmatpush1.msra.mxu0 0.0
    %758 = vmatprep.subr.mxu0 0.0
    %759 = vmatpush1.msra.mxu0 0.0
    %760 = vmatprep.subr.mxu0 0.0
    %761 = vmatpush1.msra.mxu0 0.0
    %762 = vmatprep.subr.mxu0 0.0
    %763 = vmatpush1.msra.mxu0 0.0
    %764 = vmatprep.subr.mxu0 0.0
    %765 = vmatpush1.msra.mxu0 0.0
    %766 = vmatprep.subr.mxu0 0.0
    %767 = vmatpush1.msra.mxu0 0.0
    %768 = vmatprep.subr.mxu0 0.0
    %769 = vmatpush1.msra.mxu0 0.0
    %770 = vmatprep.mubr.f32.mxu0 0.0
    %771 = vmatmul.mubr.f32.gmra.mrb[0].mxu0 %v704
    %v772 = vpop.f32.mrb[0].mxu0
    %v773 = vadd.f32 0.0, %v772
    %v774 = vpop.f32.mrb[0].mxu0
    %775 = vdwg.mxu0
    %v777 = vrot.slane %v773, 6
    %v779 = vadd.f32 %v577, %v777
    %v780 = vxor.u32 %v779, 2147483648
    %v781 = vmul.f32 %v780, 1.442695
    %v782 = vpow.pop %v781
    %v783 = vadd.f32 %v782, 1.0
    %v784 = vrcp.pop %v783
    %v785 = vmul.f32 1.0, %v784
    %787 = vrot.lane.b32.xlu0 %v779, 32
    %v788 = vpop.permute.xlu0 %787
    %v790 = vmul.f32 %v785, %v788
    %792 = vrot.lane.b32.xlu0 %v790, 64
    %v793 = vpop.permute.xlu0 %792
    %v795 = vadd.f32 %v779, %v793
    %v796 = vtanh.pop %v795
    %v797 = vsub.f32 1.0, %v785
    %799 = vrot.lane.b32.xlu0 %v796, 96
    %v800 = vpop.permute.xlu0 %799
    %v802 = vmul.f32 %v797, %v800
    %v803 = vrot.slane %v700, 6
    %v805 = vmul.f32 %v785, %v803
    %v806 = vadd.f32 %v802, %v805
    %809 = vrot.lane.b32.xlu0 %v597, 32
    %v810 = vpop.permute.xlu0 %809
    %v812 = vsel %vm598, %v703, %v810
    %v814 = vsel %vm409, %v812, 0
    %816 = vmatprep.subr.mxu0 0.0
    %817 = vmatpush1.msra.mxu0 %v583
    %818 = vmatprep.subr.mxu0 0.0
    %819 = vmatpush1.msra.mxu0 %v584
    %820 = vmatprep.subr.mxu0 0.0
    %821 = vmatpush1.msra.mxu0 %v585
    %822 = vmatprep.subr.mxu0 0.0
    %823 = vmatpush1.msra.mxu0 %v586
    %824 = vmatprep.subr.mxu0 0.0
    %825 = vmatpush1.msra.mxu0 %v587
    %826 = vmatprep.subr.mxu0 0.0
    %827 = vmatpush1.msra.mxu0 %v588
    %828 = vmatprep.subr.mxu0 0.0
    %829 = vmatpush1.msra.mxu0 %v589
    %830 = vmatprep.subr.mxu0 0.0
    %831 = vmatpush1.msra.mxu0 %v590
    %832 = vmatprep.subr.mxu0 0.0
    %833 = vmatpush1.msra.mxu0 0.0
    %834 = vmatprep.subr.mxu0 0.0
    %835 = vmatpush1.msra.mxu0 0.0
    %836 = vmatprep.subr.mxu0 0.0
    %837 = vmatpush1.msra.mxu0 0.0
    %838 = vmatprep.subr.mxu0 0.0
    %839 = vmatpush1.msra.mxu0 0.0
    %840 = vmatprep.subr.mxu0 0.0
    %841 = vmatpush1.msra.mxu0 0.0
    %842 = vmatprep.subr.mxu0 0.0
    %843 = vmatpush1.msra.mxu0 0.0
    %844 = vmatprep.subr.mxu0 0.0
    %845 = vmatpush1.msra.mxu0 0.0
    %846 = vmatprep.subr.mxu0 0.0
    %847 = vmatpush1.msra.mxu0 0.0
    %848 = vmatprep.subr.mxu0 0.0
    %849 = vmatpush1.msra.mxu0 0.0
    %850 = vmatprep.subr.mxu0 0.0
    %851 = vmatpush1.msra.mxu0 0.0
    %852 = vmatprep.subr.mxu0 0.0
    %853 = vmatpush1.msra.mxu0 0.0
    %854 = vmatprep.subr.mxu0 0.0
    %855 = vmatpush1.msra.mxu0 0.0
    %856 = vmatprep.subr.mxu0 0.0
    %857 = vmatpush1.msra.mxu0 0.0
    %858 = vmatprep.subr.mxu0 0.0
    %859 = vmatpush1.msra.mxu0 0.0
    %860 = vmatprep.subr.mxu0 0.0
    %861 = vmatpush1.msra.mxu0 0.0
    %862 = vmatprep.subr.mxu0 0.0
    %863 = vmatpush1.msra.mxu0 0.0
    %864 = vmatprep.subr.mxu0 0.0
    %865 = vmatpush1.msra.mxu0 0.0
    %866 = vmatprep.subr.mxu0 0.0
    %867 = vmatpush1.msra.mxu0 0.0
    %868 = vmatprep.subr.mxu0 0.0
    %869 = vmatpush1.msra.mxu0 0.0
    %870 = vmatprep.subr.mxu0 0.0
    %871 = vmatpush1.msra.mxu0 0.0
    %872 = vmatprep.subr.mxu0 0.0
    %873 = vmatpush1.msra.mxu0 0.0
    %874 = vmatprep.subr.mxu0 0.0
    %875 = vmatpush1.msra.mxu0 0.0
    %876 = vmatprep.subr.mxu0 0.0
    %877 = vmatpush1.msra.mxu0 0.0
    %878 = vmatprep.subr.mxu0 0.0
    %879 = vmatpush1.msra.mxu0 0.0
    %880 = vmatprep.mubr.f32.mxu0 0.0
    %881 = vmatmul.mubr.f32.gmra.mrb[0].mxu0 %v814
    %v882 = vpop.f32.mrb[0].mxu0
    %v883 = vadd.f32 %v595, %v882
    %v884 = vpop.f32.mrb[0].mxu0
    %885 = vdwg.mxu0
    %v886 = vxor.u32 %v883, 2147483648
    %v887 = vmul.f32 %v886, 1.442695
    %v888 = vpow.pop %v887
    %v889 = vadd.f32 %v888, 1.0
    %v890 = vrcp.pop %v889
    %v891 = vmul.f32 1.0, %v890
    %893 = vrot.lane.b32.xlu0 %v883, 32
    %v894 = vpop.permute.xlu0 %893
    %v896 = vmul.f32 %v891, %v894
    %898 = vrot.lane.b32.xlu0 %v896, 64
    %v899 = vpop.permute.xlu0 %898
    %v901 = vadd.f32 %v883, %v899
    %v902 = vtanh.pop %v901
    %v903 = vsub.f32 1.0, %v891
    %905 = vrot.lane.b32.xlu0 %v902, 96
    %v906 = vpop.permute.xlu0 %905
    %v908 = vmul.f32 %v903, %v906
    %v909 = vmul.f32 %v891, %v810
    %v910 = vadd.f32 %v908, %v909
    %v912 = vrot.slane %v806, 2
    %913 = vrot.lane.b32.xlu0 %v912, 96
    %v914 = vpop.permute.xlu0 %913
    %v915 = vsel %vm598, %v914, 0
    %917 = vmatprep.subr.mxu0 0.0
    %918 = vmatpush1.msra.mxu0 %v579
    %919 = vmatprep.subr.mxu0 0.0
    %920 = vmatpush1.msra.mxu0 %v580
    %921 = vmatprep.subr.mxu0 0.0
    %922 = vmatpush1.msra.mxu0 %v581
    %923 = vmatprep.subr.mxu0 0.0
    %924 = vmatpush1.msra.mxu0 %v582
    %925 = vmatprep.subr.mxu0 0.0
    %926 = vmatpush1.msra.mxu0 0.0
    %927 = vmatprep.subr.mxu0 0.0
    %928 = vmatpush1.msra.mxu0 0.0
    %929 = vmatprep.subr.mxu0 0.0
    %930 = vmatpush1.msra.mxu0 0.0
    %931 = vmatprep.subr.mxu0 0.0
    %932 = vmatpush1.msra.mxu0 0.0
    %933 = vmatprep.subr.mxu0 0.0
    %934 = vmatpush1.msra.mxu0 0.0
    %935 = vmatprep.subr.mxu0 0.0
    %936 = vmatpush1.msra.mxu0 0.0
    %937 = vmatprep.subr.mxu0 0.0
    %938 = vmatpush1.msra.mxu0 0.0
    %939 = vmatprep.subr.mxu0 0.0
    %940 = vmatpush1.msra.mxu0 0.0
    %941 = vmatprep.subr.mxu0 0.0
    %942 = vmatpush1.msra.mxu0 0.0
    %943 = vmatprep.subr.mxu0 0.0
    %944 = vmatpush1.msra.mxu0 0.0
    %945 = vmatprep.subr.mxu0 0.0
    %946 = vmatpush1.msra.mxu0 0.0
    %947 = vmatprep.subr.mxu0 0.0
    %948 = vmatpush1.msra.mxu0 0.0
    %949 = vmatprep.subr.mxu0 0.0
    %950 = vmatpush1.msra.mxu0 0.0
    %951 = vmatprep.subr.mxu0 0.0
    %952 = vmatpush1.msra.mxu0 0.0
    %953 = vmatprep.subr.mxu0 0.0
    %954 = vmatpush1.msra.mxu0 0.0
    %955 = vmatprep.subr.mxu0 0.0
    %956 = vmatpush1.msra.mxu0 0.0
    %957 = vmatprep.subr.mxu0 0.0
    %958 = vmatpush1.msra.mxu0 0.0
    %959 = vmatprep.subr.mxu0 0.0
    %960 = vmatpush1.msra.mxu0 0.0
    %961 = vmatprep.subr.mxu0 0.0
    %962 = vmatpush1.msra.mxu0 0.0
    %963 = vmatprep.subr.mxu0 0.0
    %964 = vmatpush1.msra.mxu0 0.0
    %965 = vmatprep.subr.mxu0 0.0
    %966 = vmatpush1.msra.mxu0 0.0
    %967 = vmatprep.subr.mxu0 0.0
    %968 = vmatpush1.msra.mxu0 0.0
    %969 = vmatprep.subr.mxu0 0.0
    %970 = vmatpush1.msra.mxu0 0.0
    %971 = vmatprep.subr.mxu0 0.0
    %972 = vmatpush1.msra.mxu0 0.0
    %973 = vmatprep.subr.mxu0 0.0
    %974 = vmatpush1.msra.mxu0 0.0
    %975 = vmatprep.subr.mxu0 0.0
    %976 = vmatpush1.msra.mxu0 0.0
    %977 = vmatprep.subr.mxu0 0.0
    %978 = vmatpush1.msra.mxu0 0.0
    %979 = vmatprep.subr.mxu0 0.0
    %980 = vmatpush1.msra.mxu0 0.0
    %981 = vmatprep.mubr.f32.mxu0 0.0
    %982 = vmatmul.mubr.f32.gmra.mrb[0].mxu0 %v915
    %v983 = vpop.f32.mrb[0].mxu0
    %v984 = vadd.f32 0.0, %v983
    %v985 = vpop.f32.mrb[0].mxu0
    %986 = vdwg.mxu0
    %v988 = vrot.slane %v984, 4
    %v990 = vadd.f32 %v577, %v988
    %v991 = vxor.u32 %v990, 2147483648
    %v992 = vmul.f32 %v991, 1.442695
    %v993 = vpow.pop %v992
    %v994 = vadd.f32 %v993, 1.0
    %v995 = vrcp.pop %v994
    %v996 = vmul.f32 1.0, %v995
    %998 = vrot.lane.b32.xlu0 %v990, 32
    %v999 = vpop.permute.xlu0 %998
    %v1001 = vmul.f32 %v996, %v999
    %1003 = vrot.lane.b32.xlu0 %v1001, 64
    %v1004 = vpop.permute.xlu0 %1003
    %v1006 = vadd.f32 %v990, %v1004
    %v1007 = vtanh.pop %v1006
    %v1008 = vsub.f32 1.0, %v996
    %1010 = vrot.lane.b32.xlu0 %v1007, 96
    %v1011 = vpop.permute.xlu0 %1010
    %v1013 = vmul.f32 %v1008, %v1011
    %v1014 = vrot.slane %v806, 6
    %v1016 = vmul.f32 %v996, %v1014
    %v1017 = vadd.f32 %v1013, %v1016
    %1018 = vrot.lane.b32.xlu0 %v806, 96
    %v1019 = vpop.permute.xlu0 %1018
    %v1022 = vrot.slane %v910, 6
    %v1024 = vsel %vm598, %v1019, %v1022
    %v1026 = vrot.slane %v1024, 2
    %v1027 = vsel %vm409, %v1026, 0
    %1029 = vmatprep.subr.mxu0 0.0
    %1030 = vmatpush1.msra.mxu0 %v583
    %1031 = vmatprep.subr.mxu0 0.0
    %1032 = vmatpush1.msra.mxu0 %v584
    %1033 = vmatprep.subr.mxu0 0.0
    %1034 = vmatpush1.msra.mxu0 %v585
    %1035 = vmatprep.subr.mxu0 0.0
    %1036 = vmatpush1.msra.mxu0 %v586
    %1037 = vmatprep.subr.mxu0 0.0
    %1038 = vmatpush1.msra.mxu0 %v587
    %1039 = vmatprep.subr.mxu0 0.0
    %1040 = vmatpush1.msra.mxu0 %v588
    %1041 = vmatprep.subr.mxu0 0.0
    %1042 = vmatpush1.msra.mxu0 %v589
    %1043 = vmatprep.subr.mxu0 0.0
    %1044 = vmatpush1.msra.mxu0 %v590
    %1045 = vmatprep.subr.mxu0 0.0
    %1046 = vmatpush1.msra.mxu0 0.0
    %1047 = vmatprep.subr.mxu0 0.0
    %1048 = vmatpush1.msra.mxu0 0.0
    %1049 = vmatprep.subr.mxu0 0.0
    %1050 = vmatpush1.msra.mxu0 0.0
    %1051 = vmatprep.subr.mxu0 0.0
    %1052 = vmatpush1.msra.mxu0 0.0
    %1053 = vmatprep.subr.mxu0 0.0
    %1054 = vmatpush1.msra.mxu0 0.0
    %1055 = vmatprep.subr.mxu0 0.0
    %1056 = vmatpush1.msra.mxu0 0.0
    %1057 = vmatprep.subr.mxu0 0.0
    %1058 = vmatpush1.msra.mxu0 0.0
    %1059 = vmatprep.subr.mxu0 0.0
    %1060 = vmatpush1.msra.mxu0 0.0
    %1061 = vmatprep.subr.mxu0 0.0
    %1062 = vmatpush1.msra.mxu0 0.0
    %1063 = vmatprep.subr.mxu0 0.0
    %1064 = vmatpush1.msra.mxu0 0.0
    %1065 = vmatprep.subr.mxu0 0.0
    %1066 = vmatpush1.msra.mxu0 0.0
    %1067 = vmatprep.subr.mxu0 0.0
    %1068 = vmatpush1.msra.mxu0 0.0
    %1069 = vmatprep.subr.mxu0 0.0
    %1070 = vmatpush1.msra.mxu0 0.0
    %1071 = vmatprep.subr.mxu0 0.0
    %1072 = vmatpush1.msra.mxu0 0.0
    %1073 = vmatprep.subr.mxu0 0.0
    %1074 = vmatpush1.msra.mxu0 0.0
    %1075 = vmatprep.subr.mxu0 0.0
    %1076 = vmatpush1.msra.mxu0 0.0
    %1077 = vmatprep.subr.mxu0 0.0
    %1078 = vmatpush1.msra.mxu0 0.0
    %1079 = vmatprep.subr.mxu0 0.0
    %1080 = vmatpush1.msra.mxu0 0.0
    %1081 = vmatprep.subr.mxu0 0.0
    %1082 = vmatpush1.msra.mxu0 0.0
    %1083 = vmatprep.subr.mxu0 0.0
    %1084 = vmatpush1.msra.mxu0 0.0
    %1085 = vmatprep.subr.mxu0 0.0
    %1086 = vmatpush1.msra.mxu0 0.0
    %1087 = vmatprep.subr.mxu0 0.0
    %1088 = vmatpush1.msra.mxu0 0.0
    %1089 = vmatprep.subr.mxu0 0.0
    %1090 = vmatpush1.msra.mxu0 0.0
    %1091 = vmatprep.subr.mxu0 0.0
    %1092 = vmatpush1.msra.mxu0 0.0
    %1093 = vmatprep.mubr.f32.mxu0 0.0
    %1094 = vmatmul.mubr.f32.gmra.mrb[0].mxu0 %v1027
    %v1095 = vpop.f32.mrb[0].mxu0
    %v1096 = vadd.f32 %v595, %v1095
    %v1097 = vpop.f32.mrb[0].mxu0
    %1098 = vdwg.mxu0
    %v1099 = vxor.u32 %v1096, 2147483648
    %v1100 = vmul.f32 %v1099, 1.442695
    %v1101 = vpow.pop %v1100
    %v1102 = vadd.f32 %v1101, 1.0
    %v1103 = vrcp.pop %v1102
    %v1104 = vmul.f32 1.0, %v1103
    %1106 = vrot.lane.b32.xlu0 %v1096, 32
    %v1107 = vpop.permute.xlu0 %1106
    %v1109 = vmul.f32 %v1104, %v1107
    %1111 = vrot.lane.b32.xlu0 %v1109, 64
    %v1112 = vpop.permute.xlu0 %1111
    %v1114 = vadd.f32 %v1096, %v1112
    %v1115 = vtanh.pop %v1114
    %v1116 = vsub.f32 1.0, %v1104
    %1118 = vrot.lane.b32.xlu0 %v1115, 96
    %v1119 = vpop.permute.xlu0 %1118
    %v1121 = vmul.f32 %v1116, %v1119
    %v1122 = vmul.f32 %v1104, %v910
    %v1123 = vadd.f32 %v1121, %v1122
    %v1125 = vrot.slane %v1017, 4
    %1126 = vrot.lane.b32.xlu0 %v1125, 96
    %v1127 = vpop.permute.xlu0 %1126
    %v1128 = vsel %vm598, %v1127, 0
    %1130 = vmatprep.subr.mxu0 0.0
    %1131 = vmatpush1.msra.mxu0 %v579
    %1132 = vmatprep.subr.mxu0 0.0
    %1133 = vmatpush1.msra.mxu0 %v580
    %1134 = vmatprep.subr.mxu0 0.0
    %1135 = vmatpush1.msra.mxu0 %v581
    %1136 = vmatprep.subr.mxu0 0.0
    %1137 = vmatpush1.msra.mxu0 %v582
    %1138 = vmatprep.subr.mxu0 0.0
    %1139 = vmatpush1.msra.mxu0 0.0
    %1140 = vmatprep.subr.mxu0 0.0
    %1141 = vmatpush1.msra.mxu0 0.0
    %1142 = vmatprep.subr.mxu0 0.0
    %1143 = vmatpush1.msra.mxu0 0.0
    %1144 = vmatprep.subr.mxu0 0.0
    %1145 = vmatpush1.msra.mxu0 0.0
    %1146 = vmatprep.subr.mxu0 0.0
    %1147 = vmatpush1.msra.mxu0 0.0
    %1148 = vmatprep.subr.mxu0 0.0
    %1149 = vmatpush1.msra.mxu0 0.0
    %1150 = vmatprep.subr.mxu0 0.0
    %1151 = vmatpush1.msra.mxu0 0.0
    %1152 = vmatprep.subr.mxu0 0.0
    %1153 = vmatpush1.msra.mxu0 0.0
    %1154 = vmatprep.subr.mxu0 0.0
    %1155 = vmatpush1.msra.mxu0 0.0
    %1156 = vmatprep.subr.mxu0 0.0
    %1157 = vmatpush1.msra.mxu0 0.0
    %1158 = vmatprep.subr.mxu0 0.0
    %1159 = vmatpush1.msra.mxu0 0.0
    %1160 = vmatprep.subr.mxu0 0.0
    %1161 = vmatpush1.msra.mxu0 0.0
    %1162 = vmatprep.subr.mxu0 0.0
    %1163 = vmatpush1.msra.mxu0 0.0
    %1164 = vmatprep.subr.mxu0 0.0
    %1165 = vmatpush1.msra.mxu0 0.0
    %1166 = vmatprep.subr.mxu0 0.0
    %1167 = vmatpush1.msra.mxu0 0.0
    %1168 = vmatprep.subr.mxu0 0.0
    %1169 = vmatpush1.msra.mxu0 0.0
    %1170 = vmatprep.subr.mxu0 0.0
    %1171 = vmatpush1.msra.mxu0 0.0
    %1172 = vmatprep.subr.mxu0 0.0
    %1173 = vmatpush1.msra.mxu0 0.0
    %1174 = vmatprep.subr.mxu0 0.0
    %1175 = vmatpush1.msra.mxu0 0.0
    %1176 = vmatprep.subr.mxu0 0.0
    %1177 = vmatpush1.msra.mxu0 0.0
    %1178 = vmatprep.subr.mxu0 0.0
    %1179 = vmatpush1.msra.mxu0 0.0
    %1180 = vmatprep.subr.mxu0 0.0
    %1181 = vmatpush1.msra.mxu0 0.0
    %1182 = vmatprep.subr.mxu0 0.0
    %1183 = vmatpush1.msra.mxu0 0.0
    %1184 = vmatprep.subr.mxu0 0.0
    %1185 = vmatpush1.msra.mxu0 0.0
    %1186 = vmatprep.subr.mxu0 0.0
    %1187 = vmatpush1.msra.mxu0 0.0
    %1188 = vmatprep.subr.mxu0 0.0
    %1189 = vmatpush1.msra.mxu0 0.0
    %1190 = vmatprep.subr.mxu0 0.0
    %1191 = vmatpush1.msra.mxu0 0.0
    %1192 = vmatprep.subr.mxu0 0.0
    %1193 = vmatpush1.msra.mxu0 0.0
    %1194 = vmatprep.mubr.f32.mxu0 0.0
    %1195 = vmatmul.mubr.f32.gmra.mrb[0].mxu0 %v1128
    %v1196 = vpop.f32.mrb[0].mxu0
    %v1197 = vadd.f32 0.0, %v1196
    %v1198 = vpop.f32.mrb[0].mxu0
    %1199 = vdwg.mxu0
    %v1201 = vrot.slane %v1197, 2
    %v1203 = vadd.f32 %v577, %v1201
    %v1204 = vxor.u32 %v1203, 2147483648
    %v1205 = vmul.f32 %v1204, 1.442695
    %v1206 = vpow.pop %v1205
    %v1207 = vadd.f32 %v1206, 1.0
    %v1208 = vrcp.pop %v1207
    %v1209 = vmul.f32 1.0, %v1208
    %1211 = vrot.lane.b32.xlu0 %v1203, 32
    %v1212 = vpop.permute.xlu0 %1211
    %v1214 = vmul.f32 %v1209, %v1212
    %1216 = vrot.lane.b32.xlu0 %v1214, 64
    %v1217 = vpop.permute.xlu0 %1216
    %v1219 = vadd.f32 %v1203, %v1217
    %v1220 = vtanh.pop %v1219
    %v1221 = vsub.f32 1.0, %v1209
    %1223 = vrot.lane.b32.xlu0 %v1220, 96
    %v1224 = vpop.permute.xlu0 %1223
    %v1226 = vmul.f32 %v1221, %v1224
    %v1227 = vrot.slane %v1017, 6
    %v1229 = vmul.f32 %v1209, %v1227
    %v1230 = vadd.f32 %v1226, %v1229
    %1231 = vrot.lane.b32.xlu0 %v1017, 96
    %v1232 = vpop.permute.xlu0 %1231
    %v1235 = vrot.slane %v1123, 4
    %v1237 = vsel %vm598, %v1232, %v1235
    %v1239 = vrot.slane %v1237, 4
    %v1240 = vsel %vm409, %v1239, 0
    %1242 = vmatprep.subr.mxu0 0.0
    %1243 = vmatpush1.msra.mxu0 %v583
    %1244 = vmatprep.subr.mxu0 0.0
    %1245 = vmatpush1.msra.mxu0 %v584
    %1246 = vmatprep.subr.mxu0 0.0
    %1247 = vmatpush1.msra.mxu0 %v585
    %1248 = vmatprep.subr.mxu0 0.0
    %1249 = vmatpush1.msra.mxu0 %v586
    %1250 = vmatprep.subr.mxu0 0.0
    %1251 = vmatpush1.msra.mxu0 %v587
    %1252 = vmatprep.subr.mxu0 0.0
    %1253 = vmatpush1.msra.mxu0 %v588
    %1254 = vmatprep.subr.mxu0 0.0
    %1255 = vmatpush1.msra.mxu0 %v589
    %1256 = vmatprep.subr.mxu0 0.0
    %1257 = vmatpush1.msra.mxu0 %v590
    %1258 = vmatprep.subr.mxu0 0.0
    %1259 = vmatpush1.msra.mxu0 0.0
    %1260 = vmatprep.subr.mxu0 0.0
    %1261 = vmatpush1.msra.mxu0 0.0
    %1262 = vmatprep.subr.mxu0 0.0
    %1263 = vmatpush1.msra.mxu0 0.0
    %1264 = vmatprep.subr.mxu0 0.0
    %1265 = vmatpush1.msra.mxu0 0.0
    %1266 = vmatprep.subr.mxu0 0.0
    %1267 = vmatpush1.msra.mxu0 0.0
    %1268 = vmatprep.subr.mxu0 0.0
    %1269 = vmatpush1.msra.mxu0 0.0
    %1270 = vmatprep.subr.mxu0 0.0
    %1271 = vmatpush1.msra.mxu0 0.0
    %1272 = vmatprep.subr.mxu0 0.0
    %1273 = vmatpush1.msra.mxu0 0.0
    %1274 = vmatprep.subr.mxu0 0.0
    %1275 = vmatpush1.msra.mxu0 0.0
    %1276 = vmatprep.subr.mxu0 0.0
    %1277 = vmatpush1.msra.mxu0 0.0
    %1278 = vmatprep.subr.mxu0 0.0
    %1279 = vmatpush1.msra.mxu0 0.0
    %1280 = vmatprep.subr.mxu0 0.0
    %1281 = vmatpush1.msra.mxu0 0.0
    %1282 = vmatprep.subr.mxu0 0.0
    %1283 = vmatpush1.msra.mxu0 0.0
    %1284 = vmatprep.subr.mxu0 0.0
    %1285 = vmatpush1.msra.mxu0 0.0
    %1286 = vmatprep.subr.mxu0 0.0
    %1287 = vmatpush1.msra.mxu0 0.0
    %1288 = vmatprep.subr.mxu0 0.0
    %1289 = vmatpush1.msra.mxu0 0.0
    %1290 = vmatprep.subr.mxu0 0.0
    %1291 = vmatpush1.msra.mxu0 0.0
    %1292 = vmatprep.subr.mxu0 0.0
    %1293 = vmatpush1.msra.mxu0 0.0
    %1294 = vmatprep.subr.mxu0 0.0
    %1295 = vmatpush1.msra.mxu0 0.0
    %1296 = vmatprep.subr.mxu0 0.0
    %1297 = vmatpush1.msra.mxu0 0.0
    %1298 = vmatprep.subr.mxu0 0.0
    %1299 = vmatpush1.msra.mxu0 0.0
    %1300 = vmatprep.subr.mxu0 0.0
    %1301 = vmatpush1.msra.mxu0 0.0
    %1302 = vmatprep.subr.mxu0 0.0
    %1303 = vmatpush1.msra.mxu0 0.0
    %1304 = vmatprep.subr.mxu0 0.0
    %1305 = vmatpush1.msra.mxu0 0.0
    %1306 = vmatprep.mubr.f32.mxu0 0.0
    %1307 = vmatmul.mubr.f32.gmra.mrb[0].mxu0 %v1240
    %v1308 = vpop.f32.mrb[0].mxu0
    %v1309 = vadd.f32 %v595, %v1308
    %v1310 = vpop.f32.mrb[0].mxu0
    %1311 = vdwg.mxu0
    %v1312 = vxor.u32 %v1309, 2147483648
    %v1313 = vmul.f32 %v1312, 1.442695
    %v1314 = vpow.pop %v1313
    %v1315 = vadd.f32 %v1314, 1.0
    %v1316 = vrcp.pop %v1315
    %v1317 = vmul.f32 1.0, %v1316
    %1319 = vrot.lane.b32.xlu0 %v1309, 32
    %v1320 = vpop.permute.xlu0 %1319
    %v1322 = vmul.f32 %v1317, %v1320
    %1324 = vrot.lane.b32.xlu0 %v1322, 64
    %v1325 = vpop.permute.xlu0 %1324
    %v1327 = vadd.f32 %v1309, %v1325
    %v1328 = vtanh.pop %v1327
    %v1329 = vsub.f32 1.0, %v1317
    %1331 = vrot.lane.b32.xlu0 %v1328, 96
    %v1332 = vpop.permute.xlu0 %1331
    %v1334 = vmul.f32 %v1329, %v1332
    %v1335 = vmul.f32 %v1317, %v1123
    %v1336 = vadd.f32 %v1334, %v1335
    %v1338 = vrot.slane %v1230, 6
    %1339 = vrot.lane.b32.xlu0 %v1338, 96
    %v1340 = vpop.permute.xlu0 %1339
    %v1341 = vsel %vm598, %v1340, 0
    %1343 = vmatprep.subr.mxu0 0.0
    %1344 = vmatpush1.msra.mxu0 %v579
    %1345 = vmatprep.subr.mxu0 0.0
    %1346 = vmatpush1.msra.mxu0 %v580
    %1347 = vmatprep.subr.mxu0 0.0
    %1348 = vmatpush1.msra.mxu0 %v581
    %1349 = vmatprep.subr.mxu0 0.0
    %1350 = vmatpush1.msra.mxu0 %v582
    %1351 = vmatprep.subr.mxu0 0.0
    %1352 = vmatpush1.msra.mxu0 0.0
    %1353 = vmatprep.subr.mxu0 0.0
    %1354 = vmatpush1.msra.mxu0 0.0
    %1355 = vmatprep.subr.mxu0 0.0
    %1356 = vmatpush1.msra.mxu0 0.0
    %1357 = vmatprep.subr.mxu0 0.0
    %1358 = vmatpush1.msra.mxu0 0.0
    %1359 = vmatprep.subr.mxu0 0.0
    %1360 = vmatpush1.msra.mxu0 0.0
    %1361 = vmatprep.subr.mxu0 0.0
    %1362 = vmatpush1.msra.mxu0 0.0
    %1363 = vmatprep.subr.mxu0 0.0
    %1364 = vmatpush1.msra.mxu0 0.0
    %1365 = vmatprep.subr.mxu0 0.0
    %1366 = vmatpush1.msra.mxu0 0.0
    %1367 = vmatprep.subr.mxu0 0.0
    %1368 = vmatpush1.msra.mxu0 0.0
    %1369 = vmatprep.subr.mxu0 0.0
    %1370 = vmatpush1.msra.mxu0 0.0
    %1371 = vmatprep.subr.mxu0 0.0
    %1372 = vmatpush1.msra.mxu0 0.0
    %1373 = vmatprep.subr.mxu0 0.0
    %1374 = vmatpush1.msra.mxu0 0.0
    %1375 = vmatprep.subr.mxu0 0.0
    %1376 = vmatpush1.msra.mxu0 0.0
    %1377 = vmatprep.subr.mxu0 0.0
    %1378 = vmatpush1.msra.mxu0 0.0
    %1379 = vmatprep.subr.mxu0 0.0
    %1380 = vmatpush1.msra.mxu0 0.0
    %1381 = vmatprep.subr.mxu0 0.0
    %1382 = vmatpush1.msra.mxu0 0.0
    %1383 = vmatprep.subr.mxu0 0.0
    %1384 = vmatpush1.msra.mxu0 0.0
    %1385 = vmatprep.subr.mxu0 0.0
    %1386 = vmatpush1.msra.mxu0 0.0
    %1387 = vmatprep.subr.mxu0 0.0
    %1388 = vmatpush1.msra.mxu0 0.0
    %1389 = vmatprep.subr.mxu0 0.0
    %1390 = vmatpush1.msra.mxu0 0.0
    %1391 = vmatprep.subr.mxu0 0.0
    %1392 = vmatpush1.msra.mxu0 0.0
    %1393 = vmatprep.subr.mxu0 0.0
    %1394 = vmatpush1.msra.mxu0 0.0
    %1395 = vmatprep.subr.mxu0 0.0
    %1396 = vmatpush1.msra.mxu0 0.0
    %1397 = vmatprep.subr.mxu0 0.0
    %1398 = vmatpush1.msra.mxu0 0.0
    %1399 = vmatprep.subr.mxu0 0.0
    %1400 = vmatpush1.msra.mxu0 0.0
    %1401 = vmatprep.subr.mxu0 0.0
    %1402 = vmatpush1.msra.mxu0 0.0
    %1403 = vmatprep.subr.mxu0 0.0
    %1404 = vmatpush1.msra.mxu0 0.0
    %1405 = vmatprep.subr.mxu0 0.0
    %1406 = vmatpush1.msra.mxu0 0.0
    %1407 = vmatprep.mubr.f32.mxu0 0.0
    %1408 = vmatmul.mubr.f32.gmra.mrb[0].mxu0 %v1341
    %v1409 = vpop.f32.mrb[0].mxu0
    %v1410 = vadd.f32 0.0, %v1409
    %v1411 = vpop.f32.mrb[0].mxu0
    %1412 = vdwg.mxu0
    %v1413 = vadd.f32 %v578, %v1410
    %v1414 = vxor.u32 %v1413, 2147483648
    %v1415 = vmul.f32 %v1414, 1.442695
    %v1416 = vpow.pop %v1415
    %v1417 = vadd.f32 %v1416, 1.0
    %v1418 = vrcp.pop %v1417
    %v1419 = vmul.f32 1.0, %v1418
    %1421 = vrot.lane.b32.xlu0 %v1413, 32
    %v1422 = vpop.permute.xlu0 %1421
    %v1424 = vmul.f32 %v1419, %v1422
    %1426 = vrot.lane.b32.xlu0 %v1424, 64
    %v1427 = vpop.permute.xlu0 %1426
    %v1429 = vadd.f32 %v1413, %v1427
    %v1430 = vtanh.pop %v1429
    %v1431 = vsub.f32 1.0, %v1419
    %1433 = vrot.lane.b32.xlu0 %v1430, 96
    %v1434 = vpop.permute.xlu0 %1433
    %v1436 = vmul.f32 %v1431, %v1434
    %v1438 = vmul.f32 %v1419, %v1338
    %v1439 = vadd.f32 %v1436, %v1438
    %1440 = vrot.lane.b32.xlu0 %v1230, 96
    %v1441 = vpop.permute.xlu0 %1440
    %v1444 = vrot.slane %v1336, 2
    %v1446 = vsel %vm598, %v1441, %v1444
    %v1448 = vrot.slane %v1446, 6
    %v1449 = vsel %vm409, %v1448, 0
    %1451 = vmatprep.subr.mxu0 0.0
    %1452 = vmatpush1.msra.mxu0 %v583
    %1453 = vmatprep.subr.mxu0 0.0
    %1454 = vmatpush1.msra.mxu0 %v584
    %1455 = vmatprep.subr.mxu0 0.0
    %1456 = vmatpush1.msra.mxu0 %v585
    %1457 = vmatprep.subr.mxu0 0.0
    %1458 = vmatpush1.msra.mxu0 %v586
    %1459 = vmatprep.subr.mxu0 0.0
    %1460 = vmatpush1.msra.mxu0 %v587
    %1461 = vmatprep.subr.mxu0 0.0
    %1462 = vmatpush1.msra.mxu0 %v588
    %1463 = vmatprep.subr.mxu0 0.0
    %1464 = vmatpush1.msra.mxu0 %v589
    %1465 = vmatprep.subr.mxu0 0.0
    %1466 = vmatpush1.msra.mxu0 %v590
    %1467 = vmatprep.subr.mxu0 0.0
    %1468 = vmatpush1.msra.mxu0 0.0
    %1469 = vmatprep.subr.mxu0 0.0
    %1470 = vmatpush1.msra.mxu0 0.0
    %1471 = vmatprep.subr.mxu0 0.0
    %1472 = vmatpush1.msra.mxu0 0.0
    %1473 = vmatprep.subr.mxu0 0.0
    %1474 = vmatpush1.msra.mxu0 0.0
    %1475 = vmatprep.subr.mxu0 0.0
    %1476 = vmatpush1.msra.mxu0 0.0
    %1477 = vmatprep.subr.mxu0 0.0
    %1478 = vmatpush1.msra.mxu0 0.0
    %1479 = vmatprep.subr.mxu0 0.0
    %1480 = vmatpush1.msra.mxu0 0.0
    %1481 = vmatprep.subr.mxu0 0.0
    %1482 = vmatpush1.msra.mxu0 0.0
    %1483 = vmatprep.subr.mxu0 0.0
    %1484 = vmatpush1.msra.mxu0 0.0
    %1485 = vmatprep.subr.mxu0 0.0
    %1486 = vmatpush1.msra.mxu0 0.0
    %1487 = vmatprep.subr.mxu0 0.0
    %1488 = vmatpush1.msra.mxu0 0.0
    %1489 = vmatprep.subr.mxu0 0.0
    %1490 = vmatpush1.msra.mxu0 0.0
    %1491 = vmatprep.subr.mxu0 0.0
    %1492 = vmatpush1.msra.mxu0 0.0
    %1493 = vmatprep.subr.mxu0 0.0
    %1494 = vmatpush1.msra.mxu0 0.0
    %1495 = vmatprep.subr.mxu0 0.0
    %1496 = vmatpush1.msra.mxu0 0.0
    %1497 = vmatprep.subr.mxu0 0.0
    %1498 = vmatpush1.msra.mxu0 0.0
    %1499 = vmatprep.subr.mxu0 0.0
    %1500 = vmatpush1.msra.mxu0 0.0
    %1501 = vmatprep.subr.mxu0 0.0
    %1502 = vmatpush1.msra.mxu0 0.0
    %1503 = vmatprep.subr.mxu0 0.0
    %1504 = vmatpush1.msra.mxu0 0.0
    %1505 = vmatprep.subr.mxu0 0.0
    %1506 = vmatpush1.msra.mxu0 0.0
    %1507 = vmatprep.subr.mxu0 0.0
    %1508 = vmatpush1.msra.mxu0 0.0
    %1509 = vmatprep.subr.mxu0 0.0
    %1510 = vmatpush1.msra.mxu0 0.0
    %1511 = vmatprep.subr.mxu0 0.0
    %1512 = vmatpush1.msra.mxu0 0.0
    %1513 = vmatprep.subr.mxu0 0.0
    %1514 = vmatpush1.msra.mxu0 0.0
    %1515 = vmatprep.mubr.f32.mxu0 0.0
    %1516 = vmatmul.mubr.f32.gmra.mrb[0].mxu0 %v1449
    %v1517 = vpop.f32.mrb[0].mxu0
    %v1518 = vadd.f32 %v595, %v1517
    %v1519 = vpop.f32.mrb[0].mxu0
    %1520 = vdwg.mxu0
    %v1521 = vxor.u32 %v1518, 2147483648
    %v1522 = vmul.f32 %v1521, 1.442695
    %v1523 = vpow.pop %v1522
    %v1524 = vadd.f32 %v1523, 1.0
    %v1525 = vrcp.pop %v1524
    %v1526 = vmul.f32 1.0, %v1525
    %1528 = vrot.lane.b32.xlu0 %v1518, 32
    %v1529 = vpop.permute.xlu0 %1528
    %v1531 = vmul.f32 %v1526, %v1529
    %1533 = vrot.lane.b32.xlu0 %v1531, 64
    %v1534 = vpop.permute.xlu0 %1533
    %v1536 = vadd.f32 %v1518, %v1534
    %v1537 = vtanh.pop %v1536
    %v1538 = vsub.f32 1.0, %v1526
    %1540 = vrot.lane.b32.xlu0 %v1537, 96
    %v1541 = vpop.permute.xlu0 %1540
    %v1543 = vmul.f32 %v1538, %v1541
    %v1544 = vmul.f32 %v1526, %v1336
    %v1545 = vadd.f32 %v1543, %v1544
    %1547 = vrot.lane.b32.xlu0 %v1439, 96
    %v1548 = vpop.permute.xlu0 %1547
    %v1549 = vsel %vm598, %v1548, 0
    %1551 = vmatprep.subr.mxu0 0.0
    %1552 = vmatpush1.msra.mxu0 %v579
    %1553 = vmatprep.subr.mxu0 0.0
    %1554 = vmatpush1.msra.mxu0 %v580
    %1555 = vmatprep.subr.mxu0 0.0
    %1556 = vmatpush1.msra.mxu0 %v581
    %1557 = vmatprep.subr.mxu0 0.0
    %1558 = vmatpush1.msra.mxu0 %v582
    %1559 = vmatprep.subr.mxu0 0.0
    %1560 = vmatpush1.msra.mxu0 0.0
    %1561 = vmatprep.subr.mxu0 0.0
    %1562 = vmatpush1.msra.mxu0 0.0
    %1563 = vmatprep.subr.mxu0 0.0
    %1564 = vmatpush1.msra.mxu0 0.0
    %1565 = vmatprep.subr.mxu0 0.0
    %1566 = vmatpush1.msra.mxu0 0.0
    %1567 = vmatprep.subr.mxu0 0.0
    %1568 = vmatpush1.msra.mxu0 0.0
    %1569 = vmatprep.subr.mxu0 0.0
    %1570 = vmatpush1.msra.mxu0 0.0
    %1571 = vmatprep.subr.mxu0 0.0
    %1572 = vmatpush1.msra.mxu0 0.0
    %1573 = vmatprep.subr.mxu0 0.0
    %1574 = vmatpush1.msra.mxu0 0.0
    %1575 = vmatprep.subr.mxu0 0.0
    %1576 = vmatpush1.msra.mxu0 0.0
    %1577 = vmatprep.subr.mxu0 0.0
    %1578 = vmatpush1.msra.mxu0 0.0
    %1579 = vmatprep.subr.mxu0 0.0
    %1580 = vmatpush1.msra.mxu0 0.0
    %1581 = vmatprep.subr.mxu0 0.0
    %1582 = vmatpush1.msra.mxu0 0.0
    %1583 = vmatprep.subr.mxu0 0.0
    %1584 = vmatpush1.msra.mxu0 0.0
    %1585 = vmatprep.subr.mxu0 0.0
    %1586 = vmatpush1.msra.mxu0 0.0
    %1587 = vmatprep.subr.mxu0 0.0
    %1588 = vmatpush1.msra.mxu0 0.0
    %1589 = vmatprep.subr.mxu0 0.0
    %1590 = vmatpush1.msra.mxu0 0.0
    %1591 = vmatprep.subr.mxu0 0.0
    %1592 = vmatpush1.msra.mxu0 0.0
    %1593 = vmatprep.subr.mxu0 0.0
    %1594 = vmatpush1.msra.mxu0 0.0
    %1595 = vmatprep.subr.mxu0 0.0
    %1596 = vmatpush1.msra.mxu0 0.0
    %1597 = vmatprep.subr.mxu0 0.0
    %1598 = vmatpush1.msra.mxu0 0.0
    %1599 = vmatprep.subr.mxu0 0.0
    %1600 = vmatpush1.msra.mxu0 0.0
    %1601 = vmatprep.subr.mxu0 0.0
    %1602 = vmatpush1.msra.mxu0 0.0
    %1603 = vmatprep.subr.mxu0 0.0
    %1604 = vmatpush1.msra.mxu0 0.0
    %1605 = vmatprep.subr.mxu0 0.0
    %1606 = vmatpush1.msra.mxu0 0.0
    %1607 = vmatprep.subr.mxu0 0.0
    %1608 = vmatpush1.msra.mxu0 0.0
    %1609 = vmatprep.subr.mxu0 0.0
    %1610 = vmatpush1.msra.mxu0 0.0
    %1611 = vmatprep.subr.mxu0 0.0
    %1612 = vmatpush1.msra.mxu0 0.0
    %1613 = vmatprep.subr.mxu0 0.0
    %1614 = vmatpush1.msra.mxu0 0.0
    %1615 = vmatprep.mubr.f32.mxu0 0.0
    %1616 = vmatmul.mubr.f32.gmra.mrb[0].mxu0 %v1549
    %v1617 = vpop.f32.mrb[0].mxu0
    %v1618 = vadd.f32 0.0, %v1617
    %v1619 = vpop.f32.mrb[0].mxu0
    %1620 = vdwg.mxu0
    %v1622 = vrot.slane %v1618, 6
    %v1624 = vadd.f32 %v578, %v1622
    %v1625 = vxor.u32 %v1624, 2147483648
    %v1626 = vmul.f32 %v1625, 1.442695
    %v1627 = vpow.pop %v1626
    %v1628 = vadd.f32 %v1627, 1.0
    %v1629 = vrcp.pop %v1628
    %v1630 = vmul.f32 1.0, %v1629
    %1632 = vrot.lane.b32.xlu0 %v1624, 32
    %v1633 = vpop.permute.xlu0 %1632
    %v1635 = vmul.f32 %v1630, %v1633
    %1637 = vrot.lane.b32.xlu0 %v1635, 64
    %v1638 = vpop.permute.xlu0 %1637
    %v1640 = vadd.f32 %v1624, %v1638
    %v1641 = vtanh.pop %v1640
    %v1642 = vsub.f32 1.0, %v1630
    %1644 = vrot.lane.b32.xlu0 %v1641, 96
    %v1645 = vpop.permute.xlu0 %1644
    %v1647 = vmul.f32 %v1642, %v1645
    %v1648 = vrot.slane %v1439, 6
    %v1650 = vmul.f32 %v1630, %v1648
    %v1651 = vadd.f32 %v1647, %v1650
    %v1653 = vsel %vm598, %v1548, %v1545
    %v1655 = vsel %vm409, %v1653, 0
    %1657 = vmatprep.subr.mxu0 0.0
    %1658 = vmatpush1.msra.mxu0 %v583
    %1659 = vmatprep.subr.mxu0 0.0
    %1660 = vmatpush1.msra.mxu0 %v584
    %1661 = vmatprep.subr.mxu0 0.0
    %1662 = vmatpush1.msra.mxu0 %v585
    %1663 = vmatprep.subr.mxu0 0.0
    %1664 = vmatpush1.msra.mxu0 %v586
    %1665 = vmatprep.subr.mxu0 0.0
    %1666 = vmatpush1.msra.mxu0 %v587
    %1667 = vmatprep.subr.mxu0 0.0
    %1668 = vmatpush1.msra.mxu0 %v588
    %1669 = vmatprep.subr.mxu0 0.0
    %1670 = vmatpush1.msra.mxu0 %v589
    %1671 = vmatprep.subr.mxu0 0.0
    %1672 = vmatpush1.msra.mxu0 %v590
    %1673 = vmatprep.subr.mxu0 0.0
    %1674 = vmatpush1.msra.mxu0 0.0
    %1675 = vmatprep.subr.mxu0 0.0
    %1676 = vmatpush1.msra.mxu0 0.0
    %1677 = vmatprep.subr.mxu0 0.0
    %1678 = vmatpush1.msra.mxu0 0.0
    %1679 = vmatprep.subr.mxu0 0.0
    %1680 = vmatpush1.msra.mxu0 0.0
    %1681 = vmatprep.subr.mxu0 0.0
    %1682 = vmatpush1.msra.mxu0 0.0
    %1683 = vmatprep.subr.mxu0 0.0
    %1684 = vmatpush1.msra.mxu0 0.0
    %1685 = vmatprep.subr.mxu0 0.0
    %1686 = vmatpush1.msra.mxu0 0.0
    %1687 = vmatprep.subr.mxu0 0.0
    %1688 = vmatpush1.msra.mxu0 0.0
    %1689 = vmatprep.subr.mxu0 0.0
    %1690 = vmatpush1.msra.mxu0 0.0
    %1691 = vmatprep.subr.mxu0 0.0
    %1692 = vmatpush1.msra.mxu0 0.0
    %1693 = vmatprep.subr.mxu0 0.0
    %1694 = vmatpush1.msra.mxu0 0.0
    %1695 = vmatprep.subr.mxu0 0.0
    %1696 = vmatpush1.msra.mxu0 0.0
    %1697 = vmatprep.subr.mxu0 0.0
    %1698 = vmatpush1.msra.mxu0 0.0
    %1699 = vmatprep.subr.mxu0 0.0
    %1700 = vmatpush1.msra.mxu0 0.0
    %1701 = vmatprep.subr.mxu0 0.0
    %1702 = vmatpush1.msra.mxu0 0.0
    %1703 = vmatprep.subr.mxu0 0.0
    %1704 = vmatpush1.msra.mxu0 0.0
    %1705 = vmatprep.subr.mxu0 0.0
    %1706 = vmatpush1.msra.mxu0 0.0
    %1707 = vmatprep.subr.mxu0 0.0
    %1708 = vmatpush1.msra.mxu0 0.0
    %1709 = vmatprep.subr.mxu0 0.0
    %1710 = vmatpush1.msra.mxu0 0.0
    %1711 = vmatprep.subr.mxu0 0.0
    %1712 = vmatpush1.msra.mxu0 0.0
    %1713 = vmatprep.subr.mxu0 0.0
    %1714 = vmatpush1.msra.mxu0 0.0
    %1715 = vmatprep.subr.mxu0 0.0
    %1716 = vmatpush1.msra.mxu0 0.0
    %1717 = vmatprep.subr.mxu0 0.0
    %1718 = vmatpush1.msra.mxu0 0.0
    %1719 = vmatprep.subr.mxu0 0.0
    %1720 = vmatpush1.msra.mxu0 0.0
    %1721 = vmatprep.mubr.f32.mxu0 0.0
    %1722 = vmatmul.mubr.f32.gmra.mrb[0].mxu0 %v1655
    %v1723 = vpop.f32.mrb[0].mxu0
    %v1724 = vadd.f32 %v595, %v1723
    %v1725 = vpop.f32.mrb[0].mxu0
    %1726 = vdwg.mxu0
    %v1727 = vxor.u32 %v1724, 2147483648
    %v1728 = vmul.f32 %v1727, 1.442695
    %v1729 = vpow.pop %v1728
    %v1730 = vadd.f32 %v1729, 1.0
    %v1731 = vrcp.pop %v1730
    %v1732 = vmul.f32 1.0, %v1731
    %1734 = vrot.lane.b32.xlu0 %v1724, 32
    %v1735 = vpop.permute.xlu0 %1734
    %v1737 = vmul.f32 %v1732, %v1735
    %1739 = vrot.lane.b32.xlu0 %v1737, 64
    %v1740 = vpop.permute.xlu0 %1739
    %v1742 = vadd.f32 %v1724, %v1740
    %v1743 = vtanh.pop %v1742
    %v1744 = vsub.f32 1.0, %v1732
    %1746 = vrot.lane.b32.xlu0 %v1743, 96
    %v1747 = vpop.permute.xlu0 %1746
    %v1749 = vmul.f32 %v1744, %v1747
    %v1750 = vmul.f32 %v1732, %v1545
    %v1751 = vadd.f32 %v1749, %v1750
    %v1753 = vrot.slane %v1651, 2
    %1754 = vrot.lane.b32.xlu0 %v1753, 96
    %v1755 = vpop.permute.xlu0 %1754
    %v1756 = vsel %vm598, %v1755, 0
    %1758 = vmatprep.subr.mxu0 0.0
    %1759 = vmatpush1.msra.mxu0 %v579
    %1760 = vmatprep.subr.mxu0 0.0
    %1761 = vmatpush1.msra.mxu0 %v580
    %1762 = vmatprep.subr.mxu0 0.0
    %1763 = vmatpush1.msra.mxu0 %v581
    %1764 = vmatprep.subr.mxu0 0.0
    %1765 = vmatpush1.msra.mxu0 %v582
    %1766 = vmatprep.subr.mxu0 0.0
    %1767 = vmatpush1.msra.mxu0 0.0
    %1768 = vmatprep.subr.mxu0 0.0
    %1769 = vmatpush1.msra.mxu0 0.0
    %1770 = vmatprep.subr.mxu0 0.0
    %1771 = vmatpush1.msra.mxu0 0.0
    %1772 = vmatprep.subr.mxu0 0.0
    %1773 = vmatpush1.msra.mxu0 0.0
    %1774 = vmatprep.subr.mxu0 0.0
    %1775 = vmatpush1.msra.mxu0 0.0
    %1776 = vmatprep.subr.mxu0 0.0
    %1777 = vmatpush1.msra.mxu0 0.0
    %1778 = vmatprep.subr.mxu0 0.0
    %1779 = vmatpush1.msra.mxu0 0.0
    %1780 = vmatprep.subr.mxu0 0.0
    %1781 = vmatpush1.msra.mxu0 0.0
    %1782 = vmatprep.subr.mxu0 0.0
    %1783 = vmatpush1.msra.mxu0 0.0
    %1784 = vmatprep.subr.mxu0 0.0
    %1785 = vmatpush1.msra.mxu0 0.0
    %1786 = vmatprep.subr.mxu0 0.0
    %1787 = vmatpush1.msra.mxu0 0.0
    %1788 = vmatprep.subr.mxu0 0.0
    %1789 = vmatpush1.msra.mxu0 0.0
    %1790 = vmatprep.subr.mxu0 0.0
    %1791 = vmatpush1.msra.mxu0 0.0
    %1792 = vmatprep.subr.mxu0 0.0
    %1793 = vmatpush1.msra.mxu0 0.0
    %1794 = vmatprep.subr.mxu0 0.0
    %1795 = vmatpush1.msra.mxu0 0.0
    %1796 = vmatprep.subr.mxu0 0.0
    %1797 = vmatpush1.msra.mxu0 0.0
    %1798 = vmatprep.subr.mxu0 0.0
    %1799 = vmatpush1.msra.mxu0 0.0
    %1800 = vmatprep.subr.mxu0 0.0
    %1801 = vmatpush1.msra.mxu0 0.0
    %1802 = vmatprep.subr.mxu0 0.0
    %1803 = vmatpush1.msra.mxu0 0.0
    %1804 = vmatprep.subr.mxu0 0.0
    %1805 = vmatpush1.msra.mxu0 0.0
    %1806 = vmatprep.subr.mxu0 0.0
    %1807 = vmatpush1.msra.mxu0 0.0
    %1808 = vmatprep.subr.mxu0 0.0
    %1809 = vmatpush1.msra.mxu0 0.0
    %1810 = vmatprep.subr.mxu0 0.0
    %1811 = vmatpush1.msra.mxu0 0.0
    %1812 = vmatprep.subr.mxu0 0.0
    %1813 = vmatpush1.msra.mxu0 0.0
    %1814 = vmatprep.subr.mxu0 0.0
    %1815 = vmatpush1.msra.mxu0 0.0
    %1816 = vmatprep.subr.mxu0 0.0
    %1817 = vmatpush1.msra.mxu0 0.0
    %1818 = vmatprep.subr.mxu0 0.0
    %1819 = vmatpush1.msra.mxu0 0.0
    %1820 = vmatprep.subr.mxu0 0.0
    %1821 = vmatpush1.msra.mxu0 0.0
    %1822 = vmatprep.mubr.f32.mxu0 0.0
    %1823 = vmatmul.mubr.f32.gmra.mrb[0].mxu0 %v1756
    %v1824 = vpop.f32.mrb[0].mxu0
    %v1825 = vadd.f32 0.0, %v1824
    %v1826 = vpop.f32.mrb[0].mxu0
    %1827 = vdwg.mxu0
    %v1829 = vrot.slane %v1825, 4
    %v1831 = vadd.f32 %v578, %v1829
    %v1832 = vxor.u32 %v1831, 2147483648
    %v1833 = vmul.f32 %v1832, 1.442695
    %v1834 = vpow.pop %v1833
    %v1835 = vadd.f32 %v1834, 1.0
    %v1836 = vrcp.pop %v1835
    %v1837 = vmul.f32 1.0, %v1836
    %1839 = vrot.lane.b32.xlu0 %v1831, 32
    %v1840 = vpop.permute.xlu0 %1839
    %v1842 = vmul.f32 %v1837, %v1840
    %1844 = vrot.lane.b32.xlu0 %v1842, 64
    %v1845 = vpop.permute.xlu0 %1844
    %v1847 = vadd.f32 %v1831, %v1845
    %v1848 = vtanh.pop %v1847
    %v1849 = vsub.f32 1.0, %v1837
    %1851 = vrot.lane.b32.xlu0 %v1848, 96
    %v1852 = vpop.permute.xlu0 %1851
    %v1854 = vmul.f32 %v1849, %v1852
    %v1855 = vrot.slane %v1651, 6
    %v1857 = vmul.f32 %v1837, %v1855
    %v1858 = vadd.f32 %v1854, %v1857
    %1859 = vrot.lane.b32.xlu0 %v1651, 96
    %v1860 = vpop.permute.xlu0 %1859
    %v1863 = vrot.slane %v1751, 6
    %v1865 = vsel %vm598, %v1860, %v1863
    %v1867 = vrot.slane %v1865, 2
    %v1868 = vsel %vm409, %v1867, 0
    %1870 = vmatprep.subr.mxu0 0.0
    %1871 = vmatpush1.msra.mxu0 %v583
    %1872 = vmatprep.subr.mxu0 0.0
    %1873 = vmatpush1.msra.mxu0 %v584
    %1874 = vmatprep.subr.mxu0 0.0
    %1875 = vmatpush1.msra.mxu0 %v585
    %1876 = vmatprep.subr.mxu0 0.0
    %1877 = vmatpush1.msra.mxu0 %v586
    %1878 = vmatprep.subr.mxu0 0.0
    %1879 = vmatpush1.msra.mxu0 %v587
    %1880 = vmatprep.subr.mxu0 0.0
    %1881 = vmatpush1.msra.mxu0 %v588
    %1882 = vmatprep.subr.mxu0 0.0
    %1883 = vmatpush1.msra.mxu0 %v589
    %1884 = vmatprep.subr.mxu0 0.0
    %1885 = vmatpush1.msra.mxu0 %v590
    %1886 = vmatprep.subr.mxu0 0.0
    %1887 = vmatpush1.msra.mxu0 0.0
    %1888 = vmatprep.subr.mxu0 0.0
    %1889 = vmatpush1.msra.mxu0 0.0
    %1890 = vmatprep.subr.mxu0 0.0
    %1891 = vmatpush1.msra.mxu0 0.0
    %1892 = vmatprep.subr.mxu0 0.0
    %1893 = vmatpush1.msra.mxu0 0.0
    %1894 = vmatprep.subr.mxu0 0.0
    %1895 = vmatpush1.msra.mxu0 0.0
    %1896 = vmatprep.subr.mxu0 0.0
    %1897 = vmatpush1.msra.mxu0 0.0
    %1898 = vmatprep.subr.mxu0 0.0
    %1899 = vmatpush1.msra.mxu0 0.0
    %1900 = vmatprep.subr.mxu0 0.0
    %1901 = vmatpush1.msra.mxu0 0.0
    %1902 = vmatprep.subr.mxu0 0.0
    %1903 = vmatpush1.msra.mxu0 0.0
    %1904 = vmatprep.subr.mxu0 0.0
    %1905 = vmatpush1.msra.mxu0 0.0
    %1906 = vmatprep.subr.mxu0 0.0
    %1907 = vmatpush1.msra.mxu0 0.0
    %1908 = vmatprep.subr.mxu0 0.0
    %1909 = vmatpush1.msra.mxu0 0.0
    %1910 = vmatprep.subr.mxu0 0.0
    %1911 = vmatpush1.msra.mxu0 0.0
    %1912 = vmatprep.subr.mxu0 0.0
    %1913 = vmatpush1.msra.mxu0 0.0
    %1914 = vmatprep.subr.mxu0 0.0
    %1915 = vmatpush1.msra.mxu0 0.0
    %1916 = vmatprep.subr.mxu0 0.0
    %1917 = vmatpush1.msra.mxu0 0.0
    %1918 = vmatprep.subr.mxu0 0.0
    %1919 = vmatpush1.msra.mxu0 0.0
    %1920 = vmatprep.subr.mxu0 0.0
    %1921 = vmatpush1.msra.mxu0 0.0
    %1922 = vmatprep.subr.mxu0 0.0
    %1923 = vmatpush1.msra.mxu0 0.0
    %1924 = vmatprep.subr.mxu0 0.0
    %1925 = vmatpush1.msra.mxu0 0.0
    %1926 = vmatprep.subr.mxu0 0.0
    %1927 = vmatpush1.msra.mxu0 0.0
    %1928 = vmatprep.subr.mxu0 0.0
    %1929 = vmatpush1.msra.mxu0 0.0
    %1930 = vmatprep.subr.mxu0 0.0
    %1931 = vmatpush1.msra.mxu0 0.0
    %1932 = vmatprep.subr.mxu0 0.0
    %1933 = vmatpush1.msra.mxu0 0.0
    %1934 = vmatprep.mubr.f32.mxu0 0.0
    %1935 = vmatmul.mubr.f32.gmra.mrb[0].mxu0 %v1868
    %v1936 = vpop.f32.mrb[0].mxu0
    %v1937 = vadd.f32 %v595, %v1936
    %v1938 = vpop.f32.mrb[0].mxu0
    %1939 = vdwg.mxu0
    %v1940 = vxor.u32 %v1937, 2147483648
    %v1941 = vmul.f32 %v1940, 1.442695
    %v1942 = vpow.pop %v1941
    %v1943 = vadd.f32 %v1942, 1.0
    %v1944 = vrcp.pop %v1943
    %v1945 = vmul.f32 1.0, %v1944
    %1947 = vrot.lane.b32.xlu0 %v1937, 32
    %v1948 = vpop.permute.xlu0 %1947
    %v1950 = vmul.f32 %v1945, %v1948
    %1952 = vrot.lane.b32.xlu0 %v1950, 64
    %v1953 = vpop.permute.xlu0 %1952
    %v1955 = vadd.f32 %v1937, %v1953
    %v1956 = vtanh.pop %v1955
    %v1957 = vsub.f32 1.0, %v1945
    %1959 = vrot.lane.b32.xlu0 %v1956, 96
    %v1960 = vpop.permute.xlu0 %1959
    %v1962 = vmul.f32 %v1957, %v1960
    %v1963 = vmul.f32 %v1945, %v1751
    %v1964 = vadd.f32 %v1962, %v1963
    %v1966 = vrot.slane %v1858, 4
    %1967 = vrot.lane.b32.xlu0 %v1966, 96
    %v1968 = vpop.permute.xlu0 %1967
    %v1969 = vsel %vm598, %v1968, 0
    %1971 = vmatprep.subr.mxu0 0.0
    %1972 = vmatpush1.msra.mxu0 %v579
    %1973 = vmatprep.subr.mxu0 0.0
    %1974 = vmatpush1.msra.mxu0 %v580
    %1975 = vmatprep.subr.mxu0 0.0
    %1976 = vmatpush1.msra.mxu0 %v581
    %1977 = vmatprep.subr.mxu0 0.0
    %1978 = vmatpush1.msra.mxu0 %v582
    %1979 = vmatprep.subr.mxu0 0.0
    %1980 = vmatpush1.msra.mxu0 0.0
    %1981 = vmatprep.subr.mxu0 0.0
    %1982 = vmatpush1.msra.mxu0 0.0
    %1983 = vmatprep.subr.mxu0 0.0
    %1984 = vmatpush1.msra.mxu0 0.0
    %1985 = vmatprep.subr.mxu0 0.0
    %1986 = vmatpush1.msra.mxu0 0.0
    %1987 = vmatprep.subr.mxu0 0.0
    %1988 = vmatpush1.msra.mxu0 0.0
    %1989 = vmatprep.subr.mxu0 0.0
    %1990 = vmatpush1.msra.mxu0 0.0
    %1991 = vmatprep.subr.mxu0 0.0
    %1992 = vmatpush1.msra.mxu0 0.0
    %1993 = vmatprep.subr.mxu0 0.0
    %1994 = vmatpush1.msra.mxu0 0.0
    %1995 = vmatprep.subr.mxu0 0.0
    %1996 = vmatpush1.msra.mxu0 0.0
    %1997 = vmatprep.subr.mxu0 0.0
    %1998 = vmatpush1.msra.mxu0 0.0
    %1999 = vmatprep.subr.mxu0 0.0
    %2000 = vmatpush1.msra.mxu0 0.0
    %2001 = vmatprep.subr.mxu0 0.0
    %2002 = vmatpush1.msra.mxu0 0.0
    %2003 = vmatprep.subr.mxu0 0.0
    %2004 = vmatpush1.msra.mxu0 0.0
    %2005 = vmatprep.subr.mxu0 0.0
    %2006 = vmatpush1.msra.mxu0 0.0
    %2007 = vmatprep.subr.mxu0 0.0
    %2008 = vmatpush1.msra.mxu0 0.0
    %2009 = vmatprep.subr.mxu0 0.0
    %2010 = vmatpush1.msra.mxu0 0.0
    %2011 = vmatprep.subr.mxu0 0.0
    %2012 = vmatpush1.msra.mxu0 0.0
    %2013 = vmatprep.subr.mxu0 0.0
    %2014 = vmatpush1.msra.mxu0 0.0
    %2015 = vmatprep.subr.mxu0 0.0
    %2016 = vmatpush1.msra.mxu0 0.0
    %2017 = vmatprep.subr.mxu0 0.0
    %2018 = vmatpush1.msra.mxu0 0.0
    %2019 = vmatprep.subr.mxu0 0.0
    %2020 = vmatpush1.msra.mxu0 0.0
    %2021 = vmatprep.subr.mxu0 0.0
    %2022 = vmatpush1.msra.mxu0 0.0
    %2023 = vmatprep.subr.mxu0 0.0
    %2024 = vmatpush1.msra.mxu0 0.0
    %2025 = vmatprep.subr.mxu0 0.0
    %2026 = vmatpush1.msra.mxu0 0.0
    %2027 = vmatprep.subr.mxu0 0.0
    %2028 = vmatpush1.msra.mxu0 0.0
    %2029 = vmatprep.subr.mxu0 0.0
    %2030 = vmatpush1.msra.mxu0 0.0
    %2031 = vmatprep.subr.mxu0 0.0
    %2032 = vmatpush1.msra.mxu0 0.0
    %2033 = vmatprep.subr.mxu0 0.0
    %2034 = vmatpush1.msra.mxu0 0.0
    %2035 = vmatprep.mubr.f32.mxu0 0.0
    %2036 = vmatmul.mubr.f32.gmra.mrb[0].mxu0 %v1969
    %v2037 = vpop.f32.mrb[0].mxu0
    %v2038 = vadd.f32 0.0, %v2037
    %v2039 = vpop.f32.mrb[0].mxu0
    %2040 = vdwg.mxu0
    %v2042 = vrot.slane %v2038, 2
    %v2044 = vadd.f32 %v578, %v2042
    %v2045 = vxor.u32 %v2044, 2147483648
    %v2046 = vmul.f32 %v2045, 1.442695
    %v2047 = vpow.pop %v2046
    %v2048 = vadd.f32 %v2047, 1.0
    %v2049 = vrcp.pop %v2048
    %v2050 = vmul.f32 1.0, %v2049
    %2052 = vrot.lane.b32.xlu0 %v2044, 32
    %v2053 = vpop.permute.xlu0 %2052
    %v2055 = vmul.f32 %v2050, %v2053
    %2057 = vrot.lane.b32.xlu0 %v2055, 64
    %v2058 = vpop.permute.xlu0 %2057
    %v2060 = vadd.f32 %v2044, %v2058
    %v2061 = vtanh.pop %v2060
    %v2062 = vsub.f32 1.0, %v2050
    %2064 = vrot.lane.b32.xlu0 %v2061, 96
    %v2065 = vpop.permute.xlu0 %2064
    %v2067 = vmul.f32 %v2062, %v2065
    %v2068 = vrot.slane %v1858, 6
    %v2070 = vmul.f32 %v2050, %v2068
    %v2071 = vadd.f32 %v2067, %v2070
    %2072 = vrot.lane.b32.xlu0 %v1858, 96
    %v2073 = vpop.permute.xlu0 %2072
    %v2076 = vrot.slane %v1964, 4
    %v2078 = vsel %vm598, %v2073, %v2076
    %v2080 = vrot.slane %v2078, 4
    %v2081 = vsel %vm409, %v2080, 0
    %2083 = vmatprep.subr.mxu0 0.0
    %2084 = vmatpush1.msra.mxu0 %v583
    %2085 = vmatprep.subr.mxu0 0.0
    %2086 = vmatpush1.msra.mxu0 %v584
    %2087 = vmatprep.subr.mxu0 0.0
    %2088 = vmatpush1.msra.mxu0 %v585
    %2089 = vmatprep.subr.mxu0 0.0
    %2090 = vmatpush1.msra.mxu0 %v586
    %2091 = vmatprep.subr.mxu0 0.0
    %2092 = vmatpush1.msra.mxu0 %v587
    %2093 = vmatprep.subr.mxu0 0.0
    %2094 = vmatpush1.msra.mxu0 %v588
    %2095 = vmatprep.subr.mxu0 0.0
    %2096 = vmatpush1.msra.mxu0 %v589
    %2097 = vmatprep.subr.mxu0 0.0
    %2098 = vmatpush1.msra.mxu0 %v590
    %2099 = vmatprep.subr.mxu0 0.0
    %2100 = vmatpush1.msra.mxu0 0.0
    %2101 = vmatprep.subr.mxu0 0.0
    %2102 = vmatpush1.msra.mxu0 0.0
    %2103 = vmatprep.subr.mxu0 0.0
    %2104 = vmatpush1.msra.mxu0 0.0
    %2105 = vmatprep.subr.mxu0 0.0
    %2106 = vmatpush1.msra.mxu0 0.0
    %2107 = vmatprep.subr.mxu0 0.0
    %2108 = vmatpush1.msra.mxu0 0.0
    %2109 = vmatprep.subr.mxu0 0.0
    %2110 = vmatpush1.msra.mxu0 0.0
    %2111 = vmatprep.subr.mxu0 0.0
    %2112 = vmatpush1.msra.mxu0 0.0
    %2113 = vmatprep.subr.mxu0 0.0
    %2114 = vmatpush1.msra.mxu0 0.0
    %2115 = vmatprep.subr.mxu0 0.0
    %2116 = vmatpush1.msra.mxu0 0.0
    %2117 = vmatprep.subr.mxu0 0.0
    %2118 = vmatpush1.msra.mxu0 0.0
    %2119 = vmatprep.subr.mxu0 0.0
    %2120 = vmatpush1.msra.mxu0 0.0
    %2121 = vmatprep.subr.mxu0 0.0
    %2122 = vmatpush1.msra.mxu0 0.0
    %2123 = vmatprep.subr.mxu0 0.0
    %2124 = vmatpush1.msra.mxu0 0.0
    %2125 = vmatprep.subr.mxu0 0.0
    %2126 = vmatpush1.msra.mxu0 0.0
    %2127 = vmatprep.subr.mxu0 0.0
    %2128 = vmatpush1.msra.mxu0 0.0
    %2129 = vmatprep.subr.mxu0 0.0
    %2130 = vmatpush1.msra.mxu0 0.0
    %2131 = vmatprep.subr.mxu0 0.0
    %2132 = vmatpush1.msra.mxu0 0.0
    %2133 = vmatprep.subr.mxu0 0.0
    %2134 = vmatpush1.msra.mxu0 0.0
    %2135 = vmatprep.subr.mxu0 0.0
    %2136 = vmatpush1.msra.mxu0 0.0
    %2137 = vmatprep.subr.mxu0 0.0
    %2138 = vmatpush1.msra.mxu0 0.0
    %2139 = vmatprep.subr.mxu0 0.0
    %2140 = vmatpush1.msra.mxu0 0.0
    %2141 = vmatprep.subr.mxu0 0.0
    %2142 = vmatpush1.msra.mxu0 0.0
    %2143 = vmatprep.subr.mxu0 0.0
    %2144 = vmatpush1.msra.mxu0 0.0
    %2145 = vmatprep.subr.mxu0 0.0
    %2146 = vmatpush1.msra.mxu0 0.0
    %2147 = vmatprep.mubr.f32.mxu0 0.0
    %2148 = vmatmul.mubr.f32.gmra.mrb[0].mxu0 %v2081
    %v2149 = vpop.f32.mrb[0].mxu0
    %v2150 = vadd.f32 %v595, %v2149
    %v2151 = vpop.f32.mrb[0].mxu0
    %2152 = vdwg.mxu0
    %v2153 = vxor.u32 %v2150, 2147483648
    %v2154 = vmul.f32 %v2153, 1.442695
    %v2155 = vpow.pop %v2154
    %v2156 = vadd.f32 %v2155, 1.0
    %v2157 = vrcp.pop %v2156
    %v2158 = vmul.f32 1.0, %v2157
    %2160 = vrot.lane.b32.xlu0 %v2150, 32
    %v2161 = vpop.permute.xlu0 %2160
    %v2163 = vmul.f32 %v2158, %v2161
    %2165 = vrot.lane.b32.xlu0 %v2163, 64
    %v2166 = vpop.permute.xlu0 %2165
    %v2168 = vadd.f32 %v2150, %v2166
    %v2169 = vtanh.pop %v2168
    %v2170 = vsub.f32 1.0, %v2158
    %2172 = vrot.lane.b32.xlu0 %v2169, 96
    %v2173 = vpop.permute.xlu0 %2172
    %v2175 = vmul.f32 %v2170, %v2173
    %v2176 = vmul.f32 %v2158, %v1964
    %v2177 = vadd.f32 %v2175, %v2176
    %2179 = vrot.lane.b32.xlu0 %v2071, 96
    %v2180 = vpop.permute.xlu0 %2179
    %v2183 = vrot.slane %v2177, 2
    %v2185 = vsel %vm598, %v2180, %v2183
    %v2187 = vrot.slane %v2185, 6
    %v2188 = vsel %vm409, %v2187, 0
    %2190 = vmatprep.subr.mxu0 0.0
    %2191 = vmatpush1.msra.mxu0 %v583
    %2192 = vmatprep.subr.mxu0 0.0
    %2193 = vmatpush1.msra.mxu0 %v584
    %2194 = vmatprep.subr.mxu0 0.0
    %2195 = vmatpush1.msra.mxu0 %v585
    %2196 = vmatprep.subr.mxu0 0.0
    %2197 = vmatpush1.msra.mxu0 %v586
    %2198 = vmatprep.subr.mxu0 0.0
    %2199 = vmatpush1.msra.mxu0 %v587
    %2200 = vmatprep.subr.mxu0 0.0
    %2201 = vmatpush1.msra.mxu0 %v588
    %2202 = vmatprep.subr.mxu0 0.0
    %2203 = vmatpush1.msra.mxu0 %v589
    %2204 = vmatprep.subr.mxu0 0.0
    %2205 = vmatpush1.msra.mxu0 %v590
    %2206 = vmatprep.subr.mxu0 0.0
    %2207 = vmatpush1.msra.mxu0 0.0
    %2208 = vmatprep.subr.mxu0 0.0
    %2209 = vmatpush1.msra.mxu0 0.0
    %2210 = vmatprep.subr.mxu0 0.0
    %2211 = vmatpush1.msra.mxu0 0.0
    %2212 = vmatprep.subr.mxu0 0.0
    %2213 = vmatpush1.msra.mxu0 0.0
    %2214 = vmatprep.subr.mxu0 0.0
    %2215 = vmatpush1.msra.mxu0 0.0
    %2216 = vmatprep.subr.mxu0 0.0
    %2217 = vmatpush1.msra.mxu0 0.0
    %2218 = vmatprep.subr.mxu0 0.0
    %2219 = vmatpush1.msra.mxu0 0.0
    %2220 = vmatprep.subr.mxu0 0.0
    %2221 = vmatpush1.msra.mxu0 0.0
    %2222 = vmatprep.subr.mxu0 0.0
    %2223 = vmatpush1.msra.mxu0 0.0
    %2224 = vmatprep.subr.mxu0 0.0
    %2225 = vmatpush1.msra.mxu0 0.0
    %2226 = vmatprep.subr.mxu0 0.0
    %2227 = vmatpush1.msra.mxu0 0.0
    %2228 = vmatprep.subr.mxu0 0.0
    %2229 = vmatpush1.msra.mxu0 0.0
    %2230 = vmatprep.subr.mxu0 0.0
    %2231 = vmatpush1.msra.mxu0 0.0
    %2232 = vmatprep.subr.mxu0 0.0
    %2233 = vmatpush1.msra.mxu0 0.0
    %2234 = vmatprep.subr.mxu0 0.0
    %2235 = vmatpush1.msra.mxu0 0.0
    %2236 = vmatprep.subr.mxu0 0.0
    %2237 = vmatpush1.msra.mxu0 0.0
    %2238 = vmatprep.subr.mxu0 0.0
    %2239 = vmatpush1.msra.mxu0 0.0
    %2240 = vmatprep.subr.mxu0 0.0
    %2241 = vmatpush1.msra.mxu0 0.0
    %2242 = vmatprep.subr.mxu0 0.0
    %2243 = vmatpush1.msra.mxu0 0.0
    %2244 = vmatprep.subr.mxu0 0.0
    %2245 = vmatpush1.msra.mxu0 0.0
    %2246 = vmatprep.subr.mxu0 0.0
    %2247 = vmatpush1.msra.mxu0 0.0
    %2248 = vmatprep.subr.mxu0 0.0
    %2249 = vmatpush1.msra.mxu0 0.0
    %2250 = vmatprep.subr.mxu0 0.0
    %2251 = vmatpush1.msra.mxu0 0.0
    %2252 = vmatprep.subr.mxu0 0.0
    %2253 = vmatpush1.msra.mxu0 0.0
    %2254 = vmatprep.mubr.f32.mxu0 0.0
    %2255 = vmatmul.mubr.f32.gmra.mrb[0].mxu0 %v2188
    %v2256 = vpop.f32.mrb[0].mxu0
    %v2257 = vadd.f32 %v595, %v2256
    %v2258 = vpop.f32.mrb[0].mxu0
    %2259 = vdwg.mxu0
    %v2260 = vxor.u32 %v2257, 2147483648
    %v2261 = vmul.f32 %v2260, 1.442695
    %v2262 = vpow.pop %v2261
    %v2263 = vadd.f32 %v2262, 1.0
    %v2264 = vrcp.pop %v2263
    %v2265 = vmul.f32 1.0, %v2264
    %2267 = vrot.lane.b32.xlu0 %v2257, 32
    %v2268 = vpop.permute.xlu0 %2267
    %v2270 = vmul.f32 %v2265, %v2268
    %2272 = vrot.lane.b32.xlu0 %v2270, 64
    %v2273 = vpop.permute.xlu0 %2272
    %v2275 = vadd.f32 %v2257, %v2273
    %v2276 = vtanh.pop %v2275
    %v2277 = vsub.f32 1.0, %v2265
    %2279 = vrot.lane.b32.xlu0 %v2276, 96
    %v2280 = vpop.permute.xlu0 %2279
    %v2282 = vmul.f32 %v2277, %v2280
    %v2283 = vmul.f32 %v2265, %v2177
    %v2284 = vadd.f32 %v2282, %v2283
    %v2285 = vrot.slane %v1123, 6
    %v2287 = vrot.slane %v1336, 4
    %v2290 = vrot.slane %v1545, 2
    %v2292 = vrot.slane %v1964, 6
    %v2294 = vrot.slane %v2177, 4
    %v2297 = vrot.slane %v2284, 2
    %vm2299 = vcmask 1041408
    %v2300 = vsel %vm2299, %v910, %v2285
    %vm2301 = vcmask 1043456
    %v2302 = vsel %vm2301, %v2300, %v2287
    %vm2303 = vcmask 1045504
    %v2304 = vsel %vm2303, %v2302, %v2290
    %v2305 = vsel %vm2299, %v1751, %v2292
    %v2306 = vsel %vm2301, %v2305, %v2294
    %v2307 = vsel %vm2303, %v2306, %v2297
    %v2308 = vld [vmem:[%s2 + $0x170] sm:$0xff]
    %v2309 = vld [vmem:[%s2 + $0x178] sm:$0xff]
    %v2310 = vld [vmem:[%s2 + $0x180] sm:$0xff]
    %v2311 = vld [vmem:[%s2 + $0x188] sm:$0xff]
    %v2312 = vld [vmem:[%s2 + $0x190] sm:$0x1]
    %v2313 = vlaneseq
    %v2314 = vshrl.u32 %v2313, 7
    %v2315 = vsub.s32 0, %v2314
    %v2316 = vrot.slane %v2312, %v2315
    %2319 = vrot.lane.b32.xlu0 %v2304, 96
    %v2320 = vpop.permute.xlu0 %2319
    %2321 = vrot.lane.b32.xlu0 %v2307, 96
    %v2322 = vpop.permute.xlu0 %2321
    %v2323 = vsel %vm598, %v2320, 0
    %v2325 = vsel %vm598, %v2322, 0
    %2327 = vmatprep.subr.mxu0 0.0
    %2328 = vmatpush1.msra.mxu0 %v2308
    %2329 = vmatprep.subr.mxu0 0.0
    %2330 = vmatpush1.msra.mxu0 %v2309
    %2331 = vmatprep.subr.mxu0 0.0
    %2332 = vmatpush1.msra.mxu0 %v2310
    %2333 = vmatprep.subr.mxu0 0.0
    %2334 = vmatpush1.msra.mxu0 %v2311
    %2335 = vmatprep.subr.mxu0 0.0
    %2336 = vmatpush1.msra.mxu0 0.0
    %2337 = vmatprep.subr.mxu0 0.0
    %2338 = vmatpush1.msra.mxu0 0.0
    %2339 = vmatprep.subr.mxu0 0.0
    %2340 = vmatpush1.msra.mxu0 0.0
    %2341 = vmatprep.subr.mxu0 0.0
    %2342 = vmatpush1.msra.mxu0 0.0
    %2343 = vmatprep.subr.mxu0 0.0
    %2344 = vmatpush1.msra.mxu0 0.0
    %2345 = vmatprep.subr.mxu0 0.0
    %2346 = vmatpush1.msra.mxu0 0.0
    %2347 = vmatprep.subr.mxu0 0.0
    %2348 = vmatpush1.msra.mxu0 0.0
    %2349 = vmatprep.subr.mxu0 0.0
    %2350 = vmatpush1.msra.mxu0 0.0
    %2351 = vmatprep.subr.mxu0 0.0
    %2352 = vmatpush1.msra.mxu0 0.0
    %2353 = vmatprep.subr.mxu0 0.0
    %2354 = vmatpush1.msra.mxu0 0.0
    %2355 = vmatprep.subr.mxu0 0.0
    %2356 = vmatpush1.msra.mxu0 0.0
    %2357 = vmatprep.subr.mxu0 0.0
    %2358 = vmatpush1.msra.mxu0 0.0
    %2359 = vmatprep.subr.mxu0 0.0
    %2360 = vmatpush1.msra.mxu0 0.0
    %2361 = vmatprep.subr.mxu0 0.0
    %2362 = vmatpush1.msra.mxu0 0.0
    %2363 = vmatprep.subr.mxu0 0.0
    %2364 = vmatpush1.msra.mxu0 0.0
    %2365 = vmatprep.subr.mxu0 0.0
    %2366 = vmatpush1.msra.mxu0 0.0
    %2367 = vmatprep.subr.mxu0 0.0
    %2368 = vmatpush1.msra.mxu0 0.0
    %2369 = vmatprep.subr.mxu0 0.0
    %2370 = vmatpush1.msra.mxu0 0.0
    %2371 = vmatprep.subr.mxu0 0.0
    %2372 = vmatpush1.msra.mxu0 0.0
    %2373 = vmatprep.subr.mxu0 0.0
    %2374 = vmatpush1.msra.mxu0 0.0
    %2375 = vmatprep.subr.mxu0 0.0
    %2376 = vmatpush1.msra.mxu0 0.0
    %2377 = vmatprep.subr.mxu0 0.0
    %2378 = vmatpush1.msra.mxu0 0.0
    %2379 = vmatprep.subr.mxu0 0.0
    %2380 = vmatpush1.msra.mxu0 0.0
    %2381 = vmatprep.subr.mxu0 0.0
    %2382 = vmatpush1.msra.mxu0 0.0
    %2383 = vmatprep.subr.mxu0 0.0
    %2384 = vmatpush1.msra.mxu0 0.0
    %2385 = vmatprep.subr.mxu0 0.0
    %2386 = vmatpush1.msra.mxu0 0.0
    %2387 = vmatprep.subr.mxu0 0.0
    %2388 = vmatpush1.msra.mxu0 0.0
    %2389 = vmatprep.subr.mxu0 0.0
    %2390 = vmatpush1.msra.mxu0 0.0
    %2391 = vmatprep.mubr.f32.mxu0 0.0
    %2392 = vmatmul.mubr.f32.gmra.mrb[0].mxu0 %v2323
    %v2393 = vpop.f32.mrb[0].mxu0
    %v2394 = vadd.f32 %v2316, %v2393
    %v2395 = vpop.f32.mrb[0].mxu0
    %2396 = vmatprep.mubr.f32.mxu0 0.0
    %2397 = vmatmul.mubr.f32.gmra.mrb[0].mxu0 %v2325
    %v2398 = vpop.f32.mrb[0].mxu0
    %v2399 = vadd.f32 %v2316, %v2398
    %v2400 = vpop.f32.mrb[0].mxu0
    %2401 = vdwg.mxu0
    %vm2402 = vcmp.gt.f32.partialorder %v2394, 0.0
    %vm2403 = vcmp.gt.f32.partialorder %v2399, 0.0
    %v2404 = vmul.f32 %v2394, 0.01
    %v2405 = vmul.f32 %v2399, 0.01
    %v2406 = vsel %vm2402, %v2394, %v2404
    %v2407 = vsel %vm2403, %v2399, %v2405
    %v2408 = vld [vmem:[%s2 + $0x198] sm:$0xff]
    %v2409 = vld [vmem:[%s2 + $0x1a0] sm:$0xff]
    %v2410 = vld [vmem:[%s2 + $0x1a8] sm:$0xff]
    %v2411 = vld [vmem:[%s2 + $0x1b0] sm:$0xff]
    %v2412 = vld [vmem:[%s2 + $0x1b8] sm:$0x1]
    %v2413 = vlaneseq
    %v2414 = vshrl.u32 %v2413, 7
    %v2415 = vsub.s32 0, %v2414
    %v2416 = vrot.slane %v2412, %v2415
    %v2418 = vsel %vm598, %v2406, 0
    %v2421 = vsel %vm598, %v2407, 0
    %2423 = vmatprep.subr.mxu0 0.0
    %2424 = vmatpush1.msra.mxu0 %v2408
    %2425 = vmatprep.subr.mxu0 0.0
    %2426 = vmatpush1.msra.mxu0 %v2409
    %2427 = vmatprep.subr.mxu0 0.0
    %2428 = vmatpush1.msra.mxu0 %v2410
    %2429 = vmatprep.subr.mxu0 0.0
    %2430 = vmatpush1.msra.mxu0 %v2411
    %2431 = vmatprep.subr.mxu0 0.0
    %2432 = vmatpush1.msra.mxu0 0.0
    %2433 = vmatprep.subr.mxu0 0.0
    %2434 = vmatpush1.msra.mxu0 0.0
    %2435 = vmatprep.subr.mxu0 0.0
    %2436 = vmatpush1.msra.mxu0 0.0
    %2437 = vmatprep.subr.mxu0 0.0
    %2438 = vmatpush1.msra.mxu0 0.0
    %2439 = vmatprep.subr.mxu0 0.0
    %2440 = vmatpush1.msra.mxu0 0.0
    %2441 = vmatprep.subr.mxu0 0.0
    %2442 = vmatpush1.msra.mxu0 0.0
    %2443 = vmatprep.subr.mxu0 0.0
    %2444 = vmatpush1.msra.mxu0 0.0
    %2445 = vmatprep.subr.mxu0 0.0
    %2446 = vmatpush1.msra.mxu0 0.0
    %2447 = vmatprep.subr.mxu0 0.0
    %2448 = vmatpush1.msra.mxu0 0.0
    %2449 = vmatprep.subr.mxu0 0.0
    %2450 = vmatpush1.msra.mxu0 0.0
    %2451 = vmatprep.subr.mxu0 0.0
    %2452 = vmatpush1.msra.mxu0 0.0
    %2453 = vmatprep.subr.mxu0 0.0
    %2454 = vmatpush1.msra.mxu0 0.0
    %2455 = vmatprep.subr.mxu0 0.0
    %2456 = vmatpush1.msra.mxu0 0.0
    %2457 = vmatprep.subr.mxu0 0.0
    %2458 = vmatpush1.msra.mxu0 0.0
    %2459 = vmatprep.subr.mxu0 0.0
    %2460 = vmatpush1.msra.mxu0 0.0
    %2461 = vmatprep.subr.mxu0 0.0
    %2462 = vmatpush1.msra.mxu0 0.0
    %2463 = vmatprep.subr.mxu0 0.0
    %2464 = vmatpush1.msra.mxu0 0.0
    %2465 = vmatprep.subr.mxu0 0.0
    %2466 = vmatpush1.msra.mxu0 0.0
    %2467 = vmatprep.subr.mxu0 0.0
    %2468 = vmatpush1.msra.mxu0 0.0
    %2469 = vmatprep.subr.mxu0 0.0
    %2470 = vmatpush1.msra.mxu0 0.0
    %2471 = vmatprep.subr.mxu0 0.0
    %2472 = vmatpush1.msra.mxu0 0.0
    %2473 = vmatprep.subr.mxu0 0.0
    %2474 = vmatpush1.msra.mxu0 0.0
    %2475 = vmatprep.subr.mxu0 0.0
    %2476 = vmatpush1.msra.mxu0 0.0
    %2477 = vmatprep.subr.mxu0 0.0
    %2478 = vmatpush1.msra.mxu0 0.0
    %2479 = vmatprep.subr.mxu0 0.0
    %2480 = vmatpush1.msra.mxu0 0.0
    %2481 = vmatprep.subr.mxu0 0.0
    %2482 = vmatpush1.msra.mxu0 0.0
    %2483 = vmatprep.subr.mxu0 0.0
    %2484 = vmatpush1.msra.mxu0 0.0
    %2485 = vmatprep.subr.mxu0 0.0
    %2486 = vmatpush1.msra.mxu0 0.0
    %2487 = vmatprep.mubr.f32.mxu0 0.0
    %2488 = vmatmul.mubr.f32.gmra.mrb[0].mxu0 %v2418
    %v2489 = vpop.f32.mrb[0].mxu0
    %v2490 = vadd.f32 %v2416, %v2489
    %v2491 = vpop.f32.mrb[0].mxu0
    %2492 = vmatprep.mubr.f32.mxu0 0.0
    %2493 = vmatmul.mubr.f32.gmra.mrb[0].mxu0 %v2421
    %v2494 = vpop.f32.mrb[0].mxu0
    %v2495 = vadd.f32 %v2416, %v2494
    %v2496 = vpop.f32.mrb[0].mxu0
    %2497 = vdwg.mxu0
    %2498 = vst.msk [vmem:[%s3] sm:$0xff] %vm114, %v2490
    %2499 = vst.msk [vmem:[%s3 + $0x8] sm:$0xff] %vm114, %v2495
    %v2500 = vrot.slane %v2071, 6
    %v2502 = vrot.slane %v2284, 6
    %v2504 = vsel %vm2299, %v2500, %v2502
    %2506 = vrot.lane.b32.xlu0 %v2504, 96
    %v2507 = vpop.permute.xlu0 %2506
    %vm2509 = vcmask 257024
    %2510 = vst.msk [vmem:[#allocation2] sm:$0xf] %vm2509, %v2507
    // Predicated region
    $region14: #{_lambda_.1} parent=1 // pred_check
      _
    $region15: #{_lambda_.1} parent=1 // pred_check_branch
      %2512 = sbr.rel (0) target = $region17
    $region16: #{_lambda_.1} parent=1 // pred_region
      _
    $region17: #{_lambda_.1} parent=1 // pred_fallthru
      _
    // Predicated region
    $region18: #{_lambda_.1} parent=1 // pred_check
      _
    $region19: #{_lambda_.1} parent=1 // pred_check_branch
      %2514 = sbr.rel (0) target = $region21
    $region20: #{_lambda_.1} parent=1 // pred_region
      %s2516 = ssub.s32 64, 64
      %2517 = vsyncadd [#allocation3], %s2516
      %s2519 = sshll.u32 [#allocation2], 4
      %s2520 = int_to_ptr.vmem [resolvable:$true] %s2519
      %2522 = dma.vmem_to_hbm [thread:$0]  %s2520, 64, %s4, [#allocation3]
    $region21: #{_lambda_.1} parent=1 // pred_fallthru
      _
    // Predicated region
    $region22: #{_lambda_.1} parent=1 // pred_check
      _
    $region23: #{_lambda_.1} parent=1 // pred_check_branch
      %2524 = sbr.rel (0) target = $region25
    $region24: #{_lambda_.1} parent=1 // pred_region
      _
    $region25: #{_lambda_.1} parent=1 // pred_fallthru
      _
    // Predicated region
    $region26: #{_lambda_.1} parent=1 // pred_check
      _
    $region27: #{_lambda_.1} parent=1 // pred_check_branch
      %2526 = sbr.rel (0) target = $region29
    $region28: #{_lambda_.1} parent=1 // pred_region
      %2527 = dma.done [#allocation3], 64
    $region29: #{_lambda_.1} parent=1 // pred_fallthru
      _
    %2528 = vsyncpa [#allocation3], 1

</llo_original>
